<compile_context>
chip_gen: v7x
topology: tpu7x:2x2x1
jax: 0.10.0
libtpu: 0.0.40
codegen_flags: <defaults>
</compile_context>

<pallas_src>
import functools

import jax
import jax.numpy as jnp
from jax import lax
from jax.experimental import pallas as pl
from jax.experimental.pallas import tpu as pltpu


# ----------------------------------------------------------------------------
# Pallas kernel: one row tile (= `seqs_per_block` whole sequences) per grid step
# ----------------------------------------------------------------------------
def policy_kernel(x_ref,
                  w0_ref, b0_ref,
                  wqkv_ref, bqkv_ref,
                  wo_ref, bo_ref,
                  ln1g_ref, ln1b_ref,
                  wff1_ref, bff1_ref, wff2_ref, bff2_ref,
                  ln2g_ref, ln2b_ref,
                  w1_ref, b1_ref,
                  o_ref,
                  ctx_ref,
                  *, seq, nhead, head_dim, seqs_per_block):
    f32 = jnp.float32
    H = nhead * head_dim
    scale = 1.0 / (head_dim ** 0.5)

    def softmax_last(v):
        # Exact normalization (output is a probability distribution; the
        # approx EUP reciprocal produced visible sum-to-one error).
        m = jnp.max(v, axis=-1, keepdims=True)
        e = jnp.exp(v - m)
        return e / jnp.sum(e, axis=-1, keepdims=True)

    def layernorm(v, g, b, eps=1e-5):
        mu = jnp.mean(v, axis=-1, keepdims=True)
        var = jnp.mean((v - mu) ** 2, axis=-1, keepdims=True)
        return (v - mu) * lax.rsqrt(var + eps) * g + b

    # ---- fc0 on the whole row tile: (TM, D_in) @ (D_in, H) ------------------
    h = jnp.dot(x_ref[...], w0_ref[...], preferred_element_type=f32) + b0_ref[...]

    # ---- fused QKV: one MXU pass with N = 3H lanes --------------------------
    qkv = jnp.dot(h, wqkv_ref[...], preferred_element_type=f32) + bqkv_ref[...]

    # ---- per-sequence, per-head attention; contexts -> VMEM scratch slab ----
    for b in range(seqs_per_block):          # small, bounded by the row tile
        r0 = b * seq
        qb = qkv[r0:r0 + seq, 0:H]           # (S, H)
        kb = qkv[r0:r0 + seq, H:2 * H]
        vb = qkv[r0:r0 + seq, 2 * H:3 * H]
        ctx_heads = []
        for n in range(nhead):
            c0 = n * head_dim
            qh = qb[:, c0:c0 + head_dim]     # (S, hd)
            kh = kb[:, c0:c0 + head_dim]
            vh = vb[:, c0:c0 + head_dim]
            # scores: contract last axes of both (no explicit transpose)
            s = lax.dot_general(qh, kh, (((1,), (1,)), ((), ())),
                                preferred_element_type=f32) * scale   # (S, S)
            w_attn = softmax_last(s)
            ctx_heads.append(jnp.dot(w_attn, vh, preferred_element_type=f32))
        # contiguous per-head contexts rebuild (S, H) -> scratch row slab
        ctx_ref[r0:r0 + seq, :] = jnp.concatenate(ctx_heads, axis=-1)

    # ---- single full-width output projection for the whole tile -------------
    attn = jnp.dot(ctx_ref[...], wo_ref[...], preferred_element_type=f32) + bo_ref[...]

    # ---- residual + post-LayerNorm ------------------------------------------
    h = layernorm(h + attn, ln1g_ref[...], ln1b_ref[...])

    # ---- feed-forward: bf16 weights, f32 accumulation -----------------------
    ff = jnp.dot(h.astype(wff1_ref.dtype), wff1_ref[...],
                 preferred_element_type=f32) + bff1_ref[...]
    ff = jnp.maximum(ff, 0.0)
    ff = jnp.dot(ff.astype(wff2_ref.dtype), wff2_ref[...],
                 preferred_element_type=f32) + bff2_ref[...]
    h = layernorm(h + ff, ln2g_ref[...], ln2b_ref[...])

    # ---- fc1 (lane-padded to 128) + exact softmax; padded logits -1e30 -> 0 -
    logits = jnp.dot(h, w1_ref[...], preferred_element_type=f32) + b1_ref[...]
    o_ref[...] = softmax_last(logits)


# ----------------------------------------------------------------------------
# Wrapper
# ----------------------------------------------------------------------------
def policy_net_pallas(x, params, nhead, seqs_per_block=None):
    B, S, D_in = x.shape
    H = params['w0'].shape[1]
    assert H % nhead == 0, "hidden_size must be divisible by nhead"
    hd = H // nhead
    O = params['w1'].shape[1]
    F = params['wff1'].shape[1]
    LANE = 128
    O_pad = ((O + LANE - 1) // LANE) * LANE
    f32, bf16 = jnp.float32, jnp.bfloat16

    # --- row tile = whole sequences per grid step ----------------------------
    if seqs_per_block is None:
        seqs_per_block = max(1, min(B, 512 // max(S, 1)))
    while B % seqs_per_block:
        seqs_per_block -= 1
    TM = seqs_per_block * S
    if (S % 8) and TM != B * S:
        # TODO(synk): masked tiling for S % 8 != 0; fall back to one block.
        seqs_per_block, TM = B, B * S
    grid = ((B * S) // TM,)

    # --- pure-layout weight prep (outside the kernel) -------------------------
    wqkv = jnp.concatenate([params['wq'], params['wk'], params['wv']], axis=1)  # (H, 3H)
    bqkv = jnp.concatenate([params['bq'], params['bk'], params['bv']], axis=1)  # (1, 3H)
    wff1 = params['wff1'].astype(bf16)
    wff2 = params['wff2'].astype(bf16)
    # Lane-dense fc1: padded columns get weight 0 and bias -1e30 so the padded
    # softmax is numerically identical over the real columns (f32 logits only).
    w1p = jnp.pad(params['w1'], ((0, 0), (0, O_pad - O)))
    b1p = jnp.pad(params['b1'], ((0, 0), (0, O_pad - O)), constant_values=-1e30)

    x2 = x.reshape(B * S, D_in).astype(f32)

    weights = [
        params['w0'].astype(f32), params['b0'].astype(f32),
        wqkv.astype(f32), bqkv.astype(f32),
        params['wo'].astype(f32), params['bo'].astype(f32),
        params['ln1g'].astype(f32), params['ln1b'].astype(f32),
        wff1, params['bff1'].astype(f32),
        wff2, params['bff2'].astype(f32),
        params['ln2g'].astype(f32), params['ln2b'].astype(f32),
        w1p.astype(f32), b1p.astype(f32),
    ]

    # Weights stay resident in VMEM (constant index_map); x/out are row tiled.
    in_specs = ([pl.BlockSpec((TM, D_in), lambda i: (i, 0))]
                + [pl.BlockSpec(w.shape, lambda i: (0, 0)) for w in weights])
    out_specs = pl.BlockSpec((TM, O_pad), lambda i: (i, 0))

    flops = 2 * B * S * (D_in * H + 3 * H * H + 2 * S * H + H * H + 2 * H * F + H * O_pad)
    transcendentals = B * S * (nhead * S + O_pad)
    bytes_accessed = (x2.size * 4 + B * S * O_pad * 4
                      + sum(int(w.size) * w.dtype.itemsize for w in weights))

    out_flat = pl.pallas_call(
        functools.partial(policy_kernel, seq=S, nhead=nhead, head_dim=hd,
                          seqs_per_block=seqs_per_block),
        out_shape=jax.ShapeDtypeStruct((B * S, O_pad), f32),
        grid_spec=pltpu.PrefetchScalarGridSpec(
            num_scalar_prefetch=0,
            grid=grid,
            in_specs=in_specs,
            out_specs=out_specs,
            scratch_shapes=[pltpu.VMEM((TM, H), f32)]),
        compiler_params=pltpu.CompilerParams(
            dimension_semantics=("parallel",),
            vmem_limit_bytes=32 * 1024 * 1024),
        cost_estimate=pl.CostEstimate(flops=flops,
                                      transcendentals=transcendentals,
                                      bytes_accessed=bytes_accessed),
    )(x2, *weights)

    return out_flat[:, :O].reshape(B, S, O)


# ----------------------------------------------------------------------------
# Pure-JAX reference (f32) for correctness check
# ----------------------------------------------------------------------------
def policy_net_ref(x, p, nhead):
    def lin(v, w, b): return v @ w + b

    def sm(v):
        m = jnp.max(v, -1, keepdims=True)
        e = jnp.exp(v - m)
        return e / jnp.sum(e, -1, keepdims=True)

    def ln(v, g, b, eps=1e-5):
        mu = jnp.mean(v, -1, keepdims=True)
        var = jnp.mean((v - mu) ** 2, -1, keepdims=True)
        return (v - mu) / jnp.sqrt(var + eps) * g + b

    h = lin(x, p['w0'], p['b0'])
    B, S, H = h.shape
    hd = H // nhead
    q = lin(h, p['wq'], p['bq']).reshape(B, S, nhead, hd).transpose(0, 2, 1, 3)
    k = lin(h, p['wk'], p['bk']).reshape(B, S, nhead, hd).transpose(0, 2, 1, 3)
    v = lin(h, p['wv'], p['bv']).reshape(B, S, nhead, hd).transpose(0, 2, 1, 3)
    a = sm(jnp.einsum('bhqd,bhkd->bhqk', q, k) / jnp.sqrt(hd))
    att = jnp.einsum('bhqk,bhkd->bhqd', a, v).transpose(0, 2, 1, 3).reshape(B, S, H)
    att = lin(att, p['wo'], p['bo'])
    h = ln(h + att, p['ln1g'], p['ln1b'])
    ff = lin(jax.nn.relu(lin(h, p['wff1'], p['bff1'])), p['wff2'], p['bff2'])
    h = ln(h + ff, p['ln2g'], p['ln2b'])
    return sm(lin(h, p['w1'], p['b1']))


# ----------------------------------------------------------------------------
# Deterministic parameter init (shapes from PolicyNet.__init__ defaults)
# ----------------------------------------------------------------------------
def init_params(key, input_size, hidden_size, output_size, dim_feedforward):
    ks = jax.random.split(key, 16)
    w = lambda k, shp, s=0.05: (s * jax.random.normal(k, shp)).astype(jnp.float32)
    zeros = lambda shp: jnp.zeros(shp, jnp.float32)
    ones = lambda shp: jnp.ones(shp, jnp.float32)
    return {
        'w0': w(ks[0], (input_size, hidden_size)),
        'b0': w(ks[1], (1, hidden_size)),
        'wq': w(ks[2], (hidden_size, hidden_size)),
        'bq': w(ks[3], (1, hidden_size)),
        'wk': w(ks[4], (hidden_size, hidden_size)),
        'bk': w(ks[5], (1, hidden_size)),
        'wv': w(ks[6], (hidden_size, hidden_size)),
        'bv': w(ks[7], (1, hidden_size)),
        'wo': w(ks[8], (hidden_size, hidden_size)),
        'bo': w(ks[9], (1, hidden_size)),
        'ln1g': ones((1, hidden_size)),
        'ln1b': zeros((1, hidden_size)),
        'wff1': w(ks[10], (hidden_size, dim_feedforward)),
        'bff1': w(ks[11], (1, dim_feedforward)),
        'wff2': w(ks[12], (dim_feedforward, hidden_size)),
        'bff2': w(ks[13], (1, hidden_size)),
        'ln2g': ones((1, hidden_size)),
        'ln2b': zeros((1, hidden_size)),
        'w1': w(ks[14], (hidden_size, output_size)),
        'b1': w(ks[15], (1, output_size)),
    }


if __name__ == "__main__":
    # Small shapes consistent with the module's forward.
    B, S = 2, 8
    INPUT_SIZE, HIDDEN_SIZE, OUTPUT_SIZE = 16, 32, 8
    NHEAD = 8
    DIM_FEEDFORWARD = 2048  # nn.TransformerEncoderLayer default

    key = jax.random.PRNGKey(0)
    kx, kp = jax.random.split(key)
    x = jax.random.normal(kx, (B, S, INPUT_SIZE), dtype=jnp.float32)
    params = init_params(kp, INPUT_SIZE, HIDDEN_SIZE, OUTPUT_SIZE, DIM_FEEDFORWARD)

    # seqs_per_block=1 so the toy run exercises the row-tiled grid (grid=(B,)).
    fwd = jax.jit(lambda xx, pp: policy_net_pallas(xx, pp, NHEAD, seqs_per_block=1))
    out = fwd(x, params)
    out = jax.block_until_ready(out)

    ref = policy_net_ref(x, params, NHEAD)
    assert out.shape == (B, S, OUTPUT_SIZE)
    assert bool(jnp.all(jnp.isfinite(out)))
    # exact softmax division -> rows sum to 1 to f32 precision
    assert jnp.allclose(jnp.sum(out, -1), 1.0, atol=1e-5)
    # bf16 FFN weights -> slightly looser tolerance vs. the f32 reference
    assert jnp.allclose(out, ref, atol=5e-3, rtol=5e-3)

    print("KERNEL_OK")
</pallas_src>

<mosaic_0001>
module attributes {stable_mosaic.version = 11 : i64} {
  func.func @policy_kernel(%arg0: i32, %arg1: memref<8x16xf32, #tpu.memory_space<vmem>>, %arg2: memref<16x32xf32, #tpu.memory_space<vmem>>, %arg3: memref<1x32xf32, #tpu.memory_space<vmem>>, %arg4: memref<32x96xf32, #tpu.memory_space<vmem>>, %arg5: memref<1x96xf32, #tpu.memory_space<vmem>>, %arg6: memref<32x32xf32, #tpu.memory_space<vmem>>, %arg7: memref<1x32xf32, #tpu.memory_space<vmem>>, %arg8: memref<1x32xf32, #tpu.memory_space<vmem>>, %arg9: memref<1x32xf32, #tpu.memory_space<vmem>>, %arg10: memref<32x2048xbf16, #tpu.memory_space<vmem>>, %arg11: memref<1x2048xf32, #tpu.memory_space<vmem>>, %arg12: memref<2048x32xbf16, #tpu.memory_space<vmem>>, %arg13: memref<1x32xf32, #tpu.memory_space<vmem>>, %arg14: memref<1x32xf32, #tpu.memory_space<vmem>>, %arg15: memref<1x32xf32, #tpu.memory_space<vmem>>, %arg16: memref<32x128xf32, #tpu.memory_space<vmem>>, %arg17: memref<1x128xf32, #tpu.memory_space<vmem>>, %arg18: memref<8x128xf32, #tpu.memory_space<vmem>>, %arg19: memref<8x32xf32, #tpu.memory_space<vmem>>) attributes {dimension_semantics = [#tpu.dimension_semantics<parallel>], iteration_bounds = array<i64: 2>, scalar_prefetch = 0 : i64, scratch_operands = 1 : i64, tpu.core_type = #tpu.core_type<tc>, window_params = [{transform_indices = @transform_0, window_bounds = array<i64: 8, 16>}, {pipeline_mode = #tpu.pipeline_mode<synchronous>, transform_indices = @transform_1, window_bounds = array<i64: 16, 32>}, {pipeline_mode = #tpu.pipeline_mode<synchronous>, transform_indices = @transform_2, window_bounds = array<i64: 1, 32>}, {pipeline_mode = #tpu.pipeline_mode<synchronous>, transform_indices = @transform_3, window_bounds = array<i64: 32, 96>}, {pipeline_mode = #tpu.pipeline_mode<synchronous>, transform_indices = @transform_4, window_bounds = array<i64: 1, 96>}, {pipeline_mode = #tpu.pipeline_mode<synchronous>, transform_indices = @transform_5, window_bounds = array<i64: 32, 32>}, {pipeline_mode = #tpu.pipeline_mode<synchronous>, transform_indices = @transform_6, window_bounds = array<i64: 1, 32>}, {pipeline_mode = #tpu.pipeline_mode<synchronous>, transform_indices = @transform_7, window_bounds = array<i64: 1, 32>}, {pipeline_mode = #tpu.pipeline_mode<synchronous>, transform_indices = @transform_8, window_bounds = array<i64: 1, 32>}, {pipeline_mode = #tpu.pipeline_mode<synchronous>, transform_indices = @transform_9, window_bounds = array<i64: 32, 2048>}, {pipeline_mode = #tpu.pipeline_mode<synchronous>, transform_indices = @transform_10, window_bounds = array<i64: 1, 2048>}, {pipeline_mode = #tpu.pipeline_mode<synchronous>, transform_indices = @transform_11, window_bounds = array<i64: 2048, 32>}, {pipeline_mode = #tpu.pipeline_mode<synchronous>, transform_indices = @transform_12, window_bounds = array<i64: 1, 32>}, {pipeline_mode = #tpu.pipeline_mode<synchronous>, transform_indices = @transform_13, window_bounds = array<i64: 1, 32>}, {pipeline_mode = #tpu.pipeline_mode<synchronous>, transform_indices = @transform_14, window_bounds = array<i64: 1, 32>}, {pipeline_mode = #tpu.pipeline_mode<synchronous>, transform_indices = @transform_15, window_bounds = array<i64: 32, 128>}, {pipeline_mode = #tpu.pipeline_mode<synchronous>, transform_indices = @transform_16, window_bounds = array<i64: 1, 128>}, {transform_indices = @transform_17, window_bounds = array<i64: 8, 128>}]} {
    %c0 = arith.constant 0 : index
    %c0_0 = arith.constant 0 : index
    %0 = vector.load %arg1[%c0, %c0_0] : memref<8x16xf32, #tpu.memory_space<vmem>>, vector<8x16xf32>
    %c0_1 = arith.constant 0 : index
    %c0_2 = arith.constant 0 : index
    %1 = vector.load %arg2[%c0_1, %c0_2] : memref<16x32xf32, #tpu.memory_space<vmem>>, vector<16x32xf32>
    %cst = arith.constant dense<0.000000e+00> : vector<8x32xf32>
    %2 = tpu.matmul %0, %1, %cst {dimension_numbers = #tpu.dot_dimension_numbers<[1], [0], [0], [1], [0, 0, 1, 1], [], []>} : vector<8x16xf32>, vector<16x32xf32>, vector<8x32xf32> -> vector<8x32xf32>
    %c0_3 = arith.constant 0 : index
    %c0_4 = arith.constant 0 : index
    %3 = vector.load %arg3[%c0_3, %c0_4] : memref<1x32xf32, #tpu.memory_space<vmem>>, vector<1x32xf32>
    %4 = vector.broadcast %3 : vector<1x32xf32> to vector<8x32xf32>
    %5 = arith.addf %2, %4 : vector<8x32xf32>
    %c0_5 = arith.constant 0 : index
    %c0_6 = arith.constant 0 : index
    %6 = vector.load %arg4[%c0_5, %c0_6] : memref<32x96xf32, #tpu.memory_space<vmem>>, vector<32x96xf32>
    %cst_7 = arith.constant dense<0.000000e+00> : vector<8x96xf32>
    %7 = tpu.matmul %5, %6, %cst_7 {dimension_numbers = #tpu.dot_dimension_numbers<[1], [0], [0], [1], [0, 0, 1, 1], [], []>} : vector<8x32xf32>, vector<32x96xf32>, vector<8x96xf32> -> vector<8x96xf32>
    %c0_8 = arith.constant 0 : index
    %c0_9 = arith.constant 0 : index
    %8 = vector.load %arg5[%c0_8, %c0_9] : memref<1x96xf32, #tpu.memory_space<vmem>>, vector<1x96xf32>
    %9 = vector.broadcast %8 : vector<1x96xf32> to vector<8x96xf32>
    %10 = arith.addf %7, %9 : vector<8x96xf32>
    %11 = vector.extract_strided_slice %10 {offsets = [0, 0], sizes = [8, 32], strides = [1, 1]} : vector<8x96xf32> to vector<8x32xf32>
    %12 = vector.extract_strided_slice %10 {offsets = [0, 32], sizes = [8, 32], strides = [1, 1]} : vector<8x96xf32> to vector<8x32xf32>
    %13 = vector.extract_strided_slice %10 {offsets = [0, 64], sizes = [8, 32], strides = [1, 1]} : vector<8x96xf32> to vector<8x32xf32>
    %14 = vector.extract_strided_slice %11 {offsets = [0, 0], sizes = [8, 4], strides = [1, 1]} : vector<8x32xf32> to vector<8x4xf32>
    %15 = vector.extract_strided_slice %12 {offsets = [0, 0], sizes = [8, 4], strides = [1, 1]} : vector<8x32xf32> to vector<8x4xf32>
    %16 = vector.extract_strided_slice %13 {offsets = [0, 0], sizes = [8, 4], strides = [1, 1]} : vector<8x32xf32> to vector<8x4xf32>
    %cst_10 = arith.constant dense<0.000000e+00> : vector<8x8xf32>
    %17 = tpu.matmul %14, %15, %cst_10 {dimension_numbers = #tpu.dot_dimension_numbers<[1], [1], [0], [0], [0, 0, 1, 0], [], []>} : vector<8x4xf32>, vector<8x4xf32>, vector<8x8xf32> -> vector<8x8xf32>
    %cst_11 = arith.constant 5.000000e-01 : f32
    %18 = vector.broadcast %cst_11 : f32 to vector<8x8xf32>
    %19 = arith.mulf %17, %18 : vector<8x8xf32>
    %cst_12 = arith.constant dense<0xFF800000> : vector<8xf32>
    %20 = vector.multi_reduction <maximumf>, %19, %cst_12 [1] : vector<8x8xf32> to vector<8xf32>
    %21 = vector.shape_cast %20 : vector<8xf32> to vector<8x1xf32>
    %22 = vector.broadcast %21 : vector<8x1xf32> to vector<8x8xf32>
    %23 = arith.subf %19, %22 : vector<8x8xf32>
    %24 = math.exp %23 : vector<8x8xf32>
    %cst_13 = arith.constant dense<0.000000e+00> : vector<8xf32>
    %25 = vector.multi_reduction <add>, %24, %cst_13 [1] : vector<8x8xf32> to vector<8xf32>
    %26 = vector.shape_cast %25 : vector<8xf32> to vector<8x1xf32>
    %27 = vector.broadcast %26 : vector<8x1xf32> to vector<8x8xf32>
    %28 = arith.divf %24, %27 : vector<8x8xf32>
    %cst_14 = arith.constant dense<0.000000e+00> : vector<8x4xf32>
    %29 = tpu.matmul %28, %16, %cst_14 {dimension_numbers = #tpu.dot_dimension_numbers<[1], [0], [0], [1], [0, 0, 1, 1], [], []>} : vector<8x8xf32>, vector<8x4xf32>, vector<8x4xf32> -> vector<8x4xf32>
    %30 = vector.extract_strided_slice %11 {offsets = [0, 4], sizes = [8, 4], strides = [1, 1]} : vector<8x32xf32> to vector<8x4xf32>
    %31 = vector.extract_strided_slice %12 {offsets = [0, 4], sizes = [8, 4], strides = [1, 1]} : vector<8x32xf32> to vector<8x4xf32>
    %32 = vector.extract_strided_slice %13 {offsets = [0, 4], sizes = [8, 4], strides = [1, 1]} : vector<8x32xf32> to vector<8x4xf32>
    %cst_15 = arith.constant dense<0.000000e+00> : vector<8x8xf32>
    %33 = tpu.matmul %30, %31, %cst_15 {dimension_numbers = #tpu.dot_dimension_numbers<[1], [1], [0], [0], [0, 0, 1, 0], [], []>} : vector<8x4xf32>, vector<8x4xf32>, vector<8x8xf32> -> vector<8x8xf32>
    %cst_16 = arith.constant 5.000000e-01 : f32
    %34 = vector.broadcast %cst_16 : f32 to vector<8x8xf32>
    %35 = arith.mulf %33, %34 : vector<8x8xf32>
    %cst_17 = arith.constant dense<0xFF800000> : vector<8xf32>
    %36 = vector.multi_reduction <maximumf>, %35, %cst_17 [1] : vector<8x8xf32> to vector<8xf32>
    %37 = vector.shape_cast %36 : vector<8xf32> to vector<8x1xf32>
    %38 = vector.broadcast %37 : vector<8x1xf32> to vector<8x8xf32>
    %39 = arith.subf %35, %38 : vector<8x8xf32>
    %40 = math.exp %39 : vector<8x8xf32>
    %cst_18 = arith.constant dense<0.000000e+00> : vector<8xf32>
    %41 = vector.multi_reduction <add>, %40, %cst_18 [1] : vector<8x8xf32> to vector<8xf32>
    %42 = vector.shape_cast %41 : vector<8xf32> to vector<8x1xf32>
    %43 = vector.broadcast %42 : vector<8x1xf32> to vector<8x8xf32>
    %44 = arith.divf %40, %43 : vector<8x8xf32>
    %cst_19 = arith.constant dense<0.000000e+00> : vector<8x4xf32>
    %45 = tpu.matmul %44, %32, %cst_19 {dimension_numbers = #tpu.dot_dimension_numbers<[1], [0], [0], [1], [0, 0, 1, 1], [], []>} : vector<8x8xf32>, vector<8x4xf32>, vector<8x4xf32> -> vector<8x4xf32>
    %46 = vector.extract_strided_slice %11 {offsets = [0, 8], sizes = [8, 4], strides = [1, 1]} : vector<8x32xf32> to vector<8x4xf32>
    %47 = vector.extract_strided_slice %12 {offsets = [0, 8], sizes = [8, 4], strides = [1, 1]} : vector<8x32xf32> to vector<8x4xf32>
    %48 = vector.extract_strided_slice %13 {offsets = [0, 8], sizes = [8, 4], strides = [1, 1]} : vector<8x32xf32> to vector<8x4xf32>
    %cst_20 = arith.constant dense<0.000000e+00> : vector<8x8xf32>
    %49 = tpu.matmul %46, %47, %cst_20 {dimension_numbers = #tpu.dot_dimension_numbers<[1], [1], [0], [0], [0, 0, 1, 0], [], []>} : vector<8x4xf32>, vector<8x4xf32>, vector<8x8xf32> -> vector<8x8xf32>
    %cst_21 = arith.constant 5.000000e-01 : f32
    %50 = vector.broadcast %cst_21 : f32 to vector<8x8xf32>
    %51 = arith.mulf %49, %50 : vector<8x8xf32>
    %cst_22 = arith.constant dense<0xFF800000> : vector<8xf32>
    %52 = vector.multi_reduction <maximumf>, %51, %cst_22 [1] : vector<8x8xf32> to vector<8xf32>
    %53 = vector.shape_cast %52 : vector<8xf32> to vector<8x1xf32>
    %54 = vector.broadcast %53 : vector<8x1xf32> to vector<8x8xf32>
    %55 = arith.subf %51, %54 : vector<8x8xf32>
    %56 = math.exp %55 : vector<8x8xf32>
    %cst_23 = arith.constant dense<0.000000e+00> : vector<8xf32>
    %57 = vector.multi_reduction <add>, %56, %cst_23 [1] : vector<8x8xf32> to vector<8xf32>
    %58 = vector.shape_cast %57 : vector<8xf32> to vector<8x1xf32>
    %59 = vector.broadcast %58 : vector<8x1xf32> to vector<8x8xf32>
    %60 = arith.divf %56, %59 : vector<8x8xf32>
    %cst_24 = arith.constant dense<0.000000e+00> : vector<8x4xf32>
    %61 = tpu.matmul %60, %48, %cst_24 {dimension_numbers = #tpu.dot_dimension_numbers<[1], [0], [0], [1], [0, 0, 1, 1], [], []>} : vector<8x8xf32>, vector<8x4xf32>, vector<8x4xf32> -> vector<8x4xf32>
    %62 = vector.extract_strided_slice %11 {offsets = [0, 12], sizes = [8, 4], strides = [1, 1]} : vector<8x32xf32> to vector<8x4xf32>
    %63 = vector.extract_strided_slice %12 {offsets = [0, 12], sizes = [8, 4], strides = [1, 1]} : vector<8x32xf32> to vector<8x4xf32>
    %64 = vector.extract_strided_slice %13 {offsets = [0, 12], sizes = [8, 4], strides = [1, 1]} : vector<8x32xf32> to vector<8x4xf32>
    %cst_25 = arith.constant dense<0.000000e+00> : vector<8x8xf32>
    %65 = tpu.matmul %62, %63, %cst_25 {dimension_numbers = #tpu.dot_dimension_numbers<[1], [1], [0], [0], [0, 0, 1, 0], [], []>} : vector<8x4xf32>, vector<8x4xf32>, vector<8x8xf32> -> vector<8x8xf32>
    %cst_26 = arith.constant 5.000000e-01 : f32
    %66 = vector.broadcast %cst_26 : f32 to vector<8x8xf32>
    %67 = arith.mulf %65, %66 : vector<8x8xf32>
    %cst_27 = arith.constant dense<0xFF800000> : vector<8xf32>
    %68 = vector.multi_reduction <maximumf>, %67, %cst_27 [1] : vector<8x8xf32> to vector<8xf32>
    %69 = vector.shape_cast %68 : vector<8xf32> to vector<8x1xf32>
    %70 = vector.broadcast %69 : vector<8x1xf32> to vector<8x8xf32>
    %71 = arith.subf %67, %70 : vector<8x8xf32>
    %72 = math.exp %71 : vector<8x8xf32>
    %cst_28 = arith.constant dense<0.000000e+00> : vector<8xf32>
    %73 = vector.multi_reduction <add>, %72, %cst_28 [1] : vector<8x8xf32> to vector<8xf32>
    %74 = vector.shape_cast %73 : vector<8xf32> to vector<8x1xf32>
    %75 = vector.broadcast %74 : vector<8x1xf32> to vector<8x8xf32>
    %76 = arith.divf %72, %75 : vector<8x8xf32>
    %cst_29 = arith.constant dense<0.000000e+00> : vector<8x4xf32>
    %77 = tpu.matmul %76, %64, %cst_29 {dimension_numbers = #tpu.dot_dimension_numbers<[1], [0], [0], [1], [0, 0, 1, 1], [], []>} : vector<8x8xf32>, vector<8x4xf32>, vector<8x4xf32> -> vector<8x4xf32>
    %78 = vector.extract_strided_slice %11 {offsets = [0, 16], sizes = [8, 4], strides = [1, 1]} : vector<8x32xf32> to vector<8x4xf32>
    %79 = vector.extract_strided_slice %12 {offsets = [0, 16], sizes = [8, 4], strides = [1, 1]} : vector<8x32xf32> to vector<8x4xf32>
    %80 = vector.extract_strided_slice %13 {offsets = [0, 16], sizes = [8, 4], strides = [1, 1]} : vector<8x32xf32> to vector<8x4xf32>
    %cst_30 = arith.constant dense<0.000000e+00> : vector<8x8xf32>
    %81 = tpu.matmul %78, %79, %cst_30 {dimension_numbers = #tpu.dot_dimension_numbers<[1], [1], [0], [0], [0, 0, 1, 0], [], []>} : vector<8x4xf32>, vector<8x4xf32>, vector<8x8xf32> -> vector<8x8xf32>
    %cst_31 = arith.constant 5.000000e-01 : f32
    %82 = vector.broadcast %cst_31 : f32 to vector<8x8xf32>
    %83 = arith.mulf %81, %82 : vector<8x8xf32>
    %cst_32 = arith.constant dense<0xFF800000> : vector<8xf32>
    %84 = vector.multi_reduction <maximumf>, %83, %cst_32 [1] : vector<8x8xf32> to vector<8xf32>
    %85 = vector.shape_cast %84 : vector<8xf32> to vector<8x1xf32>
    %86 = vector.broadcast %85 : vector<8x1xf32> to vector<8x8xf32>
    %87 = arith.subf %83, %86 : vector<8x8xf32>
    %88 = math.exp %87 : vector<8x8xf32>
    %cst_33 = arith.constant dense<0.000000e+00> : vector<8xf32>
    %89 = vector.multi_reduction <add>, %88, %cst_33 [1] : vector<8x8xf32> to vector<8xf32>
    %90 = vector.shape_cast %89 : vector<8xf32> to vector<8x1xf32>
    %91 = vector.broadcast %90 : vector<8x1xf32> to vector<8x8xf32>
    %92 = arith.divf %88, %91 : vector<8x8xf32>
    %cst_34 = arith.constant dense<0.000000e+00> : vector<8x4xf32>
    %93 = tpu.matmul %92, %80, %cst_34 {dimension_numbers = #tpu.dot_dimension_numbers<[1], [0], [0], [1], [0, 0, 1, 1], [], []>} : vector<8x8xf32>, vector<8x4xf32>, vector<8x4xf32> -> vector<8x4xf32>
    %94 = vector.extract_strided_slice %11 {offsets = [0, 20], sizes = [8, 4], strides = [1, 1]} : vector<8x32xf32> to vector<8x4xf32>
    %95 = vector.extract_strided_slice %12 {offsets = [0, 20], sizes = [8, 4], strides = [1, 1]} : vector<8x32xf32> to vector<8x4xf32>
    %96 = vector.extract_strided_slice %13 {offsets = [0, 20], sizes = [8, 4], strides = [1, 1]} : vector<8x32xf32> to vector<8x4xf32>
    %cst_35 = arith.constant dense<0.000000e+00> : vector<8x8xf32>
    %97 = tpu.matmul %94, %95, %cst_35 {dimension_numbers = #tpu.dot_dimension_numbers<[1], [1], [0], [0], [0, 0, 1, 0], [], []>} : vector<8x4xf32>, vector<8x4xf32>, vector<8x8xf32> -> vector<8x8xf32>
    %cst_36 = arith.constant 5.000000e-01 : f32
    %98 = vector.broadcast %cst_36 : f32 to vector<8x8xf32>
    %99 = arith.mulf %97, %98 : vector<8x8xf32>
    %cst_37 = arith.constant dense<0xFF800000> : vector<8xf32>
    %100 = vector.multi_reduction <maximumf>, %99, %cst_37 [1] : vector<8x8xf32> to vector<8xf32>
    %101 = vector.shape_cast %100 : vector<8xf32> to vector<8x1xf32>
    %102 = vector.broadcast %101 : vector<8x1xf32> to vector<8x8xf32>
    %103 = arith.subf %99, %102 : vector<8x8xf32>
    %104 = math.exp %103 : vector<8x8xf32>
    %cst_38 = arith.constant dense<0.000000e+00> : vector<8xf32>
    %105 = vector.multi_reduction <add>, %104, %cst_38 [1] : vector<8x8xf32> to vector<8xf32>
    %106 = vector.shape_cast %105 : vector<8xf32> to vector<8x1xf32>
    %107 = vector.broadcast %106 : vector<8x1xf32> to vector<8x8xf32>
    %108 = arith.divf %104, %107 : vector<8x8xf32>
    %cst_39 = arith.constant dense<0.000000e+00> : vector<8x4xf32>
    %109 = tpu.matmul %108, %96, %cst_39 {dimension_numbers = #tpu.dot_dimension_numbers<[1], [0], [0], [1], [0, 0, 1, 1], [], []>} : vector<8x8xf32>, vector<8x4xf32>, vector<8x4xf32> -> vector<8x4xf32>
    %110 = vector.extract_strided_slice %11 {offsets = [0, 24], sizes = [8, 4], strides = [1, 1]} : vector<8x32xf32> to vector<8x4xf32>
    %111 = vector.extract_strided_slice %12 {offsets = [0, 24], sizes = [8, 4], strides = [1, 1]} : vector<8x32xf32> to vector<8x4xf32>
    %112 = vector.extract_strided_slice %13 {offsets = [0, 24], sizes = [8, 4], strides = [1, 1]} : vector<8x32xf32> to vector<8x4xf32>
    %cst_40 = arith.constant dense<0.000000e+00> : vector<8x8xf32>
    %113 = tpu.matmul %110, %111, %cst_40 {dimension_numbers = #tpu.dot_dimension_numbers<[1], [1], [0], [0], [0, 0, 1, 0], [], []>} : vector<8x4xf32>, vector<8x4xf32>, vector<8x8xf32> -> vector<8x8xf32>
    %cst_41 = arith.constant 5.000000e-01 : f32
    %114 = vector.broadcast %cst_41 : f32 to vector<8x8xf32>
    %115 = arith.mulf %113, %114 : vector<8x8xf32>
    %cst_42 = arith.constant dense<0xFF800000> : vector<8xf32>
    %116 = vector.multi_reduction <maximumf>, %115, %cst_42 [1] : vector<8x8xf32> to vector<8xf32>
    %117 = vector.shape_cast %116 : vector<8xf32> to vector<8x1xf32>
    %118 = vector.broadcast %117 : vector<8x1xf32> to vector<8x8xf32>
    %119 = arith.subf %115, %118 : vector<8x8xf32>
    %120 = math.exp %119 : vector<8x8xf32>
    %cst_43 = arith.constant dense<0.000000e+00> : vector<8xf32>
    %121 = vector.multi_reduction <add>, %120, %cst_43 [1] : vector<8x8xf32> to vector<8xf32>
    %122 = vector.shape_cast %121 : vector<8xf32> to vector<8x1xf32>
    %123 = vector.broadcast %122 : vector<8x1xf32> to vector<8x8xf32>
    %124 = arith.divf %120, %123 : vector<8x8xf32>
    %cst_44 = arith.constant dense<0.000000e+00> : vector<8x4xf32>
    %125 = tpu.matmul %124, %112, %cst_44 {dimension_numbers = #tpu.dot_dimension_numbers<[1], [0], [0], [1], [0, 0, 1, 1], [], []>} : vector<8x8xf32>, vector<8x4xf32>, vector<8x4xf32> -> vector<8x4xf32>
    %126 = vector.extract_strided_slice %11 {offsets = [0, 28], sizes = [8, 4], strides = [1, 1]} : vector<8x32xf32> to vector<8x4xf32>
    %127 = vector.extract_strided_slice %12 {offsets = [0, 28], sizes = [8, 4], strides = [1, 1]} : vector<8x32xf32> to vector<8x4xf32>
    %128 = vector.extract_strided_slice %13 {offsets = [0, 28], sizes = [8, 4], strides = [1, 1]} : vector<8x32xf32> to vector<8x4xf32>
    %cst_45 = arith.constant dense<0.000000e+00> : vector<8x8xf32>
    %129 = tpu.matmul %126, %127, %cst_45 {dimension_numbers = #tpu.dot_dimension_numbers<[1], [1], [0], [0], [0, 0, 1, 0], [], []>} : vector<8x4xf32>, vector<8x4xf32>, vector<8x8xf32> -> vector<8x8xf32>
    %cst_46 = arith.constant 5.000000e-01 : f32
    %130 = vector.broadcast %cst_46 : f32 to vector<8x8xf32>
    %131 = arith.mulf %129, %130 : vector<8x8xf32>
    %cst_47 = arith.constant dense<0xFF800000> : vector<8xf32>
    %132 = vector.multi_reduction <maximumf>, %131, %cst_47 [1] : vector<8x8xf32> to vector<8xf32>
    %133 = vector.shape_cast %132 : vector<8xf32> to vector<8x1xf32>
    %134 = vector.broadcast %133 : vector<8x1xf32> to vector<8x8xf32>
    %135 = arith.subf %131, %134 : vector<8x8xf32>
    %136 = math.exp %135 : vector<8x8xf32>
    %cst_48 = arith.constant dense<0.000000e+00> : vector<8xf32>
    %137 = vector.multi_reduction <add>, %136, %cst_48 [1] : vector<8x8xf32> to vector<8xf32>
    %138 = vector.shape_cast %137 : vector<8xf32> to vector<8x1xf32>
    %139 = vector.broadcast %138 : vector<8x1xf32> to vector<8x8xf32>
    %140 = arith.divf %136, %139 : vector<8x8xf32>
    %cst_49 = arith.constant dense<0.000000e+00> : vector<8x4xf32>
    %141 = tpu.matmul %140, %128, %cst_49 {dimension_numbers = #tpu.dot_dimension_numbers<[1], [0], [0], [1], [0, 0, 1, 1], [], []>} : vector<8x8xf32>, vector<8x4xf32>, vector<8x4xf32> -> vector<8x4xf32>
    %142 = tpu.concatenate %29, %45, %61, %77, %93, %109, %125, %141 in 1 : vector<8x4xf32>, vector<8x4xf32>, vector<8x4xf32>, vector<8x4xf32>, vector<8x4xf32>, vector<8x4xf32>, vector<8x4xf32>, vector<8x4xf32> -> vector<8x32xf32>
    %c0_50 = arith.constant 0 : index
    %c0_51 = arith.constant 0 : index
    %143 = vector.load %arg19[%c0_50, %c0_51] : memref<8x32xf32, #tpu.memory_space<vmem>>, vector<8x32xf32>
    tpu.vector_store %arg19[%c0_50, %c0_51], %142 {strides = array<i32>} : memref<8x32xf32, #tpu.memory_space<vmem>>, vector<8x32xf32>,
    %c0_52 = arith.constant 0 : index
    %c0_53 = arith.constant 0 : index
    %144 = vector.load %arg19[%c0_52, %c0_53] : memref<8x32xf32, #tpu.memory_space<vmem>>, vector<8x32xf32>
    %c0_54 = arith.constant 0 : index
    %c0_55 = arith.constant 0 : index
    %145 = vector.load %arg6[%c0_54, %c0_55] : memref<32x32xf32, #tpu.memory_space<vmem>>, vector<32x32xf32>
    %cst_56 = arith.constant dense<0.000000e+00> : vector<8x32xf32>
    %146 = tpu.matmul %144, %145, %cst_56 {dimension_numbers = #tpu.dot_dimension_numbers<[1], [0], [0], [1], [0, 0, 1, 1], [], []>} : vector<8x32xf32>, vector<32x32xf32>, vector<8x32xf32> -> vector<8x32xf32>
    %c0_57 = arith.constant 0 : index
    %c0_58 = arith.constant 0 : index
    %147 = vector.load %arg7[%c0_57, %c0_58] : memref<1x32xf32, #tpu.memory_space<vmem>>, vector<1x32xf32>
    %148 = vector.broadcast %147 : vector<1x32xf32> to vector<8x32xf32>
    %149 = arith.addf %146, %148 : vector<8x32xf32>
    %150 = arith.addf %5, %149 : vector<8x32xf32>
    %c0_59 = arith.constant 0 : index
    %c0_60 = arith.constant 0 : index
    %151 = vector.load %arg8[%c0_59, %c0_60] : memref<1x32xf32, #tpu.memory_space<vmem>>, vector<1x32xf32>
    %c0_61 = arith.constant 0 : index
    %c0_62 = arith.constant 0 : index
    %152 = vector.load %arg9[%c0_61, %c0_62] : memref<1x32xf32, #tpu.memory_space<vmem>>, vector<1x32xf32>
    %cst_63 = arith.constant dense<0.000000e+00> : vector<8xf32>
    %153 = vector.multi_reduction <add>, %150, %cst_63 [1] : vector<8x32xf32> to vector<8xf32>
    %154 = vector.shape_cast %153 : vector<8xf32> to vector<8x1xf32>
    %cst_64 = arith.constant 3.200000e+01 : f32
    %155 = vector.broadcast %cst_64 : f32 to vector<8x1xf32>
    %156 = arith.divf %154, %155 : vector<8x1xf32>
    %157 = vector.broadcast %156 : vector<8x1xf32> to vector<8x32xf32>
    %158 = arith.subf %150, %157 : vector<8x32xf32>
    %159 = arith.mulf %158, %158 : vector<8x32xf32>
    %cst_65 = arith.constant dense<0.000000e+00> : vector<8xf32>
    %160 = vector.multi_reduction <add>, %159, %cst_65 [1] : vector<8x32xf32> to vector<8xf32>
    %161 = vector.shape_cast %160 : vector<8xf32> to vector<8x1xf32>
    %cst_66 = arith.constant 3.200000e+01 : f32
    %162 = vector.broadcast %cst_66 : f32 to vector<8x1xf32>
    %163 = arith.divf %161, %162 : vector<8x1xf32>
    %164 = vector.broadcast %156 : vector<8x1xf32> to vector<8x32xf32>
    %165 = arith.subf %150, %164 : vector<8x32xf32>
    %cst_67 = arith.constant 9.99999974E-6 : f32
    %166 = vector.broadcast %cst_67 : f32 to vector<8x1xf32>
    %167 = arith.addf %163, %166 : vector<8x1xf32>
    %168 = math.rsqrt %167 : vector<8x1xf32>
    %169 = vector.broadcast %168 : vector<8x1xf32> to vector<8x32xf32>
    %170 = arith.mulf %165, %169 : vector<8x32xf32>
    %171 = vector.broadcast %151 : vector<1x32xf32> to vector<8x32xf32>
    %172 = arith.mulf %170, %171 : vector<8x32xf32>
    %173 = vector.broadcast %152 : vector<1x32xf32> to vector<8x32xf32>
    %174 = arith.addf %172, %173 : vector<8x32xf32>
    %175 = arith.truncf %174 : vector<8x32xf32> to vector<8x32xbf16>
    %c0_68 = arith.constant 0 : index
    %c0_69 = arith.constant 0 : index
    %176 = vector.load %arg10[%c0_68, %c0_69] : memref<32x2048xbf16, #tpu.memory_space<vmem>>, vector<32x2048xbf16>
    %cst_70 = arith.constant dense<0.000000e+00> : vector<8x2048xf32>
    %177 = tpu.matmul %175, %176, %cst_70 {dimension_numbers = #tpu.dot_dimension_numbers<[1], [0], [0], [1], [0, 0, 1, 1], [], []>} : vector<8x32xbf16>, vector<32x2048xbf16>, vector<8x2048xf32> -> vector<8x2048xf32>
    %c0_71 = arith.constant 0 : index
    %c0_72 = arith.constant 0 : index
    %178 = vector.load %arg11[%c0_71, %c0_72] : memref<1x2048xf32, #tpu.memory_space<vmem>>, vector<1x2048xf32>
    %179 = vector.broadcast %178 : vector<1x2048xf32> to vector<8x2048xf32>
    %180 = arith.addf %177, %179 : vector<8x2048xf32>
    %cst_73 = arith.constant 0.000000e+00 : f32
    %181 = vector.broadcast %cst_73 : f32 to vector<8x2048xf32>
    %182 = arith.maximumf %180, %181 : vector<8x2048xf32>
    %183 = arith.truncf %182 : vector<8x2048xf32> to vector<8x2048xbf16>
    %c0_74 = arith.constant 0 : index
    %c0_75 = arith.constant 0 : index
    %184 = vector.load %arg12[%c0_74, %c0_75] : memref<2048x32xbf16, #tpu.memory_space<vmem>>, vector<2048x32xbf16>
    %cst_76 = arith.constant dense<0.000000e+00> : vector<8x32xf32>
    %185 = tpu.matmul %183, %184, %cst_76 {dimension_numbers = #tpu.dot_dimension_numbers<[1], [0], [0], [1], [0, 0, 1, 1], [], []>} : vector<8x2048xbf16>, vector<2048x32xbf16>, vector<8x32xf32> -> vector<8x32xf32>
    %c0_77 = arith.constant 0 : index
    %c0_78 = arith.constant 0 : index
    %186 = vector.load %arg13[%c0_77, %c0_78] : memref<1x32xf32, #tpu.memory_space<vmem>>, vector<1x32xf32>
    %187 = vector.broadcast %186 : vector<1x32xf32> to vector<8x32xf32>
    %188 = arith.addf %185, %187 : vector<8x32xf32>
    %189 = arith.addf %174, %188 : vector<8x32xf32>
    %c0_79 = arith.constant 0 : index
    %c0_80 = arith.constant 0 : index
    %190 = vector.load %arg14[%c0_79, %c0_80] : memref<1x32xf32, #tpu.memory_space<vmem>>, vector<1x32xf32>
    %c0_81 = arith.constant 0 : index
    %c0_82 = arith.constant 0 : index
    %191 = vector.load %arg15[%c0_81, %c0_82] : memref<1x32xf32, #tpu.memory_space<vmem>>, vector<1x32xf32>
    %cst_83 = arith.constant dense<0.000000e+00> : vector<8xf32>
    %192 = vector.multi_reduction <add>, %189, %cst_83 [1] : vector<8x32xf32> to vector<8xf32>
    %193 = vector.shape_cast %192 : vector<8xf32> to vector<8x1xf32>
    %cst_84 = arith.constant 3.200000e+01 : f32
    %194 = vector.broadcast %cst_84 : f32 to vector<8x1xf32>
    %195 = arith.divf %193, %194 : vector<8x1xf32>
    %196 = vector.broadcast %195 : vector<8x1xf32> to vector<8x32xf32>
    %197 = arith.subf %189, %196 : vector<8x32xf32>
    %198 = arith.mulf %197, %197 : vector<8x32xf32>
    %cst_85 = arith.constant dense<0.000000e+00> : vector<8xf32>
    %199 = vector.multi_reduction <add>, %198, %cst_85 [1] : vector<8x32xf32> to vector<8xf32>
    %200 = vector.shape_cast %199 : vector<8xf32> to vector<8x1xf32>
    %cst_86 = arith.constant 3.200000e+01 : f32
    %201 = vector.broadcast %cst_86 : f32 to vector<8x1xf32>
    %202 = arith.divf %200, %201 : vector<8x1xf32>
    %203 = vector.broadcast %195 : vector<8x1xf32> to vector<8x32xf32>
    %204 = arith.subf %189, %203 : vector<8x32xf32>
    %cst_87 = arith.constant 9.99999974E-6 : f32
    %205 = vector.broadcast %cst_87 : f32 to vector<8x1xf32>
    %206 = arith.addf %202, %205 : vector<8x1xf32>
    %207 = math.rsqrt %206 : vector<8x1xf32>
    %208 = vector.broadcast %207 : vector<8x1xf32> to vector<8x32xf32>
    %209 = arith.mulf %204, %208 : vector<8x32xf32>
    %210 = vector.broadcast %190 : vector<1x32xf32> to vector<8x32xf32>
    %211 = arith.mulf %209, %210 : vector<8x32xf32>
    %212 = vector.broadcast %191 : vector<1x32xf32> to vector<8x32xf32>
    %213 = arith.addf %211, %212 : vector<8x32xf32>
    %c0_88 = arith.constant 0 : index
    %c0_89 = arith.constant 0 : index
    %214 = vector.load %arg16[%c0_88, %c0_89] : memref<32x128xf32, #tpu.memory_space<vmem>>, vector<32x128xf32>
    %cst_90 = arith.constant dense<0.000000e+00> : vector<8x128xf32>
    %215 = tpu.matmul %213, %214, %cst_90 {dimension_numbers = #tpu.dot_dimension_numbers<[1], [0], [0], [1], [0, 0, 1, 1], [], []>} : vector<8x32xf32>, vector<32x128xf32>, vector<8x128xf32> -> vector<8x128xf32>
    %c0_91 = arith.constant 0 : index
    %c0_92 = arith.constant 0 : index
    %216 = vector.load %arg17[%c0_91, %c0_92] : memref<1x128xf32, #tpu.memory_space<vmem>>, vector<1x128xf32>
    %217 = vector.broadcast %216 : vector<1x128xf32> to vector<8x128xf32>
    %218 = arith.addf %215, %217 : vector<8x128xf32>
    %cst_93 = arith.constant dense<0xFF800000> : vector<8xf32>
    %219 = vector.multi_reduction <maximumf>, %218, %cst_93 [1] : vector<8x128xf32> to vector<8xf32>
    %220 = vector.shape_cast %219 : vector<8xf32> to vector<8x1xf32>
    %221 = vector.broadcast %220 : vector<8x1xf32> to vector<8x128xf32>
    %222 = arith.subf %218, %221 : vector<8x128xf32>
    %223 = math.exp %222 : vector<8x128xf32>
    %cst_94 = arith.constant dense<0.000000e+00> : vector<8xf32>
    %224 = vector.multi_reduction <add>, %223, %cst_94 [1] : vector<8x128xf32> to vector<8xf32>
    %225 = vector.shape_cast %224 : vector<8xf32> to vector<8x1xf32>
    %226 = vector.broadcast %225 : vector<8x1xf32> to vector<8x128xf32>
    %227 = arith.divf %223, %226 : vector<8x128xf32>
    %c0_95 = arith.constant 0 : index
    %c0_96 = arith.constant 0 : index
    %228 = vector.load %arg18[%c0_95, %c0_96] : memref<8x128xf32, #tpu.memory_space<vmem>>, vector<8x128xf32>
    tpu.vector_store %arg18[%c0_95, %c0_96], %227 {strides = array<i32>} : memref<8x128xf32, #tpu.memory_space<vmem>>, vector<8x128xf32>,
    return
  }
  func.func @transform_0(%arg0: i32) -> (i32, i32) {
    %c0_i32 = arith.constant 0 : i32
    %c0_i32_0 = arith.constant 0 : i32
    return %arg0, %c0_i32 : i32, i32
  }
  func.func @transform_1(%arg0: i32) -> (i32, i32) {
    %c0_i32 = arith.constant 0 : i32
    %c0_i32_0 = arith.constant 0 : i32
    %c0_i32_1 = arith.constant 0 : i32
    return %c0_i32, %c0_i32_0 : i32, i32
  }
  func.func @transform_2(%arg0: i32) -> (i32, i32) {
    %c0_i32 = arith.constant 0 : i32
    %c0_i32_0 = arith.constant 0 : i32
    %c0_i32_1 = arith.constant 0 : i32
    return %c0_i32, %c0_i32_0 : i32, i32
  }
  func.func @transform_3(%arg0: i32) -> (i32, i32) {
    %c0_i32 = arith.constant 0 : i32
    %c0_i32_0 = arith.constant 0 : i32
    %c0_i32_1 = arith.constant 0 : i32
    return %c0_i32, %c0_i32_0 : i32, i32
  }
  func.func @transform_4(%arg0: i32) -> (i32, i32) {
    %c0_i32 = arith.constant 0 : i32
    %c0_i32_0 = arith.constant 0 : i32
    %c0_i32_1 = arith.constant 0 : i32
    return %c0_i32, %c0_i32_0 : i32, i32
  }
  func.func @transform_5(%arg0: i32) -> (i32, i32) {
    %c0_i32 = arith.constant 0 : i32
    %c0_i32_0 = arith.constant 0 : i32
    %c0_i32_1 = arith.constant 0 : i32
    return %c0_i32, %c0_i32_0 : i32, i32
  }
  func.func @transform_6(%arg0: i32) -> (i32, i32) {
    %c0_i32 = arith.constant 0 : i32
    %c0_i32_0 = arith.constant 0 : i32
    %c0_i32_1 = arith.constant 0 : i32
    return %c0_i32, %c0_i32_0 : i32, i32
  }
  func.func @transform_7(%arg0: i32) -> (i32, i32) {
    %c0_i32 = arith.constant 0 : i32
    %c0_i32_0 = arith.constant 0 : i32
    %c0_i32_1 = arith.constant 0 : i32
    return %c0_i32, %c0_i32_0 : i32, i32
  }
  func.func @transform_8(%arg0: i32) -> (i32, i32) {
    %c0_i32 = arith.constant 0 : i32
    %c0_i32_0 = arith.constant 0 : i32
    %c0_i32_1 = arith.constant 0 : i32
    return %c0_i32, %c0_i32_0 : i32, i32
  }
  func.func @transform_9(%arg0: i32) -> (i32, i32) {
    %c0_i32 = arith.constant 0 : i32
    %c0_i32_0 = arith.constant 0 : i32
    %c0_i32_1 = arith.constant 0 : i32
    return %c0_i32, %c0_i32_0 : i32, i32
  }
  func.func @transform_10(%arg0: i32) -> (i32, i32) {
    %c0_i32 = arith.constant 0 : i32
    %c0_i32_0 = arith.constant 0 : i32
    %c0_i32_1 = arith.constant 0 : i32
    return %c0_i32, %c0_i32_0 : i32, i32
  }
  func.func @transform_11(%arg0: i32) -> (i32, i32) {
    %c0_i32 = arith.constant 0 : i32
    %c0_i32_0 = arith.constant 0 : i32
    %c0_i32_1 = arith.constant 0 : i32
    return %c0_i32, %c0_i32_0 : i32, i32
  }
  func.func @transform_12(%arg0: i32) -> (i32, i32) {
    %c0_i32 = arith.constant 0 : i32
    %c0_i32_0 = arith.constant 0 : i32
    %c0_i32_1 = arith.constant 0 : i32
    return %c0_i32, %c0_i32_0 : i32, i32
  }
  func.func @transform_13(%arg0: i32) -> (i32, i32) {
    %c0_i32 = arith.constant 0 : i32
    %c0_i32_0 = arith.constant 0 : i32
    %c0_i32_1 = arith.constant 0 : i32
    return %c0_i32, %c0_i32_0 : i32, i32
  }
  func.func @transform_14(%arg0: i32) -> (i32, i32) {
    %c0_i32 = arith.constant 0 : i32
    %c0_i32_0 = arith.constant 0 : i32
    %c0_i32_1 = arith.constant 0 : i32
    return %c0_i32, %c0_i32_0 : i32, i32
  }
  func.func @transform_15(%arg0: i32) -> (i32, i32) {
    %c0_i32 = arith.constant 0 : i32
    %c0_i32_0 = arith.constant 0 : i32
    %c0_i32_1 = arith.constant 0 : i32
    return %c0_i32, %c0_i32_0 : i32, i32
  }
  func.func @transform_16(%arg0: i32) -> (i32, i32) {
    %c0_i32 = arith.constant 0 : i32
    %c0_i32_0 = arith.constant 0 : i32
    %c0_i32_1 = arith.constant 0 : i32
    return %c0_i32, %c0_i32_0 : i32, i32
  }
  func.func @transform_17(%arg0: i32) -> (i32, i32) {
    %c0_i32 = arith.constant 0 : i32
    %c0_i32_0 = arith.constant 0 : i32
    return %arg0, %c0_i32 : i32, i32
  }
}

</mosaic_0001>

<llo_original>
// kernel: _lambda_.1
$region0: #{_lambda_.1}
  #allocation0 [shape = 'u32[]', space=smem, size = 0x4, offset = 0x4, fixed_abs, tag = 'smem constant byte address 0x4 - core index']
  #allocation1 [shape = 'u32[144,128]{1,0:T(1,128)}', space=vmem, size = 0x12000, scoped, tag = 'internal scratch']
  #allocation2 [shape = 'f32[8,32]{1,0:T(8,128)}', space=vmem, size = 0x1000, scoped, tag = 'scratch operand']
  %s0 = inlined_call_operand.vmem [shape: f32[16,16], index: 0, kind: input, shape index: {}]
  %s1 = inlined_call_operand.vmem [shape: f32[16,32], index: 1, kind: input, shape index: {}]
  %s2 = inlined_call_operand.vmem [shape: f32[1,32], index: 2, kind: input, shape index: {}]
  %s3 = inlined_call_operand.vmem [shape: f32[32,96], index: 3, kind: input, shape index: {}]
  %s4 = inlined_call_operand.vmem [shape: f32[1,96], index: 4, kind: input, shape index: {}]
  %s5 = inlined_call_operand.vmem [shape: f32[32,32], index: 5, kind: input, shape index: {}]
  %s6 = inlined_call_operand.vmem [shape: f32[1,32], index: 6, kind: input, shape index: {}]
  %s7 = inlined_call_operand.vmem [shape: f32[1,32], index: 7, kind: input, shape index: {}]
  %s8 = inlined_call_operand.vmem [shape: f32[1,32], index: 8, kind: input, shape index: {}]
  %s9 = inlined_call_operand.vmem [shape: bf16[32,2048], index: 9, kind: input, shape index: {}]
  %s10 = inlined_call_operand.vmem [shape: f32[1,2048], index: 10, kind: input, shape index: {}]
  %s11 = inlined_call_operand.vmem [shape: bf16[2048,32], index: 11, kind: input, shape index: {}]
  %s12 = inlined_call_operand.vmem [shape: f32[1,32], index: 12, kind: input, shape index: {}]
  %s13 = inlined_call_operand.vmem [shape: f32[1,32], index: 13, kind: input, shape index: {}]
  %s14 = inlined_call_operand.vmem [shape: f32[1,32], index: 14, kind: input, shape index: {}]
  %s15 = inlined_call_operand.vmem [shape: f32[32,128], index: 15, kind: input, shape index: {}]
  %s16 = inlined_call_operand.vmem [shape: f32[1,128], index: 16, kind: input, shape index: {}]
  %s17 = inlined_call_operand.vmem [shape: f32[16,128], index: 17, kind: output, shape index: {}]
  %s18 = sld [smem:[#allocation0]]
  $region101: #{_lambda_.1} parent=0
    _
  %s20 = ssub.s32 1, %s18
  %s21 = scalar_select 0, %s20, %s18
  loop: start=0, step=1, limit=4
  $region2: #{_lambda_.1} parent=0 // loop_pre_header
    _
  $region3: #{_lambda_.1} parent=0 // loop_header
    %s23 = sphi 0, %s27
    %p24 = scmp.ge.s32.totalorder %s23, 4
    %s33 = sphi 0, %s35
    %s36 = sphi 0, %s33
    %s37 = sphi 0, %s36
    %s53 = sphi 0, %s37
    %s57 = sphi 0, %s57
    %s59 = sphi 0, %s57
    %s60 = sphi 0, %s59
    %s74 = sphi 0, %s60
    %s78 = sphi 0, %s78
    %s80 = sphi 0, %s78
    %s81 = sphi 0, %s80
    %s95 = sphi 0, %s81
    %s99 = sphi 0, %s99
    %s101 = sphi 0, %s99
    %s102 = sphi 0, %s101
    %s116 = sphi 0, %s102
    %s120 = sphi 0, %s120
    %s122 = sphi 0, %s120
    %s123 = sphi 0, %s122
    %s137 = sphi 0, %s123
    %s141 = sphi 0, %s141
    %s143 = sphi 0, %s141
    %s144 = sphi 0, %s143
    %s158 = sphi 0, %s144
    %s162 = sphi 0, %s162
    %s164 = sphi 0, %s162
    %s165 = sphi 0, %s164
    %s179 = sphi 0, %s165
    %s183 = sphi 0, %s183
    %s185 = sphi 0, %s183
    %s186 = sphi 0, %s185
    %s200 = sphi 0, %s186
    %s204 = sphi 0, %s204
    %s206 = sphi 0, %s204
    %s207 = sphi 0, %s206
    %s221 = sphi 0, %s207
    %s225 = sphi 0, %s225
    %s227 = sphi 0, %s225
    %s228 = sphi 0, %s227
    %s242 = sphi 0, %s228
    %s246 = sphi 0, %s246
    %s248 = sphi 0, %s246
    %s249 = sphi 0, %s248
    %s263 = sphi 0, %s249
    %s267 = sphi 0, %s267
    %s269 = sphi 0, %s267
    %s270 = sphi 0, %s269
    %s284 = sphi 0, %s270
    %s288 = sphi 0, %s288
    %s290 = sphi 0, %s288
    %s291 = sphi 0, %s290
    %s305 = sphi 0, %s291
    %s309 = sphi 0, %s309
    %s311 = sphi 0, %s309
    %s312 = sphi 0, %s311
    %s326 = sphi 0, %s312
    %s330 = sphi 0, %s330
    %s332 = sphi 0, %s330
    %s333 = sphi 0, %s332
    %s347 = sphi 0, %s333
    %s351 = sphi 0, %s351
    %s353 = sphi 0, %s351
    %s354 = sphi 0, %s353
    %s368 = sphi 0, %s354
    %s372 = sphi 0, %s372
    %s374 = sphi 0, %s372
    %s375 = sphi 0, %s374
    %s389 = sphi 0, %s375
    %s395 = sphi 0, %s397
    %s398 = sphi 0, %s395
    %s399 = sphi 0, %s398
    %s415 = sphi 0, %s399
  $region4: #{_lambda_.1} parent=0 // loop_header_branch
    %26 = sbr.rel (%p24) target = $region8
  $region5: #{_lambda_.1} parent=0 // loop_body
    %s28 = ssub.s32 %s23, 1
    %s29 = ssub.s32 %s23, 2
    %s30 = sadd.s32 %s23, 1
    %s31 = ssub.s32 %s23, %s30
    %p32 = scmp.eq.s32.totalorder %s31, 0
    %s34 = sadd.s32 %s33, 1
    %s35 = scalar_select %p32, %s33, %s34
    %p38 = pneg %p32
    %p39 = scmp.eq.s32.totalorder %s23, 1
    %p40 = por %p38, %p39
    %p41 = scmp.ne.s32.totalorder %s33, %s36
    %p42 = scmp.eq.s32.totalorder %s23, 0
    %p43 = por %p41, %p42
    %p44 = scmp.ne.s32.totalorder %s33, %s36
    %p45 = scmp.eq.s32.totalorder %s28, 1
    %p46 = por %p44, %p45
    %p47 = scmp.ne.s32.totalorder %s36, %s37
    %p48 = scmp.eq.s32.totalorder %s28, 0
    %p49 = por %p47, %p48
    %p50 = scmp.ne.s32.totalorder %s36, %s37
    %p51 = scmp.eq.s32.totalorder %s29, 1
    %p52 = por %p50, %p51
    %p54 = scmp.ne.s32.totalorder %s37, %s53
    %p55 = scmp.eq.s32.totalorder %s29, 0
    %p56 = por %p54, %p55
    %s58 = sadd.s32 %s57, 1
    %p61 = scmp.eq.s32.totalorder %s23, 1
    %p62 = scmp.ne.s32.totalorder %s57, %s59
    %p63 = scmp.eq.s32.totalorder %s23, 0
    %p64 = por %p62, %p63
    %p65 = scmp.ne.s32.totalorder %s57, %s59
    %p66 = scmp.eq.s32.totalorder %s28, 1
    %p67 = por %p65, %p66
    %p68 = scmp.ne.s32.totalorder %s59, %s60
    %p69 = scmp.eq.s32.totalorder %s28, 0
    %p70 = por %p68, %p69
    %p71 = scmp.ne.s32.totalorder %s59, %s60
    %p72 = scmp.eq.s32.totalorder %s29, 1
    %p73 = por %p71, %p72
    %p75 = scmp.ne.s32.totalorder %s60, %s74
    %p76 = scmp.eq.s32.totalorder %s29, 0
    %p77 = por %p75, %p76
    %s79 = sadd.s32 %s78, 1
    %p82 = scmp.eq.s32.totalorder %s23, 1
    %p83 = scmp.ne.s32.totalorder %s78, %s80
    %p84 = scmp.eq.s32.totalorder %s23, 0
    %p85 = por %p83, %p84
    %p86 = scmp.ne.s32.totalorder %s78, %s80
    %p87 = scmp.eq.s32.totalorder %s28, 1
    %p88 = por %p86, %p87
    %p89 = scmp.ne.s32.totalorder %s80, %s81
    %p90 = scmp.eq.s32.totalorder %s28, 0
    %p91 = por %p89, %p90
    %p92 = scmp.ne.s32.totalorder %s80, %s81
    %p93 = scmp.eq.s32.totalorder %s29, 1
    %p94 = por %p92, %p93
    %p96 = scmp.ne.s32.totalorder %s81, %s95
    %p97 = scmp.eq.s32.totalorder %s29, 0
    %p98 = por %p96, %p97
    %s100 = sadd.s32 %s99, 1
    %p103 = scmp.eq.s32.totalorder %s23, 1
    %p104 = scmp.ne.s32.totalorder %s99, %s101
    %p105 = scmp.eq.s32.totalorder %s23, 0
    %p106 = por %p104, %p105
    %p107 = scmp.ne.s32.totalorder %s99, %s101
    %p108 = scmp.eq.s32.totalorder %s28, 1
    %p109 = por %p107, %p108
    %p110 = scmp.ne.s32.totalorder %s101, %s102
    %p111 = scmp.eq.s32.totalorder %s28, 0
    %p112 = por %p110, %p111
    %p113 = scmp.ne.s32.totalorder %s101, %s102
    %p114 = scmp.eq.s32.totalorder %s29, 1
    %p115 = por %p113, %p114
    %p117 = scmp.ne.s32.totalorder %s102, %s116
    %p118 = scmp.eq.s32.totalorder %s29, 0
    %p119 = por %p117, %p118
    %s121 = sadd.s32 %s120, 1
    %p124 = scmp.eq.s32.totalorder %s23, 1
    %p125 = scmp.ne.s32.totalorder %s120, %s122
    %p126 = scmp.eq.s32.totalorder %s23, 0
    %p127 = por %p125, %p126
    %p128 = scmp.ne.s32.totalorder %s120, %s122
    %p129 = scmp.eq.s32.totalorder %s28, 1
    %p130 = por %p128, %p129
    %p131 = scmp.ne.s32.totalorder %s122, %s123
    %p132 = scmp.eq.s32.totalorder %s28, 0
    %p133 = por %p131, %p132
    %p134 = scmp.ne.s32.totalorder %s122, %s123
    %p135 = scmp.eq.s32.totalorder %s29, 1
    %p136 = por %p134, %p135
    %p138 = scmp.ne.s32.totalorder %s123, %s137
    %p139 = scmp.eq.s32.totalorder %s29, 0
    %p140 = por %p138, %p139
    %s142 = sadd.s32 %s141, 1
    %p145 = scmp.eq.s32.totalorder %s23, 1
    %p146 = scmp.ne.s32.totalorder %s141, %s143
    %p147 = scmp.eq.s32.totalorder %s23, 0
    %p148 = por %p146, %p147
    %p149 = scmp.ne.s32.totalorder %s141, %s143
    %p150 = scmp.eq.s32.totalorder %s28, 1
    %p151 = por %p149, %p150
    %p152 = scmp.ne.s32.totalorder %s143, %s144
    %p153 = scmp.eq.s32.totalorder %s28, 0
    %p154 = por %p152, %p153
    %p155 = scmp.ne.s32.totalorder %s143, %s144
    %p156 = scmp.eq.s32.totalorder %s29, 1
    %p157 = por %p155, %p156
    %p159 = scmp.ne.s32.totalorder %s144, %s158
    %p160 = scmp.eq.s32.totalorder %s29, 0
    %p161 = por %p159, %p160
    %s163 = sadd.s32 %s162, 1
    %p166 = scmp.eq.s32.totalorder %s23, 1
    %p167 = scmp.ne.s32.totalorder %s162, %s164
    %p168 = scmp.eq.s32.totalorder %s23, 0
    %p169 = por %p167, %p168
    %p170 = scmp.ne.s32.totalorder %s162, %s164
    %p171 = scmp.eq.s32.totalorder %s28, 1
    %p172 = por %p170, %p171
    %p173 = scmp.ne.s32.totalorder %s164, %s165
    %p174 = scmp.eq.s32.totalorder %s28, 0
    %p175 = por %p173, %p174
    %p176 = scmp.ne.s32.totalorder %s164, %s165
    %p177 = scmp.eq.s32.totalorder %s29, 1
    %p178 = por %p176, %p177
    %p180 = scmp.ne.s32.totalorder %s165, %s179
    %p181 = scmp.eq.s32.totalorder %s29, 0
    %p182 = por %p180, %p181
    %s184 = sadd.s32 %s183, 1
    %p187 = scmp.eq.s32.totalorder %s23, 1
    %p188 = scmp.ne.s32.totalorder %s183, %s185
    %p189 = scmp.eq.s32.totalorder %s23, 0
    %p190 = por %p188, %p189
    %p191 = scmp.ne.s32.totalorder %s183, %s185
    %p192 = scmp.eq.s32.totalorder %s28, 1
    %p193 = por %p191, %p192
    %p194 = scmp.ne.s32.totalorder %s185, %s186
    %p195 = scmp.eq.s32.totalorder %s28, 0
    %p196 = por %p194, %p195
    %p197 = scmp.ne.s32.totalorder %s185, %s186
    %p198 = scmp.eq.s32.totalorder %s29, 1
    %p199 = por %p197, %p198
    %p201 = scmp.ne.s32.totalorder %s186, %s200
    %p202 = scmp.eq.s32.totalorder %s29, 0
    %p203 = por %p201, %p202
    %s205 = sadd.s32 %s204, 1
    %p208 = scmp.eq.s32.totalorder %s23, 1
    %p209 = scmp.ne.s32.totalorder %s204, %s206
    %p210 = scmp.eq.s32.totalorder %s23, 0
    %p211 = por %p209, %p210
    %p212 = scmp.ne.s32.totalorder %s204, %s206
    %p213 = scmp.eq.s32.totalorder %s28, 1
    %p214 = por %p212, %p213
    %p215 = scmp.ne.s32.totalorder %s206, %s207
    %p216 = scmp.eq.s32.totalorder %s28, 0
    %p217 = por %p215, %p216
    %p218 = scmp.ne.s32.totalorder %s206, %s207
    %p219 = scmp.eq.s32.totalorder %s29, 1
    %p220 = por %p218, %p219
    %p222 = scmp.ne.s32.totalorder %s207, %s221
    %p223 = scmp.eq.s32.totalorder %s29, 0
    %p224 = por %p222, %p223
    %s226 = sadd.s32 %s225, 1
    %p229 = scmp.eq.s32.totalorder %s23, 1
    %p230 = scmp.ne.s32.totalorder %s225, %s227
    %p231 = scmp.eq.s32.totalorder %s23, 0
    %p232 = por %p230, %p231
    %p233 = scmp.ne.s32.totalorder %s225, %s227
    %p234 = scmp.eq.s32.totalorder %s28, 1
    %p235 = por %p233, %p234
    %p236 = scmp.ne.s32.totalorder %s227, %s228
    %p237 = scmp.eq.s32.totalorder %s28, 0
    %p238 = por %p236, %p237
    %p239 = scmp.ne.s32.totalorder %s227, %s228
    %p240 = scmp.eq.s32.totalorder %s29, 1
    %p241 = por %p239, %p240
    %p243 = scmp.ne.s32.totalorder %s228, %s242
    %p244 = scmp.eq.s32.totalorder %s29, 0
    %p245 = por %p243, %p244
    %s247 = sadd.s32 %s246, 1
    %p250 = scmp.eq.s32.totalorder %s23, 1
    %p251 = scmp.ne.s32.totalorder %s246, %s248
    %p252 = scmp.eq.s32.totalorder %s23, 0
    %p253 = por %p251, %p252
    %p254 = scmp.ne.s32.totalorder %s246, %s248
    %p255 = scmp.eq.s32.totalorder %s28, 1
    %p256 = por %p254, %p255
    %p257 = scmp.ne.s32.totalorder %s248, %s249
    %p258 = scmp.eq.s32.totalorder %s28, 0
    %p259 = por %p257, %p258
    %p260 = scmp.ne.s32.totalorder %s248, %s249
    %p261 = scmp.eq.s32.totalorder %s29, 1
    %p262 = por %p260, %p261
    %p264 = scmp.ne.s32.totalorder %s249, %s263
    %p265 = scmp.eq.s32.totalorder %s29, 0
    %p266 = por %p264, %p265
    %s268 = sadd.s32 %s267, 1
    %p271 = scmp.eq.s32.totalorder %s23, 1
    %p272 = scmp.ne.s32.totalorder %s267, %s269
    %p273 = scmp.eq.s32.totalorder %s23, 0
    %p274 = por %p272, %p273
    %p275 = scmp.ne.s32.totalorder %s267, %s269
    %p276 = scmp.eq.s32.totalorder %s28, 1
    %p277 = por %p275, %p276
    %p278 = scmp.ne.s32.totalorder %s269, %s270
    %p279 = scmp.eq.s32.totalorder %s28, 0
    %p280 = por %p278, %p279
    %p281 = scmp.ne.s32.totalorder %s269, %s270
    %p282 = scmp.eq.s32.totalorder %s29, 1
    %p283 = por %p281, %p282
    %p285 = scmp.ne.s32.totalorder %s270, %s284
    %p286 = scmp.eq.s32.totalorder %s29, 0
    %p287 = por %p285, %p286
    %s289 = sadd.s32 %s288, 1
    %p292 = scmp.eq.s32.totalorder %s23, 1
    %p293 = scmp.ne.s32.totalorder %s288, %s290
    %p294 = scmp.eq.s32.totalorder %s23, 0
    %p295 = por %p293, %p294
    %p296 = scmp.ne.s32.totalorder %s288, %s290
    %p297 = scmp.eq.s32.totalorder %s28, 1
    %p298 = por %p296, %p297
    %p299 = scmp.ne.s32.totalorder %s290, %s291
    %p300 = scmp.eq.s32.totalorder %s28, 0
    %p301 = por %p299, %p300
    %p302 = scmp.ne.s32.totalorder %s290, %s291
    %p303 = scmp.eq.s32.totalorder %s29, 1
    %p304 = por %p302, %p303
    %p306 = scmp.ne.s32.totalorder %s291, %s305
    %p307 = scmp.eq.s32.totalorder %s29, 0
    %p308 = por %p306, %p307
    %s310 = sadd.s32 %s309, 1
    %p313 = scmp.eq.s32.totalorder %s23, 1
    %p314 = scmp.ne.s32.totalorder %s309, %s311
    %p315 = scmp.eq.s32.totalorder %s23, 0
    %p316 = por %p314, %p315
    %p317 = scmp.ne.s32.totalorder %s309, %s311
    %p318 = scmp.eq.s32.totalorder %s28, 1
    %p319 = por %p317, %p318
    %p320 = scmp.ne.s32.totalorder %s311, %s312
    %p321 = scmp.eq.s32.totalorder %s28, 0
    %p322 = por %p320, %p321
    %p323 = scmp.ne.s32.totalorder %s311, %s312
    %p324 = scmp.eq.s32.totalorder %s29, 1
    %p325 = por %p323, %p324
    %p327 = scmp.ne.s32.totalorder %s312, %s326
    %p328 = scmp.eq.s32.totalorder %s29, 0
    %p329 = por %p327, %p328
    %s331 = sadd.s32 %s330, 1
    %p334 = scmp.eq.s32.totalorder %s23, 1
    %p335 = scmp.ne.s32.totalorder %s330, %s332
    %p336 = scmp.eq.s32.totalorder %s23, 0
    %p337 = por %p335, %p336
    %p338 = scmp.ne.s32.totalorder %s330, %s332
    %p339 = scmp.eq.s32.totalorder %s28, 1
    %p340 = por %p338, %p339
    %p341 = scmp.ne.s32.totalorder %s332, %s333
    %p342 = scmp.eq.s32.totalorder %s28, 0
    %p343 = por %p341, %p342
    %p344 = scmp.ne.s32.totalorder %s332, %s333
    %p345 = scmp.eq.s32.totalorder %s29, 1
    %p346 = por %p344, %p345
    %p348 = scmp.ne.s32.totalorder %s333, %s347
    %p349 = scmp.eq.s32.totalorder %s29, 0
    %p350 = por %p348, %p349
    %s352 = sadd.s32 %s351, 1
    %p355 = scmp.eq.s32.totalorder %s23, 1
    %p356 = scmp.ne.s32.totalorder %s351, %s353
    %p357 = scmp.eq.s32.totalorder %s23, 0
    %p358 = por %p356, %p357
    %p359 = scmp.ne.s32.totalorder %s351, %s353
    %p360 = scmp.eq.s32.totalorder %s28, 1
    %p361 = por %p359, %p360
    %p362 = scmp.ne.s32.totalorder %s353, %s354
    %p363 = scmp.eq.s32.totalorder %s28, 0
    %p364 = por %p362, %p363
    %p365 = scmp.ne.s32.totalorder %s353, %s354
    %p366 = scmp.eq.s32.totalorder %s29, 1
    %p367 = por %p365, %p366
    %p369 = scmp.ne.s32.totalorder %s354, %s368
    %p370 = scmp.eq.s32.totalorder %s29, 0
    %p371 = por %p369, %p370
    %s373 = sadd.s32 %s372, 1
    %p376 = scmp.eq.s32.totalorder %s23, 1
    %p377 = scmp.ne.s32.totalorder %s372, %s374
    %p378 = scmp.eq.s32.totalorder %s23, 0
    %p379 = por %p377, %p378
    %p380 = scmp.ne.s32.totalorder %s372, %s374
    %p381 = scmp.eq.s32.totalorder %s28, 1
    %p382 = por %p380, %p381
    %p383 = scmp.ne.s32.totalorder %s374, %s375
    %p384 = scmp.eq.s32.totalorder %s28, 0
    %p385 = por %p383, %p384
    %p386 = scmp.ne.s32.totalorder %s374, %s375
    %p387 = scmp.eq.s32.totalorder %s29, 1
    %p388 = por %p386, %p387
    %p390 = scmp.ne.s32.totalorder %s375, %s389
    %p391 = scmp.eq.s32.totalorder %s29, 0
    %p392 = por %p390, %p391
    %s393 = ssub.s32 %s23, %s30
    %p394 = scmp.eq.s32.totalorder %s393, 0
    %s396 = sadd.s32 %s395, 1
    %s397 = scalar_select %p394, %s395, %s396
    %p400 = pneg %p394
    %p401 = scmp.eq.s32.totalorder %s23, 1
    %p402 = por %p400, %p401
    %p403 = scmp.ne.s32.totalorder %s395, %s398
    %p404 = scmp.eq.s32.totalorder %s23, 0
    %p405 = por %p403, %p404
    %p406 = scmp.ne.s32.totalorder %s395, %s398
    %p407 = scmp.eq.s32.totalorder %s28, 1
    %p408 = por %p406, %p407
    %p409 = scmp.ne.s32.totalorder %s398, %s399
    %p410 = scmp.eq.s32.totalorder %s28, 0
    %p411 = por %p409, %p410
    %p412 = scmp.ne.s32.totalorder %s398, %s399
    %p413 = scmp.eq.s32.totalorder %s29, 1
    %p414 = por %p412, %p413
    %p416 = scmp.ne.s32.totalorder %s399, %s415
    %p417 = scmp.eq.s32.totalorder %s29, 0
    %p418 = por %p416, %p417
    %p419 = scmp.le.s32.totalorder 1, %s23
    %p420 = scmp.lt.s32.totalorder %s23, 3
    %p421 = pnand %p419, %p420
    %p422 = pneg %p421
    // Predicated region
    $region9: #{_lambda_.1} parent=5 // pred_check
      _
    $region10: #{_lambda_.1} parent=5 // pred_check_branch
      %424 = sbr.rel (%p421) target = $region12
    $region11: #{_lambda_.1} parent=5 // pred_region
      %s425 = ssub.s32 %s23, 1
      // Predicated region
      $region13: #{_lambda_.1} parent=11 // pred_check
        %p426 = pneg %p70
      $region14: #{_lambda_.1} parent=11 // pred_check_branch
        %428 = sbr.rel (%p426) target = $region16
      $region15: #{_lambda_.1} parent=11 // pred_region
        _
      $region16: #{_lambda_.1} parent=11 // pred_fallthru
        _
      // Predicated region
      $region17: #{_lambda_.1} parent=11 // pred_check
        %p429 = pneg %p91
      $region18: #{_lambda_.1} parent=11 // pred_check_branch
        %431 = sbr.rel (%p429) target = $region20
      $region19: #{_lambda_.1} parent=11 // pred_region
        _
      $region20: #{_lambda_.1} parent=11 // pred_fallthru
        _
      // Predicated region
      $region21: #{_lambda_.1} parent=11 // pred_check
        %p432 = pneg %p112
      $region22: #{_lambda_.1} parent=11 // pred_check_branch
        %434 = sbr.rel (%p432) target = $region24
      $region23: #{_lambda_.1} parent=11 // pred_region
        _
      $region24: #{_lambda_.1} parent=11 // pred_fallthru
        _
      // Predicated region
      $region25: #{_lambda_.1} parent=11 // pred_check
        %p435 = pneg %p133
      $region26: #{_lambda_.1} parent=11 // pred_check_branch
        %437 = sbr.rel (%p435) target = $region28
      $region27: #{_lambda_.1} parent=11 // pred_region
        _
      $region28: #{_lambda_.1} parent=11 // pred_fallthru
        _
      // Predicated region
      $region29: #{_lambda_.1} parent=11 // pred_check
        %p438 = pneg %p154
      $region30: #{_lambda_.1} parent=11 // pred_check_branch
        %440 = sbr.rel (%p438) target = $region32
      $region31: #{_lambda_.1} parent=11 // pred_region
        _
      $region32: #{_lambda_.1} parent=11 // pred_fallthru
        _
      // Predicated region
      $region33: #{_lambda_.1} parent=11 // pred_check
        %p441 = pneg %p175
      $region34: #{_lambda_.1} parent=11 // pred_check_branch
        %443 = sbr.rel (%p441) target = $region36
      $region35: #{_lambda_.1} parent=11 // pred_region
        _
      $region36: #{_lambda_.1} parent=11 // pred_fallthru
        _
      // Predicated region
      $region37: #{_lambda_.1} parent=11 // pred_check
        %p444 = pneg %p196
      $region38: #{_lambda_.1} parent=11 // pred_check_branch
        %446 = sbr.rel (%p444) target = $region40
      $region39: #{_lambda_.1} parent=11 // pred_region
        _
      $region40: #{_lambda_.1} parent=11 // pred_fallthru
        _
      // Predicated region
      $region41: #{_lambda_.1} parent=11 // pred_check
        %p447 = pneg %p217
      $region42: #{_lambda_.1} parent=11 // pred_check_branch
        %449 = sbr.rel (%p447) target = $region44
      $region43: #{_lambda_.1} parent=11 // pred_region
        _
      $region44: #{_lambda_.1} parent=11 // pred_fallthru
        _
      // Predicated region
      $region45: #{_lambda_.1} parent=11 // pred_check
        %p450 = pneg %p238
      $region46: #{_lambda_.1} parent=11 // pred_check_branch
        %452 = sbr.rel (%p450) target = $region48
      $region47: #{_lambda_.1} parent=11 // pred_region
        _
      $region48: #{_lambda_.1} parent=11 // pred_fallthru
        _
      // Predicated region
      $region49: #{_lambda_.1} parent=11 // pred_check
        %p453 = pneg %p259
      $region50: #{_lambda_.1} parent=11 // pred_check_branch
        %455 = sbr.rel (%p453) target = $region52
      $region51: #{_lambda_.1} parent=11 // pred_region
        _
      $region52: #{_lambda_.1} parent=11 // pred_fallthru
        _
      // Predicated region
      $region53: #{_lambda_.1} parent=11 // pred_check
        %p456 = pneg %p280
      $region54: #{_lambda_.1} parent=11 // pred_check_branch
        %458 = sbr.rel (%p456) target = $region56
      $region55: #{_lambda_.1} parent=11 // pred_region
        _
      $region56: #{_lambda_.1} parent=11 // pred_fallthru
        _
      // Predicated region
      $region57: #{_lambda_.1} parent=11 // pred_check
        %p459 = pneg %p301
      $region58: #{_lambda_.1} parent=11 // pred_check_branch
        %461 = sbr.rel (%p459) target = $region60
      $region59: #{_lambda_.1} parent=11 // pred_region
        _
      $region60: #{_lambda_.1} parent=11 // pred_fallthru
        _
      // Predicated region
      $region61: #{_lambda_.1} parent=11 // pred_check
        %p462 = pneg %p322
      $region62: #{_lambda_.1} parent=11 // pred_check_branch
        %464 = sbr.rel (%p462) target = $region64
      $region63: #{_lambda_.1} parent=11 // pred_region
        _
      $region64: #{_lambda_.1} parent=11 // pred_fallthru
        _
      // Predicated region
      $region65: #{_lambda_.1} parent=11 // pred_check
        %p465 = pneg %p343
      $region66: #{_lambda_.1} parent=11 // pred_check_branch
        %467 = sbr.rel (%p465) target = $region68
      $region67: #{_lambda_.1} parent=11 // pred_region
        _
      $region68: #{_lambda_.1} parent=11 // pred_fallthru
        _
      // Predicated region
      $region69: #{_lambda_.1} parent=11 // pred_check
        %p468 = pneg %p364
      $region70: #{_lambda_.1} parent=11 // pred_check_branch
        %470 = sbr.rel (%p468) target = $region72
      $region71: #{_lambda_.1} parent=11 // pred_region
        _
      $region72: #{_lambda_.1} parent=11 // pred_fallthru
        _
      // Predicated region
      $region73: #{_lambda_.1} parent=11 // pred_check
        %p471 = pneg %p385
      $region74: #{_lambda_.1} parent=11 // pred_check_branch
        %473 = sbr.rel (%p471) target = $region76
      $region75: #{_lambda_.1} parent=11 // pred_region
        _
      $region76: #{_lambda_.1} parent=11 // pred_fallthru
        _
    $region12: #{_lambda_.1} parent=5 // pred_fallthru
      _
    %p474 = scmp.lt.s32.totalorder %s23, 2
    // Predicated region
    $region77: #{_lambda_.1} parent=5 // pred_check
      %p475 = pneg %p474
    $region78: #{_lambda_.1} parent=5 // pred_check_branch
      %477 = sbr.rel (%p475) target = $region80
    $region79: #{_lambda_.1} parent=5 // pred_region
      // Predicated region
      $region81: #{_lambda_.1} parent=79 // pred_check
        %p478 = pneg %p43
      $region82: #{_lambda_.1} parent=79 // pred_check_branch
        %480 = sbr.rel (%p478) target = $region84
      $region83: #{_lambda_.1} parent=79 // pred_region
        %p481 = scmp.lt.s32.totalorder %s23, 1
        %s482 = scalar_select %p481, %s23, 1
        %s483 = smul.addr %s482, 8
        %s484 = scalar_lea.vmem %s0, %s483
      $region84: #{_lambda_.1} parent=79 // pred_fallthru
        _
    $region80: #{_lambda_.1} parent=5 // pred_fallthru
      _
    %p485 = scmp.le.s32.totalorder 1, %s23
    %p486 = scmp.lt.s32.totalorder %s23, 3
    %p487 = pnand %p485, %p486
    %p488 = pneg %p487
    // Predicated region
    $region85: #{_lambda_.1} parent=5 // pred_check
      _
    $region86: #{_lambda_.1} parent=5 // pred_check_branch
      %490 = sbr.rel (%p487) target = $region88
    $region87: #{_lambda_.1} parent=5 // pred_region
      %s491 = ssub.s32 %s23, 1
      %p492 = scmp.lt.s32.totalorder %s28, 1
      %s493 = scalar_select %p492, %s28, 1
      %s494 = smul.addr %s493, 8
      %s495 = scalar_lea.vmem %s0, %s494
      %p496 = pneg %p49
      %p497 = pneg %p46
      %p498 = pneg %p70
      %p499 = pneg %p67
      %p500 = pneg %p91
      %p501 = pneg %p88
      %p502 = pneg %p112
      %p503 = pneg %p109
      %p504 = pneg %p133
      %p505 = pneg %p130
      %p506 = pneg %p154
      %p507 = pneg %p151
      %p508 = pneg %p175
      %p509 = pneg %p172
      %p510 = pneg %p196
      %p511 = pneg %p193
      %p512 = pneg %p217
      %p513 = pneg %p214
      %p514 = pneg %p238
      %p515 = pneg %p235
      %p516 = pneg %p259
      %p517 = pneg %p256
      %p518 = pneg %p280
      %p519 = pneg %p277
      %p520 = pneg %p301
      %p521 = pneg %p298
      %p522 = pneg %p322
      %p523 = pneg %p319
      %p524 = pneg %p343
      %p525 = pneg %p340
      %p526 = pneg %p364
      %p527 = pneg %p361
      %p528 = pneg %p385
      %p529 = pneg %p382
      %p530 = pneg %p411
      %p531 = pneg %p408
      %p532 = scmp.lt.s32.totalorder %s28, 1
      %s533 = scalar_select %p532, %s28, 1
      %s534 = smul.addr %s533, 8
      %s535 = scalar_lea.vmem %s17, %s534
      %p536 = scmp.lt.s32.totalorder %s28, 1
      %s537 = scalar_select %p536, %s28, 1
      %s538 = smul.addr %s537, 8
      %s539 = scalar_lea.vmem %s0, %s538
      %p540 = scmp.lt.s32.totalorder %s28, 1
      %s541 = scalar_select %p540, %s28, 1
      %s542 = smul.addr %s541, 8
      %s543 = scalar_lea.vmem %s17, %s542
      %v545 = vld [vmem:[%s539] sm:$0xff]
      %v546 = vld [vmem:[%s1] sm:$0xff]
      %v547 = vld [vmem:[%s1 + $0x8] sm:$0xff]
      %v548 = vld [vmem:[%s2] sm:$0x1]
      %v550 = vlaneseq
      %v551 = vshrl.u32 %v550, 7
      %v552 = vsub.s32 0, %v551
      %v553 = vrot.slane %v548, %v552
      %vm555 = vcmask 130048
      %v557 = vsel %vm555, %v545, 0
      %559 = vmatprep.subr.mxu0 0.0
      %560 = vmatpush1.msra.mxu0 %v546
      %561 = vmatprep.subr.mxu0 0.0
      %562 = vmatpush1.msra.mxu0 %v547
      %563 = vmatprep.subr.mxu0 0.0
      %564 = vmatpush1.msra.mxu0 0.0
      %565 = vmatprep.subr.mxu0 0.0
      %566 = vmatpush1.msra.mxu0 0.0
      %567 = vmatprep.subr.mxu0 0.0
      %568 = vmatpush1.msra.mxu0 0.0
      %569 = vmatprep.subr.mxu0 0.0
      %570 = vmatpush1.msra.mxu0 0.0
      %571 = vmatprep.subr.mxu0 0.0
      %572 = vmatpush1.msra.mxu0 0.0
      %573 = vmatprep.subr.mxu0 0.0
      %574 = vmatpush1.msra.mxu0 0.0
      %575 = vmatprep.subr.mxu0 0.0
      %576 = vmatpush1.msra.mxu0 0.0
      %577 = vmatprep.subr.mxu0 0.0
      %578 = vmatpush1.msra.mxu0 0.0
      %579 = vmatprep.subr.mxu0 0.0
      %580 = vmatpush1.msra.mxu0 0.0
      %581 = vmatprep.subr.mxu0 0.0
      %582 = vmatpush1.msra.mxu0 0.0
      %583 = vmatprep.subr.mxu0 0.0
      %584 = vmatpush1.msra.mxu0 0.0
      %585 = vmatprep.subr.mxu0 0.0
      %586 = vmatpush1.msra.mxu0 0.0
      %587 = vmatprep.subr.mxu0 0.0
      %588 = vmatpush1.msra.mxu0 0.0
      %589 = vmatprep.subr.mxu0 0.0
      %590 = vmatpush1.msra.mxu0 0.0
      %591 = vmatprep.subr.mxu0 0.0
      %592 = vmatpush1.msra.mxu0 0.0
      %593 = vmatprep.subr.mxu0 0.0
      %594 = vmatpush1.msra.mxu0 0.0
      %595 = vmatprep.subr.mxu0 0.0
      %596 = vmatpush1.msra.mxu0 0.0
      %597 = vmatprep.subr.mxu0 0.0
      %598 = vmatpush1.msra.mxu0 0.0
      %599 = vmatprep.subr.mxu0 0.0
      %600 = vmatpush1.msra.mxu0 0.0
      %601 = vmatprep.subr.mxu0 0.0
      %602 = vmatpush1.msra.mxu0 0.0
      %603 = vmatprep.subr.mxu0 0.0
      %604 = vmatpush1.msra.mxu0 0.0
      %605 = vmatprep.subr.mxu0 0.0
      %606 = vmatpush1.msra.mxu0 0.0
      %607 = vmatprep.subr.mxu0 0.0
      %608 = vmatpush1.msra.mxu0 0.0
      %609 = vmatprep.subr.mxu0 0.0
      %610 = vmatpush1.msra.mxu0 0.0
      %611 = vmatprep.subr.mxu0 0.0
      %612 = vmatpush1.msra.mxu0 0.0
      %613 = vmatprep.subr.mxu0 0.0
      %614 = vmatpush1.msra.mxu0 0.0
      %615 = vmatprep.subr.mxu0 0.0
      %616 = vmatpush1.msra.mxu0 0.0
      %617 = vmatprep.subr.mxu0 0.0
      %618 = vmatpush1.msra.mxu0 0.0
      %619 = vmatprep.subr.mxu0 0.0
      %620 = vmatpush1.msra.mxu0 0.0
      %621 = vmatprep.subr.mxu0 0.0
      %622 = vmatpush1.msra.mxu0 0.0
      %623 = vmatprep.mubr.f32.mxu0 0.0
      %624 = vmatmul.mubr.f32.gmra.mrb[0].mxu0 %v557
      %v625 = vpop.f32.mrb[0].mxu0
      %v626 = vadd.f32 %v553, %v625
      %v627 = vpop.f32.mrb[0].mxu0
      %628 = vdwg.mxu0
      %v629 = vld [vmem:[%s3] sm:$0xff]
      %v630 = vld [vmem:[%s3 + $0x8] sm:$0xff]
      %v631 = vld [vmem:[%s3 + $0x10] sm:$0xff]
      %v632 = vld [vmem:[%s3 + $0x18] sm:$0xff]
      %v633 = vld [vmem:[%s4] sm:$0x1]
      %v635 = vlaneseq
      %v636 = vshrl.u32 %v635, 7
      %v637 = vsub.s32 0, %v636
      %v638 = vrot.slane %v633, %v637
      %vm640 = vcmask 261120
      %v642 = vsel %vm640, %v626, 0
      %644 = vmatprep.subr.mxu0 0.0
      %645 = vmatpush1.msra.mxu0 %v629
      %646 = vmatprep.subr.mxu0 0.0
      %647 = vmatpush1.msra.mxu0 %v630
      %648 = vmatprep.subr.mxu0 0.0
      %649 = vmatpush1.msra.mxu0 %v631
      %650 = vmatprep.subr.mxu0 0.0
      %651 = vmatpush1.msra.mxu0 %v632
      %652 = vmatprep.subr.mxu0 0.0
      %653 = vmatpush1.msra.mxu0 0.0
      %654 = vmatprep.subr.mxu0 0.0
      %655 = vmatpush1.msra.mxu0 0.0
      %656 = vmatprep.subr.mxu0 0.0
      %657 = vmatpush1.msra.mxu0 0.0
      %658 = vmatprep.subr.mxu0 0.0
      %659 = vmatpush1.msra.mxu0 0.0
      %660 = vmatprep.subr.mxu0 0.0
      %661 = vmatpush1.msra.mxu0 0.0
      %662 = vmatprep.subr.mxu0 0.0
      %663 = vmatpush1.msra.mxu0 0.0
      %664 = vmatprep.subr.mxu0 0.0
      %665 = vmatpush1.msra.mxu0 0.0
      %666 = vmatprep.subr.mxu0 0.0
      %667 = vmatpush1.msra.mxu0 0.0
      %668 = vmatprep.subr.mxu0 0.0
      %669 = vmatpush1.msra.mxu0 0.0
      %670 = vmatprep.subr.mxu0 0.0
      %671 = vmatpush1.msra.mxu0 0.0
      %672 = vmatprep.subr.mxu0 0.0
      %673 = vmatpush1.msra.mxu0 0.0
      %674 = vmatprep.subr.mxu0 0.0
      %675 = vmatpush1.msra.mxu0 0.0
      %676 = vmatprep.subr.mxu0 0.0
      %677 = vmatpush1.msra.mxu0 0.0
      %678 = vmatprep.subr.mxu0 0.0
      %679 = vmatpush1.msra.mxu0 0.0
      %680 = vmatprep.subr.mxu0 0.0
      %681 = vmatpush1.msra.mxu0 0.0
      %682 = vmatprep.subr.mxu0 0.0
      %683 = vmatpush1.msra.mxu0 0.0
      %684 = vmatprep.subr.mxu0 0.0
      %685 = vmatpush1.msra.mxu0 0.0
      %686 = vmatprep.subr.mxu0 0.0
      %687 = vmatpush1.msra.mxu0 0.0
      %688 = vmatprep.subr.mxu0 0.0
      %689 = vmatpush1.msra.mxu0 0.0
      %690 = vmatprep.subr.mxu0 0.0
      %691 = vmatpush1.msra.mxu0 0.0
      %692 = vmatprep.subr.mxu0 0.0
      %693 = vmatpush1.msra.mxu0 0.0
      %694 = vmatprep.subr.mxu0 0.0
      %695 = vmatpush1.msra.mxu0 0.0
      %696 = vmatprep.subr.mxu0 0.0
      %697 = vmatpush1.msra.mxu0 0.0
      %698 = vmatprep.subr.mxu0 0.0
      %699 = vmatpush1.msra.mxu0 0.0
      %700 = vmatprep.subr.mxu0 0.0
      %701 = vmatpush1.msra.mxu0 0.0
      %702 = vmatprep.subr.mxu0 0.0
      %703 = vmatpush1.msra.mxu0 0.0
      %704 = vmatprep.subr.mxu0 0.0
      %705 = vmatpush1.msra.mxu0 0.0
      %706 = vmatprep.subr.mxu0 0.0
      %707 = vmatpush1.msra.mxu0 0.0
      %708 = vmatprep.mubr.f32.mxu0 0.0
      %709 = vmatmul.mubr.f32.gmra.mrb[0].mxu0 %v642
      %v710 = vpop.f32.mrb[0].mxu0
      %v711 = vadd.f32 %v638, %v710
      %v712 = vpop.f32.mrb[0].mxu0
      %713 = vdwg.mxu0
      %715 = vrot.lane.b32.xlu0 %v711, 96
      %v716 = vpop.permute.xlu0 %715
      %vm717 = vcmask 31744
      %v718 = vsel %vm717, %v711, 0
      %v720 = vsel %vm717, %v716, 0
      %722 = vmatprep.subr.mxu0 0.0
      %723 = vmatpush1.xpose.msra.mxu0 %v720
      %724 = vmatprep.subr.mxu0 0.0
      %725 = vmatpush1.xpose.msra.mxu0 0.0
      %726 = vmatprep.subr.mxu0 0.0
      %727 = vmatpush1.xpose.msra.mxu0 0.0
      %728 = vmatprep.subr.mxu0 0.0
      %729 = vmatpush1.xpose.msra.mxu0 0.0
      %730 = vmatprep.subr.mxu0 0.0
      %731 = vmatpush1.xpose.msra.mxu0 0.0
      %732 = vmatprep.subr.mxu0 0.0
      %733 = vmatpush1.xpose.msra.mxu0 0.0
      %734 = vmatprep.subr.mxu0 0.0
      %735 = vmatpush1.xpose.msra.mxu0 0.0
      %736 = vmatprep.subr.mxu0 0.0
      %737 = vmatpush1.xpose.msra.mxu0 0.0
      %738 = vmatprep.subr.mxu0 0.0
      %739 = vmatpush1.xpose.msra.mxu0 0.0
      %740 = vmatprep.subr.mxu0 0.0
      %741 = vmatpush1.xpose.msra.mxu0 0.0
      %742 = vmatprep.subr.mxu0 0.0
      %743 = vmatpush1.xpose.msra.mxu0 0.0
      %744 = vmatprep.subr.mxu0 0.0
      %745 = vmatpush1.xpose.msra.mxu0 0.0
      %746 = vmatprep.subr.mxu0 0.0
      %747 = vmatpush1.xpose.msra.mxu0 0.0
      %748 = vmatprep.subr.mxu0 0.0
      %749 = vmatpush1.xpose.msra.mxu0 0.0
      %750 = vmatprep.subr.mxu0 0.0
      %751 = vmatpush1.xpose.msra.mxu0 0.0
      %752 = vmatprep.subr.mxu0 0.0
      %753 = vmatpush1.xpose.msra.mxu0 0.0
      %754 = vmatprep.subr.mxu0 0.0
      %755 = vmatpush1.xpose.msra.mxu0 0.0
      %756 = vmatprep.subr.mxu0 0.0
      %757 = vmatpush1.xpose.msra.mxu0 0.0
      %758 = vmatprep.subr.mxu0 0.0
      %759 = vmatpush1.xpose.msra.mxu0 0.0
      %760 = vmatprep.subr.mxu0 0.0
      %761 = vmatpush1.xpose.msra.mxu0 0.0
      %762 = vmatprep.subr.mxu0 0.0
      %763 = vmatpush1.xpose.msra.mxu0 0.0
      %764 = vmatprep.subr.mxu0 0.0
      %765 = vmatpush1.xpose.msra.mxu0 0.0
      %766 = vmatprep.subr.mxu0 0.0
      %767 = vmatpush1.xpose.msra.mxu0 0.0
      %768 = vmatprep.subr.mxu0 0.0
      %769 = vmatpush1.xpose.msra.mxu0 0.0
      %770 = vmatprep.subr.mxu0 0.0
      %771 = vmatpush1.xpose.msra.mxu0 0.0
      %772 = vmatprep.subr.mxu0 0.0
      %773 = vmatpush1.xpose.msra.mxu0 0.0
      %774 = vmatprep.subr.mxu0 0.0
      %775 = vmatpush1.xpose.msra.mxu0 0.0
      %776 = vmatprep.subr.mxu0 0.0
      %777 = vmatpush1.xpose.msra.mxu0 0.0
      %778 = vmatprep.subr.mxu0 0.0
      %779 = vmatpush1.xpose.msra.mxu0 0.0
      %780 = vmatprep.subr.mxu0 0.0
      %781 = vmatpush1.xpose.msra.mxu0 0.0
      %782 = vmatprep.subr.mxu0 0.0
      %783 = vmatpush1.xpose.msra.mxu0 0.0
      %784 = vmatprep.subr.mxu0 0.0
      %785 = vmatpush1.xpose.msra.mxu0 0.0
      %786 = vmatprep.mubr.f32.mxu0 0.0
      %787 = vmatmul.mubr.f32.gmra.mrb[0].mxu0 %v718
      %v788 = vpop.f32.mrb[0].mxu0
      %v789 = vadd.f32 0.0, %v788
      %v790 = vpop.f32.mrb[0].mxu0
      %791 = vdwg.mxu0
      %v792 = vmul.f32 %v789, 0.5
      %vm793 = vcmask 64512
      %v794 = vsel %vm793, %v792, -inf
      %795 = vmax.xlane.f32.xlu0 %v794
      %v796 = vpop.xlane.xlu0 %795
      %v797 = vsub.f32 %v792, %v796
      %v798 = vmul.f32 %v797, 1.442695
      %v799 = vpow.pop %v798
      %v800 = vsel %vm793, %v799, 0.0
      %801 = vadd.xlane.f32.xlu0 %v800
      %v802 = vpop.xlane.xlu0 %801
      %v803 = vrcp.pop %v802
      %v804 = vmul.f32 %v799, %v803
      %805 = vrot.lane.b32.xlu0 %v711, 64
      %v806 = vpop.permute.xlu0 %805
      %v809 = vsel %vm793, %v804, 0
      %811 = vmatprep.subr.mxu0 0.0
      %812 = vmatpush1.msra.mxu0 %v806
      %813 = vmatprep.subr.mxu0 0.0
      %814 = vmatpush1.msra.mxu0 0.0
      %815 = vmatprep.subr.mxu0 0.0
      %816 = vmatpush1.msra.mxu0 0.0
      %817 = vmatprep.subr.mxu0 0.0
      %818 = vmatpush1.msra.mxu0 0.0
      %819 = vmatprep.subr.mxu0 0.0
      %820 = vmatpush1.msra.mxu0 0.0
      %821 = vmatprep.subr.mxu0 0.0
      %822 = vmatpush1.msra.mxu0 0.0
      %823 = vmatprep.subr.mxu0 0.0
      %824 = vmatpush1.msra.mxu0 0.0
      %825 = vmatprep.subr.mxu0 0.0
      %826 = vmatpush1.msra.mxu0 0.0
      %827 = vmatprep.subr.mxu0 0.0
      %828 = vmatpush1.msra.mxu0 0.0
      %829 = vmatprep.subr.mxu0 0.0
      %830 = vmatpush1.msra.mxu0 0.0
      %831 = vmatprep.subr.mxu0 0.0
      %832 = vmatpush1.msra.mxu0 0.0
      %833 = vmatprep.subr.mxu0 0.0
      %834 = vmatpush1.msra.mxu0 0.0
      %835 = vmatprep.subr.mxu0 0.0
      %836 = vmatpush1.msra.mxu0 0.0
      %837 = vmatprep.subr.mxu0 0.0
      %838 = vmatpush1.msra.mxu0 0.0
      %839 = vmatprep.subr.mxu0 0.0
      %840 = vmatpush1.msra.mxu0 0.0
      %841 = vmatprep.subr.mxu0 0.0
      %842 = vmatpush1.msra.mxu0 0.0
      %843 = vmatprep.subr.mxu0 0.0
      %844 = vmatpush1.msra.mxu0 0.0
      %845 = vmatprep.subr.mxu0 0.0
      %846 = vmatpush1.msra.mxu0 0.0
      %847 = vmatprep.subr.mxu0 0.0
      %848 = vmatpush1.msra.mxu0 0.0
      %849 = vmatprep.subr.mxu0 0.0
      %850 = vmatpush1.msra.mxu0 0.0
      %851 = vmatprep.subr.mxu0 0.0
      %852 = vmatpush1.msra.mxu0 0.0
      %853 = vmatprep.subr.mxu0 0.0
      %854 = vmatpush1.msra.mxu0 0.0
      %855 = vmatprep.subr.mxu0 0.0
      %856 = vmatpush1.msra.mxu0 0.0
      %857 = vmatprep.subr.mxu0 0.0
      %858 = vmatpush1.msra.mxu0 0.0
      %859 = vmatprep.subr.mxu0 0.0
      %860 = vmatpush1.msra.mxu0 0.0
      %861 = vmatprep.subr.mxu0 0.0
      %862 = vmatpush1.msra.mxu0 0.0
      %863 = vmatprep.subr.mxu0 0.0
      %864 = vmatpush1.msra.mxu0 0.0
      %865 = vmatprep.subr.mxu0 0.0
      %866 = vmatpush1.msra.mxu0 0.0
      %867 = vmatprep.subr.mxu0 0.0
      %868 = vmatpush1.msra.mxu0 0.0
      %869 = vmatprep.subr.mxu0 0.0
      %870 = vmatpush1.msra.mxu0 0.0
      %871 = vmatprep.subr.mxu0 0.0
      %872 = vmatpush1.msra.mxu0 0.0
      %873 = vmatprep.subr.mxu0 0.0
      %874 = vmatpush1.msra.mxu0 0.0
      %875 = vmatprep.mubr.f32.mxu0 0.0
      %876 = vmatmul.mubr.f32.gmra.mrb[0].mxu0 %v809
      %v877 = vpop.f32.mrb[0].mxu0
      %v878 = vadd.f32 0.0, %v877
      %v879 = vpop.f32.mrb[0].mxu0
      %880 = vdwg.mxu0
      %881 = vrot.lane.b32.xlu0 %v711, 124
      %v882 = vpop.permute.xlu0 %881
      %883 = vrot.lane.b32.xlu0 %v711, 92
      %v884 = vpop.permute.xlu0 %883
      %v885 = vsel %vm717, %v882, 0
      %v887 = vsel %vm717, %v884, 0
      %889 = vmatprep.subr.mxu0 0.0
      %890 = vmatpush1.xpose.msra.mxu0 %v887
      %891 = vmatprep.subr.mxu0 0.0
      %892 = vmatpush1.xpose.msra.mxu0 0.0
      %893 = vmatprep.subr.mxu0 0.0
      %894 = vmatpush1.xpose.msra.mxu0 0.0
      %895 = vmatprep.subr.mxu0 0.0
      %896 = vmatpush1.xpose.msra.mxu0 0.0
      %897 = vmatprep.subr.mxu0 0.0
      %898 = vmatpush1.xpose.msra.mxu0 0.0
      %899 = vmatprep.subr.mxu0 0.0
      %900 = vmatpush1.xpose.msra.mxu0 0.0
      %901 = vmatprep.subr.mxu0 0.0
      %902 = vmatpush1.xpose.msra.mxu0 0.0
      %903 = vmatprep.subr.mxu0 0.0
      %904 = vmatpush1.xpose.msra.mxu0 0.0
      %905 = vmatprep.subr.mxu0 0.0
      %906 = vmatpush1.xpose.msra.mxu0 0.0
      %907 = vmatprep.subr.mxu0 0.0
      %908 = vmatpush1.xpose.msra.mxu0 0.0
      %909 = vmatprep.subr.mxu0 0.0
      %910 = vmatpush1.xpose.msra.mxu0 0.0
      %911 = vmatprep.subr.mxu0 0.0
      %912 = vmatpush1.xpose.msra.mxu0 0.0
      %913 = vmatprep.subr.mxu0 0.0
      %914 = vmatpush1.xpose.msra.mxu0 0.0
      %915 = vmatprep.subr.mxu0 0.0
      %916 = vmatpush1.xpose.msra.mxu0 0.0
      %917 = vmatprep.subr.mxu0 0.0
      %918 = vmatpush1.xpose.msra.mxu0 0.0
      %919 = vmatprep.subr.mxu0 0.0
      %920 = vmatpush1.xpose.msra.mxu0 0.0
      %921 = vmatprep.subr.mxu0 0.0
      %922 = vmatpush1.xpose.msra.mxu0 0.0
      %923 = vmatprep.subr.mxu0 0.0
      %924 = vmatpush1.xpose.msra.mxu0 0.0
      %925 = vmatprep.subr.mxu0 0.0
      %926 = vmatpush1.xpose.msra.mxu0 0.0
      %927 = vmatprep.subr.mxu0 0.0
      %928 = vmatpush1.xpose.msra.mxu0 0.0
      %929 = vmatprep.subr.mxu0 0.0
      %930 = vmatpush1.xpose.msra.mxu0 0.0
      %931 = vmatprep.subr.mxu0 0.0
      %932 = vmatpush1.xpose.msra.mxu0 0.0
      %933 = vmatprep.subr.mxu0 0.0
      %934 = vmatpush1.xpose.msra.mxu0 0.0
      %935 = vmatprep.subr.mxu0 0.0
      %936 = vmatpush1.xpose.msra.mxu0 0.0
      %937 = vmatprep.subr.mxu0 0.0
      %938 = vmatpush1.xpose.msra.mxu0 0.0
      %939 = vmatprep.subr.mxu0 0.0
      %940 = vmatpush1.xpose.msra.mxu0 0.0
      %941 = vmatprep.subr.mxu0 0.0
      %942 = vmatpush1.xpose.msra.mxu0 0.0
      %943 = vmatprep.subr.mxu0 0.0
      %944 = vmatpush1.xpose.msra.mxu0 0.0
      %945 = vmatprep.subr.mxu0 0.0
      %946 = vmatpush1.xpose.msra.mxu0 0.0
      %947 = vmatprep.subr.mxu0 0.0
      %948 = vmatpush1.xpose.msra.mxu0 0.0
      %949 = vmatprep.subr.mxu0 0.0
      %950 = vmatpush1.xpose.msra.mxu0 0.0
      %951 = vmatprep.subr.mxu0 0.0
      %952 = vmatpush1.xpose.msra.mxu0 0.0
      %953 = vmatprep.mubr.f32.mxu0 0.0
      %954 = vmatmul.mubr.f32.gmra.mrb[0].mxu0 %v885
      %v955 = vpop.f32.mrb[0].mxu0
      %v956 = vadd.f32 0.0, %v955
      %v957 = vpop.f32.mrb[0].mxu0
      %958 = vdwg.mxu0
      %v959 = vmul.f32 %v956, 0.5
      %v960 = vsel %vm793, %v959, -inf
      %961 = vmax.xlane.f32.xlu0 %v960
      %v962 = vpop.xlane.xlu0 %961
      %v963 = vsub.f32 %v959, %v962
      %v964 = vmul.f32 %v963, 1.442695
      %v965 = vpow.pop %v964
      %v966 = vsel %vm793, %v965, 0.0
      %967 = vadd.xlane.f32.xlu0 %v966
      %v968 = vpop.xlane.xlu0 %967
      %v969 = vrcp.pop %v968
      %v970 = vmul.f32 %v965, %v969
      %971 = vrot.lane.b32.xlu0 %v711, 60
      %v972 = vpop.permute.xlu0 %971
      %v975 = vsel %vm793, %v970, 0
      %977 = vmatprep.subr.mxu0 0.0
      %978 = vmatpush1.msra.mxu0 %v972
      %979 = vmatprep.subr.mxu0 0.0
      %980 = vmatpush1.msra.mxu0 0.0
      %981 = vmatprep.subr.mxu0 0.0
      %982 = vmatpush1.msra.mxu0 0.0
      %983 = vmatprep.subr.mxu0 0.0
      %984 = vmatpush1.msra.mxu0 0.0
      %985 = vmatprep.subr.mxu0 0.0
      %986 = vmatpush1.msra.mxu0 0.0
      %987 = vmatprep.subr.mxu0 0.0
      %988 = vmatpush1.msra.mxu0 0.0
      %989 = vmatprep.subr.mxu0 0.0
      %990 = vmatpush1.msra.mxu0 0.0
      %991 = vmatprep.subr.mxu0 0.0
      %992 = vmatpush1.msra.mxu0 0.0
      %993 = vmatprep.subr.mxu0 0.0
      %994 = vmatpush1.msra.mxu0 0.0
      %995 = vmatprep.subr.mxu0 0.0
      %996 = vmatpush1.msra.mxu0 0.0
      %997 = vmatprep.subr.mxu0 0.0
      %998 = vmatpush1.msra.mxu0 0.0
      %999 = vmatprep.subr.mxu0 0.0
      %1000 = vmatpush1.msra.mxu0 0.0
      %1001 = vmatprep.subr.mxu0 0.0
      %1002 = vmatpush1.msra.mxu0 0.0
      %1003 = vmatprep.subr.mxu0 0.0
      %1004 = vmatpush1.msra.mxu0 0.0
      %1005 = vmatprep.subr.mxu0 0.0
      %1006 = vmatpush1.msra.mxu0 0.0
      %1007 = vmatprep.subr.mxu0 0.0
      %1008 = vmatpush1.msra.mxu0 0.0
      %1009 = vmatprep.subr.mxu0 0.0
      %1010 = vmatpush1.msra.mxu0 0.0
      %1011 = vmatprep.subr.mxu0 0.0
      %1012 = vmatpush1.msra.mxu0 0.0
      %1013 = vmatprep.subr.mxu0 0.0
      %1014 = vmatpush1.msra.mxu0 0.0
      %1015 = vmatprep.subr.mxu0 0.0
      %1016 = vmatpush1.msra.mxu0 0.0
      %1017 = vmatprep.subr.mxu0 0.0
      %1018 = vmatpush1.msra.mxu0 0.0
      %1019 = vmatprep.subr.mxu0 0.0
      %1020 = vmatpush1.msra.mxu0 0.0
      %1021 = vmatprep.subr.mxu0 0.0
      %1022 = vmatpush1.msra.mxu0 0.0
      %1023 = vmatprep.subr.mxu0 0.0
      %1024 = vmatpush1.msra.mxu0 0.0
      %1025 = vmatprep.subr.mxu0 0.0
      %1026 = vmatpush1.msra.mxu0 0.0
      %1027 = vmatprep.subr.mxu0 0.0
      %1028 = vmatpush1.msra.mxu0 0.0
      %1029 = vmatprep.subr.mxu0 0.0
      %1030 = vmatpush1.msra.mxu0 0.0
      %1031 = vmatprep.subr.mxu0 0.0
      %1032 = vmatpush1.msra.mxu0 0.0
      %1033 = vmatprep.subr.mxu0 0.0
      %1034 = vmatpush1.msra.mxu0 0.0
      %1035 = vmatprep.subr.mxu0 0.0
      %1036 = vmatpush1.msra.mxu0 0.0
      %1037 = vmatprep.subr.mxu0 0.0
      %1038 = vmatpush1.msra.mxu0 0.0
      %1039 = vmatprep.subr.mxu0 0.0
      %1040 = vmatpush1.msra.mxu0 0.0
      %1041 = vmatprep.mubr.f32.mxu0 0.0
      %1042 = vmatmul.mubr.f32.gmra.mrb[0].mxu0 %v975
      %v1043 = vpop.f32.mrb[0].mxu0
      %v1044 = vadd.f32 0.0, %v1043
      %v1045 = vpop.f32.mrb[0].mxu0
      %1046 = vdwg.mxu0
      %1047 = vrot.lane.b32.xlu0 %v711, 120
      %v1048 = vpop.permute.xlu0 %1047
      %1049 = vrot.lane.b32.xlu0 %v711, 88
      %v1050 = vpop.permute.xlu0 %1049
      %v1051 = vsel %vm717, %v1048, 0
      %v1053 = vsel %vm717, %v1050, 0
      %1055 = vmatprep.subr.mxu0 0.0
      %1056 = vmatpush1.xpose.msra.mxu0 %v1053
      %1057 = vmatprep.subr.mxu0 0.0
      %1058 = vmatpush1.xpose.msra.mxu0 0.0
      %1059 = vmatprep.subr.mxu0 0.0
      %1060 = vmatpush1.xpose.msra.mxu0 0.0
      %1061 = vmatprep.subr.mxu0 0.0
      %1062 = vmatpush1.xpose.msra.mxu0 0.0
      %1063 = vmatprep.subr.mxu0 0.0
      %1064 = vmatpush1.xpose.msra.mxu0 0.0
      %1065 = vmatprep.subr.mxu0 0.0
      %1066 = vmatpush1.xpose.msra.mxu0 0.0
      %1067 = vmatprep.subr.mxu0 0.0
      %1068 = vmatpush1.xpose.msra.mxu0 0.0
      %1069 = vmatprep.subr.mxu0 0.0
      %1070 = vmatpush1.xpose.msra.mxu0 0.0
      %1071 = vmatprep.subr.mxu0 0.0
      %1072 = vmatpush1.xpose.msra.mxu0 0.0
      %1073 = vmatprep.subr.mxu0 0.0
      %1074 = vmatpush1.xpose.msra.mxu0 0.0
      %1075 = vmatprep.subr.mxu0 0.0
      %1076 = vmatpush1.xpose.msra.mxu0 0.0
      %1077 = vmatprep.subr.mxu0 0.0
      %1078 = vmatpush1.xpose.msra.mxu0 0.0
      %1079 = vmatprep.subr.mxu0 0.0
      %1080 = vmatpush1.xpose.msra.mxu0 0.0
      %1081 = vmatprep.subr.mxu0 0.0
      %1082 = vmatpush1.xpose.msra.mxu0 0.0
      %1083 = vmatprep.subr.mxu0 0.0
      %1084 = vmatpush1.xpose.msra.mxu0 0.0
      %1085 = vmatprep.subr.mxu0 0.0
      %1086 = vmatpush1.xpose.msra.mxu0 0.0
      %1087 = vmatprep.subr.mxu0 0.0
      %1088 = vmatpush1.xpose.msra.mxu0 0.0
      %1089 = vmatprep.subr.mxu0 0.0
      %1090 = vmatpush1.xpose.msra.mxu0 0.0
      %1091 = vmatprep.subr.mxu0 0.0
      %1092 = vmatpush1.xpose.msra.mxu0 0.0
      %1093 = vmatprep.subr.mxu0 0.0
      %1094 = vmatpush1.xpose.msra.mxu0 0.0
      %1095 = vmatprep.subr.mxu0 0.0
      %1096 = vmatpush1.xpose.msra.mxu0 0.0
      %1097 = vmatprep.subr.mxu0 0.0
      %1098 = vmatpush1.xpose.msra.mxu0 0.0
      %1099 = vmatprep.subr.mxu0 0.0
      %1100 = vmatpush1.xpose.msra.mxu0 0.0
      %1101 = vmatprep.subr.mxu0 0.0
      %1102 = vmatpush1.xpose.msra.mxu0 0.0
      %1103 = vmatprep.subr.mxu0 0.0
      %1104 = vmatpush1.xpose.msra.mxu0 0.0
      %1105 = vmatprep.subr.mxu0 0.0
      %1106 = vmatpush1.xpose.msra.mxu0 0.0
      %1107 = vmatprep.subr.mxu0 0.0
      %1108 = vmatpush1.xpose.msra.mxu0 0.0
      %1109 = vmatprep.subr.mxu0 0.0
      %1110 = vmatpush1.xpose.msra.mxu0 0.0
      %1111 = vmatprep.subr.mxu0 0.0
      %1112 = vmatpush1.xpose.msra.mxu0 0.0
      %1113 = vmatprep.subr.mxu0 0.0
      %1114 = vmatpush1.xpose.msra.mxu0 0.0
      %1115 = vmatprep.subr.mxu0 0.0
      %1116 = vmatpush1.xpose.msra.mxu0 0.0
      %1117 = vmatprep.subr.mxu0 0.0
      %1118 = vmatpush1.xpose.msra.mxu0 0.0
      %1119 = vmatprep.mubr.f32.mxu0 0.0
      %1120 = vmatmul.mubr.f32.gmra.mrb[0].mxu0 %v1051
      %v1121 = vpop.f32.mrb[0].mxu0
      %v1122 = vadd.f32 0.0, %v1121
      %v1123 = vpop.f32.mrb[0].mxu0
      %1124 = vdwg.mxu0
      %v1125 = vmul.f32 %v1122, 0.5
      %v1126 = vsel %vm793, %v1125, -inf
      %1127 = vmax.xlane.f32.xlu0 %v1126
      %v1128 = vpop.xlane.xlu0 %1127
      %v1129 = vsub.f32 %v1125, %v1128
      %v1130 = vmul.f32 %v1129, 1.442695
      %v1131 = vpow.pop %v1130
      %v1132 = vsel %vm793, %v1131, 0.0
      %1133 = vadd.xlane.f32.xlu0 %v1132
      %v1134 = vpop.xlane.xlu0 %1133
      %v1135 = vrcp.pop %v1134
      %v1136 = vmul.f32 %v1131, %v1135
      %1137 = vrot.lane.b32.xlu0 %v711, 56
      %v1138 = vpop.permute.xlu0 %1137
      %v1141 = vsel %vm793, %v1136, 0
      %1143 = vmatprep.subr.mxu0 0.0
      %1144 = vmatpush1.msra.mxu0 %v1138
      %1145 = vmatprep.subr.mxu0 0.0
      %1146 = vmatpush1.msra.mxu0 0.0
      %1147 = vmatprep.subr.mxu0 0.0
      %1148 = vmatpush1.msra.mxu0 0.0
      %1149 = vmatprep.subr.mxu0 0.0
      %1150 = vmatpush1.msra.mxu0 0.0
      %1151 = vmatprep.subr.mxu0 0.0
      %1152 = vmatpush1.msra.mxu0 0.0
      %1153 = vmatprep.subr.mxu0 0.0
      %1154 = vmatpush1.msra.mxu0 0.0
      %1155 = vmatprep.subr.mxu0 0.0
      %1156 = vmatpush1.msra.mxu0 0.0
      %1157 = vmatprep.subr.mxu0 0.0
      %1158 = vmatpush1.msra.mxu0 0.0
      %1159 = vmatprep.subr.mxu0 0.0
      %1160 = vmatpush1.msra.mxu0 0.0
      %1161 = vmatprep.subr.mxu0 0.0
      %1162 = vmatpush1.msra.mxu0 0.0
      %1163 = vmatprep.subr.mxu0 0.0
      %1164 = vmatpush1.msra.mxu0 0.0
      %1165 = vmatprep.subr.mxu0 0.0
      %1166 = vmatpush1.msra.mxu0 0.0
      %1167 = vmatprep.subr.mxu0 0.0
      %1168 = vmatpush1.msra.mxu0 0.0
      %1169 = vmatprep.subr.mxu0 0.0
      %1170 = vmatpush1.msra.mxu0 0.0
      %1171 = vmatprep.subr.mxu0 0.0
      %1172 = vmatpush1.msra.mxu0 0.0
      %1173 = vmatprep.subr.mxu0 0.0
      %1174 = vmatpush1.msra.mxu0 0.0
      %1175 = vmatprep.subr.mxu0 0.0
      %1176 = vmatpush1.msra.mxu0 0.0
      %1177 = vmatprep.subr.mxu0 0.0
      %1178 = vmatpush1.msra.mxu0 0.0
      %1179 = vmatprep.subr.mxu0 0.0
      %1180 = vmatpush1.msra.mxu0 0.0
      %1181 = vmatprep.subr.mxu0 0.0
      %1182 = vmatpush1.msra.mxu0 0.0
      %1183 = vmatprep.subr.mxu0 0.0
      %1184 = vmatpush1.msra.mxu0 0.0
      %1185 = vmatprep.subr.mxu0 0.0
      %1186 = vmatpush1.msra.mxu0 0.0
      %1187 = vmatprep.subr.mxu0 0.0
      %1188 = vmatpush1.msra.mxu0 0.0
      %1189 = vmatprep.subr.mxu0 0.0
      %1190 = vmatpush1.msra.mxu0 0.0
      %1191 = vmatprep.subr.mxu0 0.0
      %1192 = vmatpush1.msra.mxu0 0.0
      %1193 = vmatprep.subr.mxu0 0.0
      %1194 = vmatpush1.msra.mxu0 0.0
      %1195 = vmatprep.subr.mxu0 0.0
      %1196 = vmatpush1.msra.mxu0 0.0
      %1197 = vmatprep.subr.mxu0 0.0
      %1198 = vmatpush1.msra.mxu0 0.0
      %1199 = vmatprep.subr.mxu0 0.0
      %1200 = vmatpush1.msra.mxu0 0.0
      %1201 = vmatprep.subr.mxu0 0.0
      %1202 = vmatpush1.msra.mxu0 0.0
      %1203 = vmatprep.subr.mxu0 0.0
      %1204 = vmatpush1.msra.mxu0 0.0
      %1205 = vmatprep.subr.mxu0 0.0
      %1206 = vmatpush1.msra.mxu0 0.0
      %1207 = vmatprep.mubr.f32.mxu0 0.0
      %1208 = vmatmul.mubr.f32.gmra.mrb[0].mxu0 %v1141
      %v1209 = vpop.f32.mrb[0].mxu0
      %v1210 = vadd.f32 0.0, %v1209
      %v1211 = vpop.f32.mrb[0].mxu0
      %1212 = vdwg.mxu0
      %1213 = vrot.lane.b32.xlu0 %v711, 116
      %v1214 = vpop.permute.xlu0 %1213
      %1215 = vrot.lane.b32.xlu0 %v711, 84
      %v1216 = vpop.permute.xlu0 %1215
      %v1217 = vsel %vm717, %v1214, 0
      %v1219 = vsel %vm717, %v1216, 0
      %1221 = vmatprep.subr.mxu0 0.0
      %1222 = vmatpush1.xpose.msra.mxu0 %v1219
      %1223 = vmatprep.subr.mxu0 0.0
      %1224 = vmatpush1.xpose.msra.mxu0 0.0
      %1225 = vmatprep.subr.mxu0 0.0
      %1226 = vmatpush1.xpose.msra.mxu0 0.0
      %1227 = vmatprep.subr.mxu0 0.0
      %1228 = vmatpush1.xpose.msra.mxu0 0.0
      %1229 = vmatprep.subr.mxu0 0.0
      %1230 = vmatpush1.xpose.msra.mxu0 0.0
      %1231 = vmatprep.subr.mxu0 0.0
      %1232 = vmatpush1.xpose.msra.mxu0 0.0
      %1233 = vmatprep.subr.mxu0 0.0
      %1234 = vmatpush1.xpose.msra.mxu0 0.0
      %1235 = vmatprep.subr.mxu0 0.0
      %1236 = vmatpush1.xpose.msra.mxu0 0.0
      %1237 = vmatprep.subr.mxu0 0.0
      %1238 = vmatpush1.xpose.msra.mxu0 0.0
      %1239 = vmatprep.subr.mxu0 0.0
      %1240 = vmatpush1.xpose.msra.mxu0 0.0
      %1241 = vmatprep.subr.mxu0 0.0
      %1242 = vmatpush1.xpose.msra.mxu0 0.0
      %1243 = vmatprep.subr.mxu0 0.0
      %1244 = vmatpush1.xpose.msra.mxu0 0.0
      %1245 = vmatprep.subr.mxu0 0.0
      %1246 = vmatpush1.xpose.msra.mxu0 0.0
      %1247 = vmatprep.subr.mxu0 0.0
      %1248 = vmatpush1.xpose.msra.mxu0 0.0
      %1249 = vmatprep.subr.mxu0 0.0
      %1250 = vmatpush1.xpose.msra.mxu0 0.0
      %1251 = vmatprep.subr.mxu0 0.0
      %1252 = vmatpush1.xpose.msra.mxu0 0.0
      %1253 = vmatprep.subr.mxu0 0.0
      %1254 = vmatpush1.xpose.msra.mxu0 0.0
      %1255 = vmatprep.subr.mxu0 0.0
      %1256 = vmatpush1.xpose.msra.mxu0 0.0
      %1257 = vmatprep.subr.mxu0 0.0
      %1258 = vmatpush1.xpose.msra.mxu0 0.0
      %1259 = vmatprep.subr.mxu0 0.0
      %1260 = vmatpush1.xpose.msra.mxu0 0.0
      %1261 = vmatprep.subr.mxu0 0.0
      %1262 = vmatpush1.xpose.msra.mxu0 0.0
      %1263 = vmatprep.subr.mxu0 0.0
      %1264 = vmatpush1.xpose.msra.mxu0 0.0
      %1265 = vmatprep.subr.mxu0 0.0
      %1266 = vmatpush1.xpose.msra.mxu0 0.0
      %1267 = vmatprep.subr.mxu0 0.0
      %1268 = vmatpush1.xpose.msra.mxu0 0.0
      %1269 = vmatprep.subr.mxu0 0.0
      %1270 = vmatpush1.xpose.msra.mxu0 0.0
      %1271 = vmatprep.subr.mxu0 0.0
      %1272 = vmatpush1.xpose.msra.mxu0 0.0
      %1273 = vmatprep.subr.mxu0 0.0
      %1274 = vmatpush1.xpose.msra.mxu0 0.0
      %1275 = vmatprep.subr.mxu0 0.0
      %1276 = vmatpush1.xpose.msra.mxu0 0.0
      %1277 = vmatprep.subr.mxu0 0.0
      %1278 = vmatpush1.xpose.msra.mxu0 0.0
      %1279 = vmatprep.subr.mxu0 0.0
      %1280 = vmatpush1.xpose.msra.mxu0 0.0
      %1281 = vmatprep.subr.mxu0 0.0
      %1282 = vmatpush1.xpose.msra.mxu0 0.0
      %1283 = vmatprep.subr.mxu0 0.0
      %1284 = vmatpush1.xpose.msra.mxu0 0.0
      %1285 = vmatprep.mubr.f32.mxu0 0.0
      %1286 = vmatmul.mubr.f32.gmra.mrb[0].mxu0 %v1217
      %v1287 = vpop.f32.mrb[0].mxu0
      %v1288 = vadd.f32 0.0, %v1287
      %v1289 = vpop.f32.mrb[0].mxu0
      %1290 = vdwg.mxu0
      %v1291 = vmul.f32 %v1288, 0.5
      %v1292 = vsel %vm793, %v1291, -inf
      %1293 = vmax.xlane.f32.xlu0 %v1292
      %v1294 = vpop.xlane.xlu0 %1293
      %v1295 = vsub.f32 %v1291, %v1294
      %v1296 = vmul.f32 %v1295, 1.442695
      %v1297 = vpow.pop %v1296
      %v1298 = vsel %vm793, %v1297, 0.0
      %1299 = vadd.xlane.f32.xlu0 %v1298
      %v1300 = vpop.xlane.xlu0 %1299
      %v1301 = vrcp.pop %v1300
      %v1302 = vmul.f32 %v1297, %v1301
      %1303 = vrot.lane.b32.xlu0 %v711, 52
      %v1304 = vpop.permute.xlu0 %1303
      %v1307 = vsel %vm793, %v1302, 0
      %1309 = vmatprep.subr.mxu0 0.0
      %1310 = vmatpush1.msra.mxu0 %v1304
      %1311 = vmatprep.subr.mxu0 0.0
      %1312 = vmatpush1.msra.mxu0 0.0
      %1313 = vmatprep.subr.mxu0 0.0
      %1314 = vmatpush1.msra.mxu0 0.0
      %1315 = vmatprep.subr.mxu0 0.0
      %1316 = vmatpush1.msra.mxu0 0.0
      %1317 = vmatprep.subr.mxu0 0.0
      %1318 = vmatpush1.msra.mxu0 0.0
      %1319 = vmatprep.subr.mxu0 0.0
      %1320 = vmatpush1.msra.mxu0 0.0
      %1321 = vmatprep.subr.mxu0 0.0
      %1322 = vmatpush1.msra.mxu0 0.0
      %1323 = vmatprep.subr.mxu0 0.0
      %1324 = vmatpush1.msra.mxu0 0.0
      %1325 = vmatprep.subr.mxu0 0.0
      %1326 = vmatpush1.msra.mxu0 0.0
      %1327 = vmatprep.subr.mxu0 0.0
      %1328 = vmatpush1.msra.mxu0 0.0
      %1329 = vmatprep.subr.mxu0 0.0
      %1330 = vmatpush1.msra.mxu0 0.0
      %1331 = vmatprep.subr.mxu0 0.0
      %1332 = vmatpush1.msra.mxu0 0.0
      %1333 = vmatprep.subr.mxu0 0.0
      %1334 = vmatpush1.msra.mxu0 0.0
      %1335 = vmatprep.subr.mxu0 0.0
      %1336 = vmatpush1.msra.mxu0 0.0
      %1337 = vmatprep.subr.mxu0 0.0
      %1338 = vmatpush1.msra.mxu0 0.0
      %1339 = vmatprep.subr.mxu0 0.0
      %1340 = vmatpush1.msra.mxu0 0.0
      %1341 = vmatprep.subr.mxu0 0.0
      %1342 = vmatpush1.msra.mxu0 0.0
      %1343 = vmatprep.subr.mxu0 0.0
      %1344 = vmatpush1.msra.mxu0 0.0
      %1345 = vmatprep.subr.mxu0 0.0
      %1346 = vmatpush1.msra.mxu0 0.0
      %1347 = vmatprep.subr.mxu0 0.0
      %1348 = vmatpush1.msra.mxu0 0.0
      %1349 = vmatprep.subr.mxu0 0.0
      %1350 = vmatpush1.msra.mxu0 0.0
      %1351 = vmatprep.subr.mxu0 0.0
      %1352 = vmatpush1.msra.mxu0 0.0
      %1353 = vmatprep.subr.mxu0 0.0
      %1354 = vmatpush1.msra.mxu0 0.0
      %1355 = vmatprep.subr.mxu0 0.0
      %1356 = vmatpush1.msra.mxu0 0.0
      %1357 = vmatprep.subr.mxu0 0.0
      %1358 = vmatpush1.msra.mxu0 0.0
      %1359 = vmatprep.subr.mxu0 0.0
      %1360 = vmatpush1.msra.mxu0 0.0
      %1361 = vmatprep.subr.mxu0 0.0
      %1362 = vmatpush1.msra.mxu0 0.0
      %1363 = vmatprep.subr.mxu0 0.0
      %1364 = vmatpush1.msra.mxu0 0.0
      %1365 = vmatprep.subr.mxu0 0.0
      %1366 = vmatpush1.msra.mxu0 0.0
      %1367 = vmatprep.subr.mxu0 0.0
      %1368 = vmatpush1.msra.mxu0 0.0
      %1369 = vmatprep.subr.mxu0 0.0
      %1370 = vmatpush1.msra.mxu0 0.0
      %1371 = vmatprep.subr.mxu0 0.0
      %1372 = vmatpush1.msra.mxu0 0.0
      %1373 = vmatprep.mubr.f32.mxu0 0.0
      %1374 = vmatmul.mubr.f32.gmra.mrb[0].mxu0 %v1307
      %v1375 = vpop.f32.mrb[0].mxu0
      %v1376 = vadd.f32 0.0, %v1375
      %v1377 = vpop.f32.mrb[0].mxu0
      %1378 = vdwg.mxu0
      %1379 = vrot.lane.b32.xlu0 %v711, 112
      %v1380 = vpop.permute.xlu0 %1379
      %1381 = vrot.lane.b32.xlu0 %v711, 80
      %v1382 = vpop.permute.xlu0 %1381
      %v1383 = vsel %vm717, %v1380, 0
      %v1385 = vsel %vm717, %v1382, 0
      %1387 = vmatprep.subr.mxu0 0.0
      %1388 = vmatpush1.xpose.msra.mxu0 %v1385
      %1389 = vmatprep.subr.mxu0 0.0
      %1390 = vmatpush1.xpose.msra.mxu0 0.0
      %1391 = vmatprep.subr.mxu0 0.0
      %1392 = vmatpush1.xpose.msra.mxu0 0.0
      %1393 = vmatprep.subr.mxu0 0.0
      %1394 = vmatpush1.xpose.msra.mxu0 0.0
      %1395 = vmatprep.subr.mxu0 0.0
      %1396 = vmatpush1.xpose.msra.mxu0 0.0
      %1397 = vmatprep.subr.mxu0 0.0
      %1398 = vmatpush1.xpose.msra.mxu0 0.0
      %1399 = vmatprep.subr.mxu0 0.0
      %1400 = vmatpush1.xpose.msra.mxu0 0.0
      %1401 = vmatprep.subr.mxu0 0.0
      %1402 = vmatpush1.xpose.msra.mxu0 0.0
      %1403 = vmatprep.subr.mxu0 0.0
      %1404 = vmatpush1.xpose.msra.mxu0 0.0
      %1405 = vmatprep.subr.mxu0 0.0
      %1406 = vmatpush1.xpose.msra.mxu0 0.0
      %1407 = vmatprep.subr.mxu0 0.0
      %1408 = vmatpush1.xpose.msra.mxu0 0.0
      %1409 = vmatprep.subr.mxu0 0.0
      %1410 = vmatpush1.xpose.msra.mxu0 0.0
      %1411 = vmatprep.subr.mxu0 0.0
      %1412 = vmatpush1.xpose.msra.mxu0 0.0
      %1413 = vmatprep.subr.mxu0 0.0
      %1414 = vmatpush1.xpose.msra.mxu0 0.0
      %1415 = vmatprep.subr.mxu0 0.0
      %1416 = vmatpush1.xpose.msra.mxu0 0.0
      %1417 = vmatprep.subr.mxu0 0.0
      %1418 = vmatpush1.xpose.msra.mxu0 0.0
      %1419 = vmatprep.subr.mxu0 0.0
      %1420 = vmatpush1.xpose.msra.mxu0 0.0
      %1421 = vmatprep.subr.mxu0 0.0
      %1422 = vmatpush1.xpose.msra.mxu0 0.0
      %1423 = vmatprep.subr.mxu0 0.0
      %1424 = vmatpush1.xpose.msra.mxu0 0.0
      %1425 = vmatprep.subr.mxu0 0.0
      %1426 = vmatpush1.xpose.msra.mxu0 0.0
      %1427 = vmatprep.subr.mxu0 0.0
      %1428 = vmatpush1.xpose.msra.mxu0 0.0
      %1429 = vmatprep.subr.mxu0 0.0
      %1430 = vmatpush1.xpose.msra.mxu0 0.0
      %1431 = vmatprep.subr.mxu0 0.0
      %1432 = vmatpush1.xpose.msra.mxu0 0.0
      %1433 = vmatprep.subr.mxu0 0.0
      %1434 = vmatpush1.xpose.msra.mxu0 0.0
      %1435 = vmatprep.subr.mxu0 0.0
      %1436 = vmatpush1.xpose.msra.mxu0 0.0
      %1437 = vmatprep.subr.mxu0 0.0
      %1438 = vmatpush1.xpose.msra.mxu0 0.0
      %1439 = vmatprep.subr.mxu0 0.0
      %1440 = vmatpush1.xpose.msra.mxu0 0.0
      %1441 = vmatprep.subr.mxu0 0.0
      %1442 = vmatpush1.xpose.msra.mxu0 0.0
      %1443 = vmatprep.subr.mxu0 0.0
      %1444 = vmatpush1.xpose.msra.mxu0 0.0
      %1445 = vmatprep.subr.mxu0 0.0
      %1446 = vmatpush1.xpose.msra.mxu0 0.0
      %1447 = vmatprep.subr.mxu0 0.0
      %1448 = vmatpush1.xpose.msra.mxu0 0.0
      %1449 = vmatprep.subr.mxu0 0.0
      %1450 = vmatpush1.xpose.msra.mxu0 0.0
      %1451 = vmatprep.mubr.f32.mxu0 0.0
      %1452 = vmatmul.mubr.f32.gmra.mrb[0].mxu0 %v1383
      %v1453 = vpop.f32.mrb[0].mxu0
      %v1454 = vadd.f32 0.0, %v1453
      %v1455 = vpop.f32.mrb[0].mxu0
      %1456 = vdwg.mxu0
      %v1457 = vmul.f32 %v1454, 0.5
      %v1458 = vsel %vm793, %v1457, -inf
      %1459 = vmax.xlane.f32.xlu0 %v1458
      %v1460 = vpop.xlane.xlu0 %1459
      %v1461 = vsub.f32 %v1457, %v1460
      %v1462 = vmul.f32 %v1461, 1.442695
      %v1463 = vpow.pop %v1462
      %v1464 = vsel %vm793, %v1463, 0.0
      %1465 = vadd.xlane.f32.xlu0 %v1464
      %v1466 = vpop.xlane.xlu0 %1465
      %v1467 = vrcp.pop %v1466
      %v1468 = vmul.f32 %v1463, %v1467
      %1469 = vrot.lane.b32.xlu0 %v711, 48
      %v1470 = vpop.permute.xlu0 %1469
      %v1473 = vsel %vm793, %v1468, 0
      %1475 = vmatprep.subr.mxu0 0.0
      %1476 = vmatpush1.msra.mxu0 %v1470
      %1477 = vmatprep.subr.mxu0 0.0
      %1478 = vmatpush1.msra.mxu0 0.0
      %1479 = vmatprep.subr.mxu0 0.0
      %1480 = vmatpush1.msra.mxu0 0.0
      %1481 = vmatprep.subr.mxu0 0.0
      %1482 = vmatpush1.msra.mxu0 0.0
      %1483 = vmatprep.subr.mxu0 0.0
      %1484 = vmatpush1.msra.mxu0 0.0
      %1485 = vmatprep.subr.mxu0 0.0
      %1486 = vmatpush1.msra.mxu0 0.0
      %1487 = vmatprep.subr.mxu0 0.0
      %1488 = vmatpush1.msra.mxu0 0.0
      %1489 = vmatprep.subr.mxu0 0.0
      %1490 = vmatpush1.msra.mxu0 0.0
      %1491 = vmatprep.subr.mxu0 0.0
      %1492 = vmatpush1.msra.mxu0 0.0
      %1493 = vmatprep.subr.mxu0 0.0
      %1494 = vmatpush1.msra.mxu0 0.0
      %1495 = vmatprep.subr.mxu0 0.0
      %1496 = vmatpush1.msra.mxu0 0.0
      %1497 = vmatprep.subr.mxu0 0.0
      %1498 = vmatpush1.msra.mxu0 0.0
      %1499 = vmatprep.subr.mxu0 0.0
      %1500 = vmatpush1.msra.mxu0 0.0
      %1501 = vmatprep.subr.mxu0 0.0
      %1502 = vmatpush1.msra.mxu0 0.0
      %1503 = vmatprep.subr.mxu0 0.0
      %1504 = vmatpush1.msra.mxu0 0.0
      %1505 = vmatprep.subr.mxu0 0.0
      %1506 = vmatpush1.msra.mxu0 0.0
      %1507 = vmatprep.subr.mxu0 0.0
      %1508 = vmatpush1.msra.mxu0 0.0
      %1509 = vmatprep.subr.mxu0 0.0
      %1510 = vmatpush1.msra.mxu0 0.0
      %1511 = vmatprep.subr.mxu0 0.0
      %1512 = vmatpush1.msra.mxu0 0.0
      %1513 = vmatprep.subr.mxu0 0.0
      %1514 = vmatpush1.msra.mxu0 0.0
      %1515 = vmatprep.subr.mxu0 0.0
      %1516 = vmatpush1.msra.mxu0 0.0
      %1517 = vmatprep.subr.mxu0 0.0
      %1518 = vmatpush1.msra.mxu0 0.0
      %1519 = vmatprep.subr.mxu0 0.0
      %1520 = vmatpush1.msra.mxu0 0.0
      %1521 = vmatprep.subr.mxu0 0.0
      %1522 = vmatpush1.msra.mxu0 0.0
      %1523 = vmatprep.subr.mxu0 0.0
      %1524 = vmatpush1.msra.mxu0 0.0
      %1525 = vmatprep.subr.mxu0 0.0
      %1526 = vmatpush1.msra.mxu0 0.0
      %1527 = vmatprep.subr.mxu0 0.0
      %1528 = vmatpush1.msra.mxu0 0.0
      %1529 = vmatprep.subr.mxu0 0.0
      %1530 = vmatpush1.msra.mxu0 0.0
      %1531 = vmatprep.subr.mxu0 0.0
      %1532 = vmatpush1.msra.mxu0 0.0
      %1533 = vmatprep.subr.mxu0 0.0
      %1534 = vmatpush1.msra.mxu0 0.0
      %1535 = vmatprep.subr.mxu0 0.0
      %1536 = vmatpush1.msra.mxu0 0.0
      %1537 = vmatprep.subr.mxu0 0.0
      %1538 = vmatpush1.msra.mxu0 0.0
      %1539 = vmatprep.mubr.f32.mxu0 0.0
      %1540 = vmatmul.mubr.f32.gmra.mrb[0].mxu0 %v1473
      %v1541 = vpop.f32.mrb[0].mxu0
      %v1542 = vadd.f32 0.0, %v1541
      %v1543 = vpop.f32.mrb[0].mxu0
      %1544 = vdwg.mxu0
      %1545 = vrot.lane.b32.xlu0 %v711, 108
      %v1546 = vpop.permute.xlu0 %1545
      %1547 = vrot.lane.b32.xlu0 %v711, 76
      %v1548 = vpop.permute.xlu0 %1547
      %v1549 = vsel %vm717, %v1546, 0
      %v1551 = vsel %vm717, %v1548, 0
      %1553 = vmatprep.subr.mxu0 0.0
      %1554 = vmatpush1.xpose.msra.mxu0 %v1551
      %1555 = vmatprep.subr.mxu0 0.0
      %1556 = vmatpush1.xpose.msra.mxu0 0.0
      %1557 = vmatprep.subr.mxu0 0.0
      %1558 = vmatpush1.xpose.msra.mxu0 0.0
      %1559 = vmatprep.subr.mxu0 0.0
      %1560 = vmatpush1.xpose.msra.mxu0 0.0
      %1561 = vmatprep.subr.mxu0 0.0
      %1562 = vmatpush1.xpose.msra.mxu0 0.0
      %1563 = vmatprep.subr.mxu0 0.0
      %1564 = vmatpush1.xpose.msra.mxu0 0.0
      %1565 = vmatprep.subr.mxu0 0.0
      %1566 = vmatpush1.xpose.msra.mxu0 0.0
      %1567 = vmatprep.subr.mxu0 0.0
      %1568 = vmatpush1.xpose.msra.mxu0 0.0
      %1569 = vmatprep.subr.mxu0 0.0
      %1570 = vmatpush1.xpose.msra.mxu0 0.0
      %1571 = vmatprep.subr.mxu0 0.0
      %1572 = vmatpush1.xpose.msra.mxu0 0.0
      %1573 = vmatprep.subr.mxu0 0.0
      %1574 = vmatpush1.xpose.msra.mxu0 0.0
      %1575 = vmatprep.subr.mxu0 0.0
      %1576 = vmatpush1.xpose.msra.mxu0 0.0
      %1577 = vmatprep.subr.mxu0 0.0
      %1578 = vmatpush1.xpose.msra.mxu0 0.0
      %1579 = vmatprep.subr.mxu0 0.0
      %1580 = vmatpush1.xpose.msra.mxu0 0.0
      %1581 = vmatprep.subr.mxu0 0.0
      %1582 = vmatpush1.xpose.msra.mxu0 0.0
      %1583 = vmatprep.subr.mxu0 0.0
      %1584 = vmatpush1.xpose.msra.mxu0 0.0
      %1585 = vmatprep.subr.mxu0 0.0
      %1586 = vmatpush1.xpose.msra.mxu0 0.0
      %1587 = vmatprep.subr.mxu0 0.0
      %1588 = vmatpush1.xpose.msra.mxu0 0.0
      %1589 = vmatprep.subr.mxu0 0.0
      %1590 = vmatpush1.xpose.msra.mxu0 0.0
      %1591 = vmatprep.subr.mxu0 0.0
      %1592 = vmatpush1.xpose.msra.mxu0 0.0
      %1593 = vmatprep.subr.mxu0 0.0
      %1594 = vmatpush1.xpose.msra.mxu0 0.0
      %1595 = vmatprep.subr.mxu0 0.0
      %1596 = vmatpush1.xpose.msra.mxu0 0.0
      %1597 = vmatprep.subr.mxu0 0.0
      %1598 = vmatpush1.xpose.msra.mxu0 0.0
      %1599 = vmatprep.subr.mxu0 0.0
      %1600 = vmatpush1.xpose.msra.mxu0 0.0
      %1601 = vmatprep.subr.mxu0 0.0
      %1602 = vmatpush1.xpose.msra.mxu0 0.0
      %1603 = vmatprep.subr.mxu0 0.0
      %1604 = vmatpush1.xpose.msra.mxu0 0.0
      %1605 = vmatprep.subr.mxu0 0.0
      %1606 = vmatpush1.xpose.msra.mxu0 0.0
      %1607 = vmatprep.subr.mxu0 0.0
      %1608 = vmatpush1.xpose.msra.mxu0 0.0
      %1609 = vmatprep.subr.mxu0 0.0
      %1610 = vmatpush1.xpose.msra.mxu0 0.0
      %1611 = vmatprep.subr.mxu0 0.0
      %1612 = vmatpush1.xpose.msra.mxu0 0.0
      %1613 = vmatprep.subr.mxu0 0.0
      %1614 = vmatpush1.xpose.msra.mxu0 0.0
      %1615 = vmatprep.subr.mxu0 0.0
      %1616 = vmatpush1.xpose.msra.mxu0 0.0
      %1617 = vmatprep.mubr.f32.mxu0 0.0
      %1618 = vmatmul.mubr.f32.gmra.mrb[0].mxu0 %v1549
      %v1619 = vpop.f32.mrb[0].mxu0
      %v1620 = vadd.f32 0.0, %v1619
      %v1621 = vpop.f32.mrb[0].mxu0
      %1622 = vdwg.mxu0
      %v1623 = vmul.f32 %v1620, 0.5
      %v1624 = vsel %vm793, %v1623, -inf
      %1625 = vmax.xlane.f32.xlu0 %v1624
      %v1626 = vpop.xlane.xlu0 %1625
      %v1627 = vsub.f32 %v1623, %v1626
      %v1628 = vmul.f32 %v1627, 1.442695
      %v1629 = vpow.pop %v1628
      %v1630 = vsel %vm793, %v1629, 0.0
      %1631 = vadd.xlane.f32.xlu0 %v1630
      %v1632 = vpop.xlane.xlu0 %1631
      %v1633 = vrcp.pop %v1632
      %v1634 = vmul.f32 %v1629, %v1633
      %1635 = vrot.lane.b32.xlu0 %v711, 44
      %v1636 = vpop.permute.xlu0 %1635
      %v1639 = vsel %vm793, %v1634, 0
      %1641 = vmatprep.subr.mxu0 0.0
      %1642 = vmatpush1.msra.mxu0 %v1636
      %1643 = vmatprep.subr.mxu0 0.0
      %1644 = vmatpush1.msra.mxu0 0.0
      %1645 = vmatprep.subr.mxu0 0.0
      %1646 = vmatpush1.msra.mxu0 0.0
      %1647 = vmatprep.subr.mxu0 0.0
      %1648 = vmatpush1.msra.mxu0 0.0
      %1649 = vmatprep.subr.mxu0 0.0
      %1650 = vmatpush1.msra.mxu0 0.0
      %1651 = vmatprep.subr.mxu0 0.0
      %1652 = vmatpush1.msra.mxu0 0.0
      %1653 = vmatprep.subr.mxu0 0.0
      %1654 = vmatpush1.msra.mxu0 0.0
      %1655 = vmatprep.subr.mxu0 0.0
      %1656 = vmatpush1.msra.mxu0 0.0
      %1657 = vmatprep.subr.mxu0 0.0
      %1658 = vmatpush1.msra.mxu0 0.0
      %1659 = vmatprep.subr.mxu0 0.0
      %1660 = vmatpush1.msra.mxu0 0.0
      %1661 = vmatprep.subr.mxu0 0.0
      %1662 = vmatpush1.msra.mxu0 0.0
      %1663 = vmatprep.subr.mxu0 0.0
      %1664 = vmatpush1.msra.mxu0 0.0
      %1665 = vmatprep.subr.mxu0 0.0
      %1666 = vmatpush1.msra.mxu0 0.0
      %1667 = vmatprep.subr.mxu0 0.0
      %1668 = vmatpush1.msra.mxu0 0.0
      %1669 = vmatprep.subr.mxu0 0.0
      %1670 = vmatpush1.msra.mxu0 0.0
      %1671 = vmatprep.subr.mxu0 0.0
      %1672 = vmatpush1.msra.mxu0 0.0
      %1673 = vmatprep.subr.mxu0 0.0
      %1674 = vmatpush1.msra.mxu0 0.0
      %1675 = vmatprep.subr.mxu0 0.0
      %1676 = vmatpush1.msra.mxu0 0.0
      %1677 = vmatprep.subr.mxu0 0.0
      %1678 = vmatpush1.msra.mxu0 0.0
      %1679 = vmatprep.subr.mxu0 0.0
      %1680 = vmatpush1.msra.mxu0 0.0
      %1681 = vmatprep.subr.mxu0 0.0
      %1682 = vmatpush1.msra.mxu0 0.0
      %1683 = vmatprep.subr.mxu0 0.0
      %1684 = vmatpush1.msra.mxu0 0.0
      %1685 = vmatprep.subr.mxu0 0.0
      %1686 = vmatpush1.msra.mxu0 0.0
      %1687 = vmatprep.subr.mxu0 0.0
      %1688 = vmatpush1.msra.mxu0 0.0
      %1689 = vmatprep.subr.mxu0 0.0
      %1690 = vmatpush1.msra.mxu0 0.0
      %1691 = vmatprep.subr.mxu0 0.0
      %1692 = vmatpush1.msra.mxu0 0.0
      %1693 = vmatprep.subr.mxu0 0.0
      %1694 = vmatpush1.msra.mxu0 0.0
      %1695 = vmatprep.subr.mxu0 0.0
      %1696 = vmatpush1.msra.mxu0 0.0
      %1697 = vmatprep.subr.mxu0 0.0
      %1698 = vmatpush1.msra.mxu0 0.0
      %1699 = vmatprep.subr.mxu0 0.0
      %1700 = vmatpush1.msra.mxu0 0.0
      %1701 = vmatprep.subr.mxu0 0.0
      %1702 = vmatpush1.msra.mxu0 0.0
      %1703 = vmatprep.subr.mxu0 0.0
      %1704 = vmatpush1.msra.mxu0 0.0
      %1705 = vmatprep.mubr.f32.mxu0 0.0
      %1706 = vmatmul.mubr.f32.gmra.mrb[0].mxu0 %v1639
      %v1707 = vpop.f32.mrb[0].mxu0
      %v1708 = vadd.f32 0.0, %v1707
      %v1709 = vpop.f32.mrb[0].mxu0
      %1710 = vdwg.mxu0
      %1711 = vrot.lane.b32.xlu0 %v711, 104
      %v1712 = vpop.permute.xlu0 %1711
      %1713 = vrot.lane.b32.xlu0 %v711, 72
      %v1714 = vpop.permute.xlu0 %1713
      %v1715 = vsel %vm717, %v1712, 0
      %v1717 = vsel %vm717, %v1714, 0
      %1719 = vmatprep.subr.mxu0 0.0
      %1720 = vmatpush1.xpose.msra.mxu0 %v1717
      %1721 = vmatprep.subr.mxu0 0.0
      %1722 = vmatpush1.xpose.msra.mxu0 0.0
      %1723 = vmatprep.subr.mxu0 0.0
      %1724 = vmatpush1.xpose.msra.mxu0 0.0
      %1725 = vmatprep.subr.mxu0 0.0
      %1726 = vmatpush1.xpose.msra.mxu0 0.0
      %1727 = vmatprep.subr.mxu0 0.0
      %1728 = vmatpush1.xpose.msra.mxu0 0.0
      %1729 = vmatprep.subr.mxu0 0.0
      %1730 = vmatpush1.xpose.msra.mxu0 0.0
      %1731 = vmatprep.subr.mxu0 0.0
      %1732 = vmatpush1.xpose.msra.mxu0 0.0
      %1733 = vmatprep.subr.mxu0 0.0
      %1734 = vmatpush1.xpose.msra.mxu0 0.0
      %1735 = vmatprep.subr.mxu0 0.0
      %1736 = vmatpush1.xpose.msra.mxu0 0.0
      %1737 = vmatprep.subr.mxu0 0.0
      %1738 = vmatpush1.xpose.msra.mxu0 0.0
      %1739 = vmatprep.subr.mxu0 0.0
      %1740 = vmatpush1.xpose.msra.mxu0 0.0
      %1741 = vmatprep.subr.mxu0 0.0
      %1742 = vmatpush1.xpose.msra.mxu0 0.0
      %1743 = vmatprep.subr.mxu0 0.0
      %1744 = vmatpush1.xpose.msra.mxu0 0.0
      %1745 = vmatprep.subr.mxu0 0.0
      %1746 = vmatpush1.xpose.msra.mxu0 0.0
      %1747 = vmatprep.subr.mxu0 0.0
      %1748 = vmatpush1.xpose.msra.mxu0 0.0
      %1749 = vmatprep.subr.mxu0 0.0
      %1750 = vmatpush1.xpose.msra.mxu0 0.0
      %1751 = vmatprep.subr.mxu0 0.0
      %1752 = vmatpush1.xpose.msra.mxu0 0.0
      %1753 = vmatprep.subr.mxu0 0.0
      %1754 = vmatpush1.xpose.msra.mxu0 0.0
      %1755 = vmatprep.subr.mxu0 0.0
      %1756 = vmatpush1.xpose.msra.mxu0 0.0
      %1757 = vmatprep.subr.mxu0 0.0
      %1758 = vmatpush1.xpose.msra.mxu0 0.0
      %1759 = vmatprep.subr.mxu0 0.0
      %1760 = vmatpush1.xpose.msra.mxu0 0.0
      %1761 = vmatprep.subr.mxu0 0.0
      %1762 = vmatpush1.xpose.msra.mxu0 0.0
      %1763 = vmatprep.subr.mxu0 0.0
      %1764 = vmatpush1.xpose.msra.mxu0 0.0
      %1765 = vmatprep.subr.mxu0 0.0
      %1766 = vmatpush1.xpose.msra.mxu0 0.0
      %1767 = vmatprep.subr.mxu0 0.0
      %1768 = vmatpush1.xpose.msra.mxu0 0.0
      %1769 = vmatprep.subr.mxu0 0.0
      %1770 = vmatpush1.xpose.msra.mxu0 0.0
      %1771 = vmatprep.subr.mxu0 0.0
      %1772 = vmatpush1.xpose.msra.mxu0 0.0
      %1773 = vmatprep.subr.mxu0 0.0
      %1774 = vmatpush1.xpose.msra.mxu0 0.0
      %1775 = vmatprep.subr.mxu0 0.0
      %1776 = vmatpush1.xpose.msra.mxu0 0.0
      %1777 = vmatprep.subr.mxu0 0.0
      %1778 = vmatpush1.xpose.msra.mxu0 0.0
      %1779 = vmatprep.subr.mxu0 0.0
      %1780 = vmatpush1.xpose.msra.mxu0 0.0
      %1781 = vmatprep.subr.mxu0 0.0
      %1782 = vmatpush1.xpose.msra.mxu0 0.0
      %1783 = vmatprep.mubr.f32.mxu0 0.0
      %1784 = vmatmul.mubr.f32.gmra.mrb[0].mxu0 %v1715
      %v1785 = vpop.f32.mrb[0].mxu0
      %v1786 = vadd.f32 0.0, %v1785
      %v1787 = vpop.f32.mrb[0].mxu0
      %1788 = vdwg.mxu0
      %v1789 = vmul.f32 %v1786, 0.5
      %v1790 = vsel %vm793, %v1789, -inf
      %1791 = vmax.xlane.f32.xlu0 %v1790
      %v1792 = vpop.xlane.xlu0 %1791
      %v1793 = vsub.f32 %v1789, %v1792
      %v1794 = vmul.f32 %v1793, 1.442695
      %v1795 = vpow.pop %v1794
      %v1796 = vsel %vm793, %v1795, 0.0
      %1797 = vadd.xlane.f32.xlu0 %v1796
      %v1798 = vpop.xlane.xlu0 %1797
      %v1799 = vrcp.pop %v1798
      %v1800 = vmul.f32 %v1795, %v1799
      %1801 = vrot.lane.b32.xlu0 %v711, 40
      %v1802 = vpop.permute.xlu0 %1801
      %v1805 = vsel %vm793, %v1800, 0
      %1807 = vmatprep.subr.mxu0 0.0
      %1808 = vmatpush1.msra.mxu0 %v1802
      %1809 = vmatprep.subr.mxu0 0.0
      %1810 = vmatpush1.msra.mxu0 0.0
      %1811 = vmatprep.subr.mxu0 0.0
      %1812 = vmatpush1.msra.mxu0 0.0
      %1813 = vmatprep.subr.mxu0 0.0
      %1814 = vmatpush1.msra.mxu0 0.0
      %1815 = vmatprep.subr.mxu0 0.0
      %1816 = vmatpush1.msra.mxu0 0.0
      %1817 = vmatprep.subr.mxu0 0.0
      %1818 = vmatpush1.msra.mxu0 0.0
      %1819 = vmatprep.subr.mxu0 0.0
      %1820 = vmatpush1.msra.mxu0 0.0
      %1821 = vmatprep.subr.mxu0 0.0
      %1822 = vmatpush1.msra.mxu0 0.0
      %1823 = vmatprep.subr.mxu0 0.0
      %1824 = vmatpush1.msra.mxu0 0.0
      %1825 = vmatprep.subr.mxu0 0.0
      %1826 = vmatpush1.msra.mxu0 0.0
      %1827 = vmatprep.subr.mxu0 0.0
      %1828 = vmatpush1.msra.mxu0 0.0
      %1829 = vmatprep.subr.mxu0 0.0
      %1830 = vmatpush1.msra.mxu0 0.0
      %1831 = vmatprep.subr.mxu0 0.0
      %1832 = vmatpush1.msra.mxu0 0.0
      %1833 = vmatprep.subr.mxu0 0.0
      %1834 = vmatpush1.msra.mxu0 0.0
      %1835 = vmatprep.subr.mxu0 0.0
      %1836 = vmatpush1.msra.mxu0 0.0
      %1837 = vmatprep.subr.mxu0 0.0
      %1838 = vmatpush1.msra.mxu0 0.0
      %1839 = vmatprep.subr.mxu0 0.0
      %1840 = vmatpush1.msra.mxu0 0.0
      %1841 = vmatprep.subr.mxu0 0.0
      %1842 = vmatpush1.msra.mxu0 0.0
      %1843 = vmatprep.subr.mxu0 0.0
      %1844 = vmatpush1.msra.mxu0 0.0
      %1845 = vmatprep.subr.mxu0 0.0
      %1846 = vmatpush1.msra.mxu0 0.0
      %1847 = vmatprep.subr.mxu0 0.0
      %1848 = vmatpush1.msra.mxu0 0.0
      %1849 = vmatprep.subr.mxu0 0.0
      %1850 = vmatpush1.msra.mxu0 0.0
      %1851 = vmatprep.subr.mxu0 0.0
      %1852 = vmatpush1.msra.mxu0 0.0
      %1853 = vmatprep.subr.mxu0 0.0
      %1854 = vmatpush1.msra.mxu0 0.0
      %1855 = vmatprep.subr.mxu0 0.0
      %1856 = vmatpush1.msra.mxu0 0.0
      %1857 = vmatprep.subr.mxu0 0.0
      %1858 = vmatpush1.msra.mxu0 0.0
      %1859 = vmatprep.subr.mxu0 0.0
      %1860 = vmatpush1.msra.mxu0 0.0
      %1861 = vmatprep.subr.mxu0 0.0
      %1862 = vmatpush1.msra.mxu0 0.0
      %1863 = vmatprep.subr.mxu0 0.0
      %1864 = vmatpush1.msra.mxu0 0.0
      %1865 = vmatprep.subr.mxu0 0.0
      %1866 = vmatpush1.msra.mxu0 0.0
      %1867 = vmatprep.subr.mxu0 0.0
      %1868 = vmatpush1.msra.mxu0 0.0
      %1869 = vmatprep.subr.mxu0 0.0
      %1870 = vmatpush1.msra.mxu0 0.0
      %1871 = vmatprep.mubr.f32.mxu0 0.0
      %1872 = vmatmul.mubr.f32.gmra.mrb[0].mxu0 %v1805
      %v1873 = vpop.f32.mrb[0].mxu0
      %v1874 = vadd.f32 0.0, %v1873
      %v1875 = vpop.f32.mrb[0].mxu0
      %1876 = vdwg.mxu0
      %1877 = vrot.lane.b32.xlu0 %v711, 100
      %v1878 = vpop.permute.xlu0 %1877
      %1879 = vrot.lane.b32.xlu0 %v711, 68
      %v1880 = vpop.permute.xlu0 %1879
      %v1881 = vsel %vm717, %v1878, 0
      %v1883 = vsel %vm717, %v1880, 0
      %1885 = vmatprep.subr.mxu0 0.0
      %1886 = vmatpush1.xpose.msra.mxu0 %v1883
      %1887 = vmatprep.subr.mxu0 0.0
      %1888 = vmatpush1.xpose.msra.mxu0 0.0
      %1889 = vmatprep.subr.mxu0 0.0
      %1890 = vmatpush1.xpose.msra.mxu0 0.0
      %1891 = vmatprep.subr.mxu0 0.0
      %1892 = vmatpush1.xpose.msra.mxu0 0.0
      %1893 = vmatprep.subr.mxu0 0.0
      %1894 = vmatpush1.xpose.msra.mxu0 0.0
      %1895 = vmatprep.subr.mxu0 0.0
      %1896 = vmatpush1.xpose.msra.mxu0 0.0
      %1897 = vmatprep.subr.mxu0 0.0
      %1898 = vmatpush1.xpose.msra.mxu0 0.0
      %1899 = vmatprep.subr.mxu0 0.0
      %1900 = vmatpush1.xpose.msra.mxu0 0.0
      %1901 = vmatprep.subr.mxu0 0.0
      %1902 = vmatpush1.xpose.msra.mxu0 0.0
      %1903 = vmatprep.subr.mxu0 0.0
      %1904 = vmatpush1.xpose.msra.mxu0 0.0
      %1905 = vmatprep.subr.mxu0 0.0
      %1906 = vmatpush1.xpose.msra.mxu0 0.0
      %1907 = vmatprep.subr.mxu0 0.0
      %1908 = vmatpush1.xpose.msra.mxu0 0.0
      %1909 = vmatprep.subr.mxu0 0.0
      %1910 = vmatpush1.xpose.msra.mxu0 0.0
      %1911 = vmatprep.subr.mxu0 0.0
      %1912 = vmatpush1.xpose.msra.mxu0 0.0
      %1913 = vmatprep.subr.mxu0 0.0
      %1914 = vmatpush1.xpose.msra.mxu0 0.0
      %1915 = vmatprep.subr.mxu0 0.0
      %1916 = vmatpush1.xpose.msra.mxu0 0.0
      %1917 = vmatprep.subr.mxu0 0.0
      %1918 = vmatpush1.xpose.msra.mxu0 0.0
      %1919 = vmatprep.subr.mxu0 0.0
      %1920 = vmatpush1.xpose.msra.mxu0 0.0
      %1921 = vmatprep.subr.mxu0 0.0
      %1922 = vmatpush1.xpose.msra.mxu0 0.0
      %1923 = vmatprep.subr.mxu0 0.0
      %1924 = vmatpush1.xpose.msra.mxu0 0.0
      %1925 = vmatprep.subr.mxu0 0.0
      %1926 = vmatpush1.xpose.msra.mxu0 0.0
      %1927 = vmatprep.subr.mxu0 0.0
      %1928 = vmatpush1.xpose.msra.mxu0 0.0
      %1929 = vmatprep.subr.mxu0 0.0
      %1930 = vmatpush1.xpose.msra.mxu0 0.0
      %1931 = vmatprep.subr.mxu0 0.0
      %1932 = vmatpush1.xpose.msra.mxu0 0.0
      %1933 = vmatprep.subr.mxu0 0.0
      %1934 = vmatpush1.xpose.msra.mxu0 0.0
      %1935 = vmatprep.subr.mxu0 0.0
      %1936 = vmatpush1.xpose.msra.mxu0 0.0
      %1937 = vmatprep.subr.mxu0 0.0
      %1938 = vmatpush1.xpose.msra.mxu0 0.0
      %1939 = vmatprep.subr.mxu0 0.0
      %1940 = vmatpush1.xpose.msra.mxu0 0.0
      %1941 = vmatprep.subr.mxu0 0.0
      %1942 = vmatpush1.xpose.msra.mxu0 0.0
      %1943 = vmatprep.subr.mxu0 0.0
      %1944 = vmatpush1.xpose.msra.mxu0 0.0
      %1945 = vmatprep.subr.mxu0 0.0
      %1946 = vmatpush1.xpose.msra.mxu0 0.0
      %1947 = vmatprep.subr.mxu0 0.0
      %1948 = vmatpush1.xpose.msra.mxu0 0.0
      %1949 = vmatprep.mubr.f32.mxu0 0.0
      %1950 = vmatmul.mubr.f32.gmra.mrb[0].mxu0 %v1881
      %v1951 = vpop.f32.mrb[0].mxu0
      %v1952 = vadd.f32 0.0, %v1951
      %v1953 = vpop.f32.mrb[0].mxu0
      %1954 = vdwg.mxu0
      %v1955 = vmul.f32 %v1952, 0.5
      %v1956 = vsel %vm793, %v1955, -inf
      %1957 = vmax.xlane.f32.xlu0 %v1956
      %v1958 = vpop.xlane.xlu0 %1957
      %v1959 = vsub.f32 %v1955, %v1958
      %v1960 = vmul.f32 %v1959, 1.442695
      %v1961 = vpow.pop %v1960
      %v1962 = vsel %vm793, %v1961, 0.0
      %1963 = vadd.xlane.f32.xlu0 %v1962
      %v1964 = vpop.xlane.xlu0 %1963
      %v1965 = vrcp.pop %v1964
      %v1966 = vmul.f32 %v1961, %v1965
      %1967 = vrot.lane.b32.xlu0 %v711, 36
      %v1968 = vpop.permute.xlu0 %1967
      %v1971 = vsel %vm793, %v1966, 0
      %1973 = vmatprep.subr.mxu0 0.0
      %1974 = vmatpush1.msra.mxu0 %v1968
      %1975 = vmatprep.subr.mxu0 0.0
      %1976 = vmatpush1.msra.mxu0 0.0
      %1977 = vmatprep.subr.mxu0 0.0
      %1978 = vmatpush1.msra.mxu0 0.0
      %1979 = vmatprep.subr.mxu0 0.0
      %1980 = vmatpush1.msra.mxu0 0.0
      %1981 = vmatprep.subr.mxu0 0.0
      %1982 = vmatpush1.msra.mxu0 0.0
      %1983 = vmatprep.subr.mxu0 0.0
      %1984 = vmatpush1.msra.mxu0 0.0
      %1985 = vmatprep.subr.mxu0 0.0
      %1986 = vmatpush1.msra.mxu0 0.0
      %1987 = vmatprep.subr.mxu0 0.0
      %1988 = vmatpush1.msra.mxu0 0.0
      %1989 = vmatprep.subr.mxu0 0.0
      %1990 = vmatpush1.msra.mxu0 0.0
      %1991 = vmatprep.subr.mxu0 0.0
      %1992 = vmatpush1.msra.mxu0 0.0
      %1993 = vmatprep.subr.mxu0 0.0
      %1994 = vmatpush1.msra.mxu0 0.0
      %1995 = vmatprep.subr.mxu0 0.0
      %1996 = vmatpush1.msra.mxu0 0.0
      %1997 = vmatprep.subr.mxu0 0.0
      %1998 = vmatpush1.msra.mxu0 0.0
      %1999 = vmatprep.subr.mxu0 0.0
      %2000 = vmatpush1.msra.mxu0 0.0
      %2001 = vmatprep.subr.mxu0 0.0
      %2002 = vmatpush1.msra.mxu0 0.0
      %2003 = vmatprep.subr.mxu0 0.0
      %2004 = vmatpush1.msra.mxu0 0.0
      %2005 = vmatprep.subr.mxu0 0.0
      %2006 = vmatpush1.msra.mxu0 0.0
      %2007 = vmatprep.subr.mxu0 0.0
      %2008 = vmatpush1.msra.mxu0 0.0
      %2009 = vmatprep.subr.mxu0 0.0
      %2010 = vmatpush1.msra.mxu0 0.0
      %2011 = vmatprep.subr.mxu0 0.0
      %2012 = vmatpush1.msra.mxu0 0.0
      %2013 = vmatprep.subr.mxu0 0.0
      %2014 = vmatpush1.msra.mxu0 0.0
      %2015 = vmatprep.subr.mxu0 0.0
      %2016 = vmatpush1.msra.mxu0 0.0
      %2017 = vmatprep.subr.mxu0 0.0
      %2018 = vmatpush1.msra.mxu0 0.0
      %2019 = vmatprep.subr.mxu0 0.0
      %2020 = vmatpush1.msra.mxu0 0.0
      %2021 = vmatprep.subr.mxu0 0.0
      %2022 = vmatpush1.msra.mxu0 0.0
      %2023 = vmatprep.subr.mxu0 0.0
      %2024 = vmatpush1.msra.mxu0 0.0
      %2025 = vmatprep.subr.mxu0 0.0
      %2026 = vmatpush1.msra.mxu0 0.0
      %2027 = vmatprep.subr.mxu0 0.0
      %2028 = vmatpush1.msra.mxu0 0.0
      %2029 = vmatprep.subr.mxu0 0.0
      %2030 = vmatpush1.msra.mxu0 0.0
      %2031 = vmatprep.subr.mxu0 0.0
      %2032 = vmatpush1.msra.mxu0 0.0
      %2033 = vmatprep.subr.mxu0 0.0
      %2034 = vmatpush1.msra.mxu0 0.0
      %2035 = vmatprep.subr.mxu0 0.0
      %2036 = vmatpush1.msra.mxu0 0.0
      %2037 = vmatprep.mubr.f32.mxu0 0.0
      %2038 = vmatmul.mubr.f32.gmra.mrb[0].mxu0 %v1971
      %v2039 = vpop.f32.mrb[0].mxu0
      %v2040 = vadd.f32 0.0, %v2039
      %v2041 = vpop.f32.mrb[0].mxu0
      %2042 = vdwg.mxu0
      %2044 = vrot.lane.b32.xlu0 %v1044, 4
      %v2045 = vpop.permute.xlu0 %2044
      %2048 = vrot.lane.b32.xlu0 %v1210, 8
      %v2049 = vpop.permute.xlu0 %2048
      %2052 = vrot.lane.b32.xlu0 %v1376, 12
      %v2053 = vpop.permute.xlu0 %2052
      %2056 = vrot.lane.b32.xlu0 %v1542, 16
      %v2057 = vpop.permute.xlu0 %2056
      %2060 = vrot.lane.b32.xlu0 %v1708, 20
      %v2061 = vpop.permute.xlu0 %2060
      %2064 = vrot.lane.b32.xlu0 %v1874, 24
      %v2065 = vpop.permute.xlu0 %2064
      %2068 = vrot.lane.b32.xlu0 %v2040, 28
      %v2069 = vpop.permute.xlu0 %2068
      %v2071 = vsel %vm717, %v878, %v2045
      %v2072 = vsel %vm793, %v2071, %v2049
      %vm2073 = vcmask 97280
      %v2074 = vsel %vm2073, %v2072, %v2053
      %v2075 = vsel %vm555, %v2074, %v2057
      %vm2076 = vcmask 162816
      %v2077 = vsel %vm2076, %v2075, %v2061
      %vm2078 = vcmask 195584
      %v2079 = vsel %vm2078, %v2077, %v2065
      %vm2080 = vcmask 228352
      %v2081 = vsel %vm2080, %v2079, %v2069
      %2082 = vst.msk [vmem:[#allocation2] sm:$0xff] %vm640, %v2081
      %v2083 = vld [vmem:[#allocation2] sm:$0xff]
      %v2084 = vld [vmem:[%s5] sm:$0xff]
      %v2085 = vld [vmem:[%s5 + $0x8] sm:$0xff]
      %v2086 = vld [vmem:[%s5 + $0x10] sm:$0xff]
      %v2087 = vld [vmem:[%s5 + $0x18] sm:$0xff]
      %v2088 = vld [vmem:[%s6] sm:$0x1]
      %v2090 = vlaneseq
      %v2091 = vshrl.u32 %v2090, 7
      %v2092 = vsub.s32 0, %v2091
      %v2093 = vrot.slane %v2088, %v2092
      %v2096 = vsel %vm640, %v2083, 0
      %2098 = vmatprep.subr.mxu0 0.0
      %2099 = vmatpush1.msra.mxu0 %v2084
      %2100 = vmatprep.subr.mxu0 0.0
      %2101 = vmatpush1.msra.mxu0 %v2085
      %2102 = vmatprep.subr.mxu0 0.0
      %2103 = vmatpush1.msra.mxu0 %v2086
      %2104 = vmatprep.subr.mxu0 0.0
      %2105 = vmatpush1.msra.mxu0 %v2087
      %2106 = vmatprep.subr.mxu0 0.0
      %2107 = vmatpush1.msra.mxu0 0.0
      %2108 = vmatprep.subr.mxu0 0.0
      %2109 = vmatpush1.msra.mxu0 0.0
      %2110 = vmatprep.subr.mxu0 0.0
      %2111 = vmatpush1.msra.mxu0 0.0
      %2112 = vmatprep.subr.mxu0 0.0
      %2113 = vmatpush1.msra.mxu0 0.0
      %2114 = vmatprep.subr.mxu0 0.0
      %2115 = vmatpush1.msra.mxu0 0.0
      %2116 = vmatprep.subr.mxu0 0.0
      %2117 = vmatpush1.msra.mxu0 0.0
      %2118 = vmatprep.subr.mxu0 0.0
      %2119 = vmatpush1.msra.mxu0 0.0
      %2120 = vmatprep.subr.mxu0 0.0
      %2121 = vmatpush1.msra.mxu0 0.0
      %2122 = vmatprep.subr.mxu0 0.0
      %2123 = vmatpush1.msra.mxu0 0.0
      %2124 = vmatprep.subr.mxu0 0.0
      %2125 = vmatpush1.msra.mxu0 0.0
      %2126 = vmatprep.subr.mxu0 0.0
      %2127 = vmatpush1.msra.mxu0 0.0
      %2128 = vmatprep.subr.mxu0 0.0
      %2129 = vmatpush1.msra.mxu0 0.0
      %2130 = vmatprep.subr.mxu0 0.0
      %2131 = vmatpush1.msra.mxu0 0.0
      %2132 = vmatprep.subr.mxu0 0.0
      %2133 = vmatpush1.msra.mxu0 0.0
      %2134 = vmatprep.subr.mxu0 0.0
      %2135 = vmatpush1.msra.mxu0 0.0
      %2136 = vmatprep.subr.mxu0 0.0
      %2137 = vmatpush1.msra.mxu0 0.0
      %2138 = vmatprep.subr.mxu0 0.0
      %2139 = vmatpush1.msra.mxu0 0.0
      %2140 = vmatprep.subr.mxu0 0.0
      %2141 = vmatpush1.msra.mxu0 0.0
      %2142 = vmatprep.subr.mxu0 0.0
      %2143 = vmatpush1.msra.mxu0 0.0
      %2144 = vmatprep.subr.mxu0 0.0
      %2145 = vmatpush1.msra.mxu0 0.0
      %2146 = vmatprep.subr.mxu0 0.0
      %2147 = vmatpush1.msra.mxu0 0.0
      %2148 = vmatprep.subr.mxu0 0.0
      %2149 = vmatpush1.msra.mxu0 0.0
      %2150 = vmatprep.subr.mxu0 0.0
      %2151 = vmatpush1.msra.mxu0 0.0
      %2152 = vmatprep.subr.mxu0 0.0
      %2153 = vmatpush1.msra.mxu0 0.0
      %2154 = vmatprep.subr.mxu0 0.0
      %2155 = vmatpush1.msra.mxu0 0.0
      %2156 = vmatprep.subr.mxu0 0.0
      %2157 = vmatpush1.msra.mxu0 0.0
      %2158 = vmatprep.subr.mxu0 0.0
      %2159 = vmatpush1.msra.mxu0 0.0
      %2160 = vmatprep.subr.mxu0 0.0
      %2161 = vmatpush1.msra.mxu0 0.0
      %2162 = vmatprep.mubr.f32.mxu0 0.0
      %2163 = vmatmul.mubr.f32.gmra.mrb[0].mxu0 %v2096
      %v2164 = vpop.f32.mrb[0].mxu0
      %v2165 = vadd.f32 %v2093, %v2164
      %v2166 = vpop.f32.mrb[0].mxu0
      %2167 = vdwg.mxu0
      %v2168 = vadd.f32 %v626, %v2165
      %v2169 = vld [vmem:[%s7] sm:$0x1]
      %v2170 = vld [vmem:[%s8] sm:$0x1]
      %v2171 = vsel %vm640, %v2168, 0.0
      %2172 = vadd.xlane.f32.xlu0 %v2171
      %v2173 = vpop.xlane.xlu0 %2172
      %v2174 = vrcp.pop 32.0
      %v2175 = vmul.f32 %v2173, %v2174
      %v2176 = vsub.f32 %v2168, %v2175
      %v2177 = vmul.f32 %v2176, %v2176
      %v2178 = vsel %vm640, %v2177, 0.0
      %2179 = vadd.xlane.f32.xlu0 %v2178
      %v2180 = vpop.xlane.xlu0 %2179
      %v2181 = vmul.f32 %v2180, %v2174
      %v2182 = vadd.f32 %v2181, 1e-05
      %v2183 = vrsqrt.pop %v2182
      %v2184 = vmul.f32 %v2176, %v2183
      %v2186 = vlaneseq
      %v2187 = vshrl.u32 %v2186, 7
      %v2188 = vsub.s32 0, %v2187
      %v2189 = vrot.slane %v2169, %v2188
      %v2191 = vmul.f32 %v2184, %v2189
      %v2193 = vlaneseq
      %v2194 = vshrl.u32 %v2193, 7
      %v2195 = vsub.s32 0, %v2194
      %v2196 = vrot.slane %v2170, %v2195
      %v2198 = vadd.f32 %v2191, %v2196
      %v2199 = vpack.c.bf16 %v2198, %v2198
      %v2200 = vld [vmem:[%s9] sm:$0xff]
      %v2201 = vld [vmem:[%s9 + $0x8] sm:$0xff]
      %v2202 = vld [vmem:[%s9 + $0x10] sm:$0xff]
      %v2203 = vld [vmem:[%s9 + $0x18] sm:$0xff]
      %v2204 = vld [vmem:[%s9 + $0x20] sm:$0xff]
      %v2205 = vld [vmem:[%s9 + $0x28] sm:$0xff]
      %v2206 = vld [vmem:[%s9 + $0x30] sm:$0xff]
      %v2207 = vld [vmem:[%s9 + $0x38] sm:$0xff]
      %v2208 = vld [vmem:[%s9 + $0x40] sm:$0xff]
      %v2209 = vld [vmem:[%s9 + $0x48] sm:$0xff]
      %v2210 = vld [vmem:[%s9 + $0x50] sm:$0xff]
      %v2211 = vld [vmem:[%s9 + $0x58] sm:$0xff]
      %v2212 = vld [vmem:[%s9 + $0x60] sm:$0xff]
      %v2213 = vld [vmem:[%s9 + $0x68] sm:$0xff]
      %v2214 = vld [vmem:[%s9 + $0x70] sm:$0xff]
      %v2215 = vld [vmem:[%s9 + $0x78] sm:$0xff]
      %v2216 = vld [vmem:[%s9 + $0x80] sm:$0xff]
      %v2217 = vld [vmem:[%s9 + $0x88] sm:$0xff]
      %v2218 = vld [vmem:[%s9 + $0x90] sm:$0xff]
      %v2219 = vld [vmem:[%s9 + $0x98] sm:$0xff]
      %v2220 = vld [vmem:[%s9 + $0xa0] sm:$0xff]
      %v2221 = vld [vmem:[%s9 + $0xa8] sm:$0xff]
      %v2222 = vld [vmem:[%s9 + $0xb0] sm:$0xff]
      %v2223 = vld [vmem:[%s9 + $0xb8] sm:$0xff]
      %v2224 = vld [vmem:[%s9 + $0xc0] sm:$0xff]
      %v2225 = vld [vmem:[%s9 + $0xc8] sm:$0xff]
      %v2226 = vld [vmem:[%s9 + $0xd0] sm:$0xff]
      %v2227 = vld [vmem:[%s9 + $0xd8] sm:$0xff]
      %v2228 = vld [vmem:[%s9 + $0xe0] sm:$0xff]
      %v2229 = vld [vmem:[%s9 + $0xe8] sm:$0xff]
      %v2230 = vld [vmem:[%s9 + $0xf0] sm:$0xff]
      %v2231 = vld [vmem:[%s9 + $0xf8] sm:$0xff]
      %v2232 = vld [vmem:[%s10] sm:$0xff]
      %v2233 = vld [vmem:[%s10 + $0x8] sm:$0xff]
      %v2236 = vlaneseq
      %v2237 = vshrl.u32 %v2236, 7
      %v2238 = vsub.s32 0, %v2237
      %v2239 = vrot.slane %v2232, %v2238
      %v2240 = vlaneseq
      %v2241 = vshrl.u32 %v2240, 7
      %v2242 = vsub.s32 1, %v2241
      %v2243 = vrot.slane %v2232, %v2242
      %v2244 = vlaneseq
      %v2245 = vshrl.u32 %v2244, 7
      %v2246 = vsub.s32 2, %v2245
      %v2247 = vrot.slane %v2232, %v2246
      %v2248 = vlaneseq
      %v2249 = vshrl.u32 %v2248, 7
      %v2250 = vsub.s32 3, %v2249
      %v2251 = vrot.slane %v2232, %v2250
      %v2252 = vlaneseq
      %v2253 = vshrl.u32 %v2252, 7
      %v2254 = vsub.s32 4, %v2253
      %v2255 = vrot.slane %v2232, %v2254
      %v2256 = vlaneseq
      %v2257 = vshrl.u32 %v2256, 7
      %v2258 = vsub.s32 5, %v2257
      %v2259 = vrot.slane %v2232, %v2258
      %v2260 = vlaneseq
      %v2261 = vshrl.u32 %v2260, 7
      %v2262 = vsub.s32 6, %v2261
      %v2263 = vrot.slane %v2232, %v2262
      %v2264 = vlaneseq
      %v2265 = vshrl.u32 %v2264, 7
      %v2266 = vsub.s32 7, %v2265
      %v2267 = vrot.slane %v2232, %v2266
      %v2268 = vlaneseq
      %v2269 = vshrl.u32 %v2268, 7
      %v2270 = vsub.s32 0, %v2269
      %v2271 = vrot.slane %v2233, %v2270
      %v2272 = vlaneseq
      %v2273 = vshrl.u32 %v2272, 7
      %v2274 = vsub.s32 1, %v2273
      %v2275 = vrot.slane %v2233, %v2274
      %v2276 = vlaneseq
      %v2277 = vshrl.u32 %v2276, 7
      %v2278 = vsub.s32 2, %v2277
      %v2279 = vrot.slane %v2233, %v2278
      %v2280 = vlaneseq
      %v2281 = vshrl.u32 %v2280, 7
      %v2282 = vsub.s32 3, %v2281
      %v2283 = vrot.slane %v2233, %v2282
      %v2284 = vlaneseq
      %v2285 = vshrl.u32 %v2284, 7
      %v2286 = vsub.s32 4, %v2285
      %v2287 = vrot.slane %v2233, %v2286
      %v2288 = vlaneseq
      %v2289 = vshrl.u32 %v2288, 7
      %v2290 = vsub.s32 5, %v2289
      %v2291 = vrot.slane %v2233, %v2290
      %v2292 = vlaneseq
      %v2293 = vshrl.u32 %v2292, 7
      %v2294 = vsub.s32 6, %v2293
      %v2295 = vrot.slane %v2233, %v2294
      %v2296 = vlaneseq
      %v2297 = vshrl.u32 %v2296, 7
      %v2298 = vsub.s32 7, %v2297
      %v2299 = vrot.slane %v2233, %v2298
      %v2348 = vunpack.c.l.b16 %v2200
      %v2349 = vunpack.c.h.b16 %v2200
      %v2350 = vunpack.c.l.b16 %v2201
      %v2351 = vunpack.c.h.b16 %v2201
      %v2352 = vunpack.c.l.b16 %v2202
      %v2353 = vunpack.c.h.b16 %v2202
      %v2354 = vunpack.c.l.b16 %v2203
      %v2355 = vunpack.c.h.b16 %v2203
      %v2356 = vunpack.c.l.b16 %v2204
      %v2357 = vunpack.c.h.b16 %v2204
      %v2358 = vunpack.c.l.b16 %v2205
      %v2359 = vunpack.c.h.b16 %v2205
      %v2360 = vunpack.c.l.b16 %v2206
      %v2361 = vunpack.c.h.b16 %v2206
      %v2362 = vunpack.c.l.b16 %v2207
      %v2363 = vunpack.c.h.b16 %v2207
      %v2364 = vunpack.c.l.b16 %v2208
      %v2365 = vunpack.c.h.b16 %v2208
      %v2366 = vunpack.c.l.b16 %v2209
      %v2367 = vunpack.c.h.b16 %v2209
      %v2368 = vunpack.c.l.b16 %v2210
      %v2369 = vunpack.c.h.b16 %v2210
      %v2370 = vunpack.c.l.b16 %v2211
      %v2371 = vunpack.c.h.b16 %v2211
      %v2372 = vunpack.c.l.b16 %v2212
      %v2373 = vunpack.c.h.b16 %v2212
      %v2374 = vunpack.c.l.b16 %v2213
      %v2375 = vunpack.c.h.b16 %v2213
      %v2376 = vunpack.c.l.b16 %v2214
      %v2377 = vunpack.c.h.b16 %v2214
      %v2378 = vunpack.c.l.b16 %v2215
      %v2379 = vunpack.c.h.b16 %v2215
      %v2380 = vunpack.c.l.b16 %v2216
      %v2381 = vunpack.c.h.b16 %v2216
      %v2382 = vunpack.c.l.b16 %v2217
      %v2383 = vunpack.c.h.b16 %v2217
      %v2384 = vunpack.c.l.b16 %v2218
      %v2385 = vunpack.c.h.b16 %v2218
      %v2386 = vunpack.c.l.b16 %v2219
      %v2387 = vunpack.c.h.b16 %v2219
      %v2388 = vunpack.c.l.b16 %v2220
      %v2389 = vunpack.c.h.b16 %v2220
      %v2390 = vunpack.c.l.b16 %v2221
      %v2391 = vunpack.c.h.b16 %v2221
      %v2392 = vunpack.c.l.b16 %v2222
      %v2393 = vunpack.c.h.b16 %v2222
      %v2394 = vunpack.c.l.b16 %v2223
      %v2395 = vunpack.c.h.b16 %v2223
      %v2396 = vunpack.c.l.b16 %v2224
      %v2397 = vunpack.c.h.b16 %v2224
      %v2398 = vunpack.c.l.b16 %v2225
      %v2399 = vunpack.c.h.b16 %v2225
      %v2400 = vunpack.c.l.b16 %v2226
      %v2401 = vunpack.c.h.b16 %v2226
      %v2402 = vunpack.c.l.b16 %v2227
      %v2403 = vunpack.c.h.b16 %v2227
      %v2404 = vunpack.c.l.b16 %v2228
      %v2405 = vunpack.c.h.b16 %v2228
      %v2406 = vunpack.c.l.b16 %v2229
      %v2407 = vunpack.c.h.b16 %v2229
      %v2408 = vunpack.c.l.b16 %v2230
      %v2409 = vunpack.c.h.b16 %v2230
      %v2410 = vunpack.c.l.b16 %v2231
      %v2411 = vunpack.c.h.b16 %v2231
      %v2412 = vpack.c.b16 %v2364, %v2348
      %v2413 = vpack.c.b16 %v2365, %v2349
      %v2414 = vpack.c.b16 %v2366, %v2350
      %v2415 = vpack.c.b16 %v2367, %v2351
      %v2416 = vpack.c.b16 %v2368, %v2352
      %v2417 = vpack.c.b16 %v2369, %v2353
      %v2418 = vpack.c.b16 %v2370, %v2354
      %v2419 = vpack.c.b16 %v2371, %v2355
      %v2420 = vpack.c.b16 %v2372, %v2356
      %v2421 = vpack.c.b16 %v2373, %v2357
      %v2422 = vpack.c.b16 %v2374, %v2358
      %v2423 = vpack.c.b16 %v2375, %v2359
      %v2424 = vpack.c.b16 %v2376, %v2360
      %v2425 = vpack.c.b16 %v2377, %v2361
      %v2426 = vpack.c.b16 %v2378, %v2362
      %v2427 = vpack.c.b16 %v2379, %v2363
      %v2428 = vpack.c.b16 %v2396, %v2380
      %v2429 = vpack.c.b16 %v2397, %v2381
      %v2430 = vpack.c.b16 %v2398, %v2382
      %v2431 = vpack.c.b16 %v2399, %v2383
      %v2432 = vpack.c.b16 %v2400, %v2384
      %v2433 = vpack.c.b16 %v2401, %v2385
      %v2434 = vpack.c.b16 %v2402, %v2386
      %v2435 = vpack.c.b16 %v2403, %v2387
      %v2436 = vpack.c.b16 %v2404, %v2388
      %v2437 = vpack.c.b16 %v2405, %v2389
      %v2438 = vpack.c.b16 %v2406, %v2390
      %v2439 = vpack.c.b16 %v2407, %v2391
      %v2440 = vpack.c.b16 %v2408, %v2392
      %v2441 = vpack.c.b16 %v2409, %v2393
      %v2442 = vpack.c.b16 %v2410, %v2394
      %v2443 = vpack.c.b16 %v2411, %v2395
      %v2477 = vsel %vm640, %v2199, 0
      %2479 = vmatprep.subr.bf16.mxu0 %v2413
      %2480 = vmatpush1.bf16.msra.mxu0 %v2412
      %2481 = vmatprep.subr.bf16.mxu0 %v2429
      %2482 = vmatpush1.bf16.msra.mxu0 %v2428
      %2483 = vmatprep.subr.bf16.mxu0 0
      %2484 = vmatpush1.bf16.msra.mxu0 0
      %2485 = vmatprep.subr.bf16.mxu0 0
      %2486 = vmatpush1.bf16.msra.mxu0 0
      %2487 = vmatprep.subr.bf16.mxu0 0
      %2488 = vmatpush1.bf16.msra.mxu0 0
      %2489 = vmatprep.subr.bf16.mxu0 0
      %2490 = vmatpush1.bf16.msra.mxu0 0
      %2491 = vmatprep.subr.bf16.mxu0 0
      %2492 = vmatpush1.bf16.msra.mxu0 0
      %2493 = vmatprep.subr.bf16.mxu0 0
      %2494 = vmatpush1.bf16.msra.mxu0 0
      %2495 = vmatprep.subr.bf16.mxu0 0
      %2496 = vmatpush1.bf16.msra.mxu0 0
      %2497 = vmatprep.subr.bf16.mxu0 0
      %2498 = vmatpush1.bf16.msra.mxu0 0
      %2499 = vmatprep.subr.bf16.mxu0 0
      %2500 = vmatpush1.bf16.msra.mxu0 0
      %2501 = vmatprep.subr.bf16.mxu0 0
      %2502 = vmatpush1.bf16.msra.mxu0 0
      %2503 = vmatprep.subr.bf16.mxu0 0
      %2504 = vmatpush1.bf16.msra.mxu0 0
      %2505 = vmatprep.subr.bf16.mxu0 0
      %2506 = vmatpush1.bf16.msra.mxu0 0
      %2507 = vmatprep.subr.bf16.mxu0 0
      %2508 = vmatpush1.bf16.msra.mxu0 0
      %2509 = vmatprep.subr.bf16.mxu0 0
      %2510 = vmatpush1.bf16.msra.mxu0 0
      %2511 = vmatprep.mubr.bf16.mxu0 0
      %2512 = vmatmul.mubr.bf16.gmra.mrb[0].mxu0 %v2477
      %v2513 = vpop.f32.mrb[0].mxu0
      %v2514 = vadd.f32 %v2239, %v2513
      %v2515 = vpop.f32.mrb[0].mxu0
      %v2516 = vadd.f32 %v2243, %v2515
      %v2517 = vpop.f32.mrb[0].mxu0
      %v2518 = vpop.f32.mrb[0].mxu0
      %2519 = vdwg.mxu0
      %2520 = vmatprep.subr.bf16.mxu0 %v2415
      %2521 = vmatpush1.bf16.msra.mxu0 %v2414
      %2522 = vmatprep.subr.bf16.mxu0 %v2431
      %2523 = vmatpush1.bf16.msra.mxu0 %v2430
      %2524 = vmatprep.subr.bf16.mxu0 0
      %2525 = vmatpush1.bf16.msra.mxu0 0
      %2526 = vmatprep.subr.bf16.mxu0 0
      %2527 = vmatpush1.bf16.msra.mxu0 0
      %2528 = vmatprep.subr.bf16.mxu0 0
      %2529 = vmatpush1.bf16.msra.mxu0 0
      %2530 = vmatprep.subr.bf16.mxu0 0
      %2531 = vmatpush1.bf16.msra.mxu0 0
      %2532 = vmatprep.subr.bf16.mxu0 0
      %2533 = vmatpush1.bf16.msra.mxu0 0
      %2534 = vmatprep.subr.bf16.mxu0 0
      %2535 = vmatpush1.bf16.msra.mxu0 0
      %2536 = vmatprep.subr.bf16.mxu0 0
      %2537 = vmatpush1.bf16.msra.mxu0 0
      %2538 = vmatprep.subr.bf16.mxu0 0
      %2539 = vmatpush1.bf16.msra.mxu0 0
      %2540 = vmatprep.subr.bf16.mxu0 0
      %2541 = vmatpush1.bf16.msra.mxu0 0
      %2542 = vmatprep.subr.bf16.mxu0 0
      %2543 = vmatpush1.bf16.msra.mxu0 0
      %2544 = vmatprep.subr.bf16.mxu0 0
      %2545 = vmatpush1.bf16.msra.mxu0 0
      %2546 = vmatprep.subr.bf16.mxu0 0
      %2547 = vmatpush1.bf16.msra.mxu0 0
      %2548 = vmatprep.subr.bf16.mxu0 0
      %2549 = vmatpush1.bf16.msra.mxu0 0
      %2550 = vmatprep.subr.bf16.mxu0 0
      %2551 = vmatpush1.bf16.msra.mxu0 0
      %2552 = vmatprep.mubr.bf16.mxu0 0
      %2553 = vmatmul.mubr.bf16.gmra.mrb[0].mxu0 %v2477
      %v2554 = vpop.f32.mrb[0].mxu0
      %v2555 = vadd.f32 %v2247, %v2554
      %v2556 = vpop.f32.mrb[0].mxu0
      %v2557 = vadd.f32 %v2251, %v2556
      %v2558 = vpop.f32.mrb[0].mxu0
      %v2559 = vpop.f32.mrb[0].mxu0
      %2560 = vdwg.mxu0
      %2561 = vmatprep.subr.bf16.mxu0 %v2417
      %2562 = vmatpush1.bf16.msra.mxu0 %v2416
      %2563 = vmatprep.subr.bf16.mxu0 %v2433
      %2564 = vmatpush1.bf16.msra.mxu0 %v2432
      %2565 = vmatprep.subr.bf16.mxu0 0
      %2566 = vmatpush1.bf16.msra.mxu0 0
      %2567 = vmatprep.subr.bf16.mxu0 0
      %2568 = vmatpush1.bf16.msra.mxu0 0
      %2569 = vmatprep.subr.bf16.mxu0 0
      %2570 = vmatpush1.bf16.msra.mxu0 0
      %2571 = vmatprep.subr.bf16.mxu0 0
      %2572 = vmatpush1.bf16.msra.mxu0 0
      %2573 = vmatprep.subr.bf16.mxu0 0
      %2574 = vmatpush1.bf16.msra.mxu0 0
      %2575 = vmatprep.subr.bf16.mxu0 0
      %2576 = vmatpush1.bf16.msra.mxu0 0
      %2577 = vmatprep.subr.bf16.mxu0 0
      %2578 = vmatpush1.bf16.msra.mxu0 0
      %2579 = vmatprep.subr.bf16.mxu0 0
      %2580 = vmatpush1.bf16.msra.mxu0 0
      %2581 = vmatprep.subr.bf16.mxu0 0
      %2582 = vmatpush1.bf16.msra.mxu0 0
      %2583 = vmatprep.subr.bf16.mxu0 0
      %2584 = vmatpush1.bf16.msra.mxu0 0
      %2585 = vmatprep.subr.bf16.mxu0 0
      %2586 = vmatpush1.bf16.msra.mxu0 0
      %2587 = vmatprep.subr.bf16.mxu0 0
      %2588 = vmatpush1.bf16.msra.mxu0 0
      %2589 = vmatprep.subr.bf16.mxu0 0
      %2590 = vmatpush1.bf16.msra.mxu0 0
      %2591 = vmatprep.subr.bf16.mxu0 0
      %2592 = vmatpush1.bf16.msra.mxu0 0
      %2593 = vmatprep.mubr.bf16.mxu0 0
      %2594 = vmatmul.mubr.bf16.gmra.mrb[0].mxu0 %v2477
      %v2595 = vpop.f32.mrb[0].mxu0
      %v2596 = vadd.f32 %v2255, %v2595
      %v2597 = vpop.f32.mrb[0].mxu0
      %v2598 = vadd.f32 %v2259, %v2597
      %v2599 = vpop.f32.mrb[0].mxu0
      %v2600 = vpop.f32.mrb[0].mxu0
      %2601 = vdwg.mxu0
      %2602 = vmatprep.subr.bf16.mxu0 %v2419
      %2603 = vmatpush1.bf16.msra.mxu0 %v2418
      %2604 = vmatprep.subr.bf16.mxu0 %v2435
      %2605 = vmatpush1.bf16.msra.mxu0 %v2434
      %2606 = vmatprep.subr.bf16.mxu0 0
      %2607 = vmatpush1.bf16.msra.mxu0 0
      %2608 = vmatprep.subr.bf16.mxu0 0
      %2609 = vmatpush1.bf16.msra.mxu0 0
      %2610 = vmatprep.subr.bf16.mxu0 0
      %2611 = vmatpush1.bf16.msra.mxu0 0
      %2612 = vmatprep.subr.bf16.mxu0 0
      %2613 = vmatpush1.bf16.msra.mxu0 0
      %2614 = vmatprep.subr.bf16.mxu0 0
      %2615 = vmatpush1.bf16.msra.mxu0 0
      %2616 = vmatprep.subr.bf16.mxu0 0
      %2617 = vmatpush1.bf16.msra.mxu0 0
      %2618 = vmatprep.subr.bf16.mxu0 0
      %2619 = vmatpush1.bf16.msra.mxu0 0
      %2620 = vmatprep.subr.bf16.mxu0 0
      %2621 = vmatpush1.bf16.msra.mxu0 0
      %2622 = vmatprep.subr.bf16.mxu0 0
      %2623 = vmatpush1.bf16.msra.mxu0 0
      %2624 = vmatprep.subr.bf16.mxu0 0
      %2625 = vmatpush1.bf16.msra.mxu0 0
      %2626 = vmatprep.subr.bf16.mxu0 0
      %2627 = vmatpush1.bf16.msra.mxu0 0
      %2628 = vmatprep.subr.bf16.mxu0 0
      %2629 = vmatpush1.bf16.msra.mxu0 0
      %2630 = vmatprep.subr.bf16.mxu0 0
      %2631 = vmatpush1.bf16.msra.mxu0 0
      %2632 = vmatprep.subr.bf16.mxu0 0
      %2633 = vmatpush1.bf16.msra.mxu0 0
      %2634 = vmatprep.mubr.bf16.mxu0 0
      %2635 = vmatmul.mubr.bf16.gmra.mrb[0].mxu0 %v2477
      %v2636 = vpop.f32.mrb[0].mxu0
      %v2637 = vadd.f32 %v2263, %v2636
      %v2638 = vpop.f32.mrb[0].mxu0
      %v2639 = vadd.f32 %v2267, %v2638
      %v2640 = vpop.f32.mrb[0].mxu0
      %v2641 = vpop.f32.mrb[0].mxu0
      %2642 = vdwg.mxu0
      %2643 = vmatprep.subr.bf16.mxu0 %v2421
      %2644 = vmatpush1.bf16.msra.mxu0 %v2420
      %2645 = vmatprep.subr.bf16.mxu0 %v2437
      %2646 = vmatpush1.bf16.msra.mxu0 %v2436
      %2647 = vmatprep.subr.bf16.mxu0 0
      %2648 = vmatpush1.bf16.msra.mxu0 0
      %2649 = vmatprep.subr.bf16.mxu0 0
      %2650 = vmatpush1.bf16.msra.mxu0 0
      %2651 = vmatprep.subr.bf16.mxu0 0
      %2652 = vmatpush1.bf16.msra.mxu0 0
      %2653 = vmatprep.subr.bf16.mxu0 0
      %2654 = vmatpush1.bf16.msra.mxu0 0
      %2655 = vmatprep.subr.bf16.mxu0 0
      %2656 = vmatpush1.bf16.msra.mxu0 0
      %2657 = vmatprep.subr.bf16.mxu0 0
      %2658 = vmatpush1.bf16.msra.mxu0 0
      %2659 = vmatprep.subr.bf16.mxu0 0
      %2660 = vmatpush1.bf16.msra.mxu0 0
      %2661 = vmatprep.subr.bf16.mxu0 0
      %2662 = vmatpush1.bf16.msra.mxu0 0
      %2663 = vmatprep.subr.bf16.mxu0 0
      %2664 = vmatpush1.bf16.msra.mxu0 0
      %2665 = vmatprep.subr.bf16.mxu0 0
      %2666 = vmatpush1.bf16.msra.mxu0 0
      %2667 = vmatprep.subr.bf16.mxu0 0
      %2668 = vmatpush1.bf16.msra.mxu0 0
      %2669 = vmatprep.subr.bf16.mxu0 0
      %2670 = vmatpush1.bf16.msra.mxu0 0
      %2671 = vmatprep.subr.bf16.mxu0 0
      %2672 = vmatpush1.bf16.msra.mxu0 0
      %2673 = vmatprep.subr.bf16.mxu0 0
      %2674 = vmatpush1.bf16.msra.mxu0 0
      %2675 = vmatprep.mubr.bf16.mxu0 0
      %2676 = vmatmul.mubr.bf16.gmra.mrb[0].mxu0 %v2477
      %v2677 = vpop.f32.mrb[0].mxu0
      %v2678 = vadd.f32 %v2271, %v2677
      %v2679 = vpop.f32.mrb[0].mxu0
      %v2680 = vadd.f32 %v2275, %v2679
      %v2681 = vpop.f32.mrb[0].mxu0
      %v2682 = vpop.f32.mrb[0].mxu0
      %2683 = vdwg.mxu0
      %2684 = vmatprep.subr.bf16.mxu0 %v2423
      %2685 = vmatpush1.bf16.msra.mxu0 %v2422
      %2686 = vmatprep.subr.bf16.mxu0 %v2439
      %2687 = vmatpush1.bf16.msra.mxu0 %v2438
      %2688 = vmatprep.subr.bf16.mxu0 0
      %2689 = vmatpush1.bf16.msra.mxu0 0
      %2690 = vmatprep.subr.bf16.mxu0 0
      %2691 = vmatpush1.bf16.msra.mxu0 0
      %2692 = vmatprep.subr.bf16.mxu0 0
      %2693 = vmatpush1.bf16.msra.mxu0 0
      %2694 = vmatprep.subr.bf16.mxu0 0
      %2695 = vmatpush1.bf16.msra.mxu0 0
      %2696 = vmatprep.subr.bf16.mxu0 0
      %2697 = vmatpush1.bf16.msra.mxu0 0
      %2698 = vmatprep.subr.bf16.mxu0 0
      %2699 = vmatpush1.bf16.msra.mxu0 0
      %2700 = vmatprep.subr.bf16.mxu0 0
      %2701 = vmatpush1.bf16.msra.mxu0 0
      %2702 = vmatprep.subr.bf16.mxu0 0
      %2703 = vmatpush1.bf16.msra.mxu0 0
      %2704 = vmatprep.subr.bf16.mxu0 0
      %2705 = vmatpush1.bf16.msra.mxu0 0
      %2706 = vmatprep.subr.bf16.mxu0 0
      %2707 = vmatpush1.bf16.msra.mxu0 0
      %2708 = vmatprep.subr.bf16.mxu0 0
      %2709 = vmatpush1.bf16.msra.mxu0 0
      %2710 = vmatprep.subr.bf16.mxu0 0
      %2711 = vmatpush1.bf16.msra.mxu0 0
      %2712 = vmatprep.subr.bf16.mxu0 0
      %2713 = vmatpush1.bf16.msra.mxu0 0
      %2714 = vmatprep.subr.bf16.mxu0 0
      %2715 = vmatpush1.bf16.msra.mxu0 0
      %2716 = vmatprep.mubr.bf16.mxu0 0
      %2717 = vmatmul.mubr.bf16.gmra.mrb[0].mxu0 %v2477
      %v2718 = vpop.f32.mrb[0].mxu0
      %v2719 = vadd.f32 %v2279, %v2718
      %v2720 = vpop.f32.mrb[0].mxu0
      %v2721 = vadd.f32 %v2283, %v2720
      %v2722 = vpop.f32.mrb[0].mxu0
      %v2723 = vpop.f32.mrb[0].mxu0
      %2724 = vdwg.mxu0
      %2725 = vmatprep.subr.bf16.mxu0 %v2425
      %2726 = vmatpush1.bf16.msra.mxu0 %v2424
      %2727 = vmatprep.subr.bf16.mxu0 %v2441
      %2728 = vmatpush1.bf16.msra.mxu0 %v2440
      %2729 = vmatprep.subr.bf16.mxu0 0
      %2730 = vmatpush1.bf16.msra.mxu0 0
      %2731 = vmatprep.subr.bf16.mxu0 0
      %2732 = vmatpush1.bf16.msra.mxu0 0
      %2733 = vmatprep.subr.bf16.mxu0 0
      %2734 = vmatpush1.bf16.msra.mxu0 0
      %2735 = vmatprep.subr.bf16.mxu0 0
      %2736 = vmatpush1.bf16.msra.mxu0 0
      %2737 = vmatprep.subr.bf16.mxu0 0
      %2738 = vmatpush1.bf16.msra.mxu0 0
      %2739 = vmatprep.subr.bf16.mxu0 0
      %2740 = vmatpush1.bf16.msra.mxu0 0
      %2741 = vmatprep.subr.bf16.mxu0 0
      %2742 = vmatpush1.bf16.msra.mxu0 0
      %2743 = vmatprep.subr.bf16.mxu0 0
      %2744 = vmatpush1.bf16.msra.mxu0 0
      %2745 = vmatprep.subr.bf16.mxu0 0
      %2746 = vmatpush1.bf16.msra.mxu0 0
      %2747 = vmatprep.subr.bf16.mxu0 0
      %2748 = vmatpush1.bf16.msra.mxu0 0
      %2749 = vmatprep.subr.bf16.mxu0 0
      %2750 = vmatpush1.bf16.msra.mxu0 0
      %2751 = vmatprep.subr.bf16.mxu0 0
      %2752 = vmatpush1.bf16.msra.mxu0 0
      %2753 = vmatprep.subr.bf16.mxu0 0
      %2754 = vmatpush1.bf16.msra.mxu0 0
      %2755 = vmatprep.subr.bf16.mxu0 0
      %2756 = vmatpush1.bf16.msra.mxu0 0
      %2757 = vmatprep.mubr.bf16.mxu0 0
      %2758 = vmatmul.mubr.bf16.gmra.mrb[0].mxu0 %v2477
      %v2759 = vpop.f32.mrb[0].mxu0
      %v2760 = vadd.f32 %v2287, %v2759
      %v2761 = vpop.f32.mrb[0].mxu0
      %v2762 = vadd.f32 %v2291, %v2761
      %v2763 = vpop.f32.mrb[0].mxu0
      %v2764 = vpop.f32.mrb[0].mxu0
      %2765 = vdwg.mxu0
      %2766 = vmatprep.subr.bf16.mxu0 %v2427
      %2767 = vmatpush1.bf16.msra.mxu0 %v2426
      %2768 = vmatprep.subr.bf16.mxu0 %v2443
      %2769 = vmatpush1.bf16.msra.mxu0 %v2442
      %2770 = vmatprep.subr.bf16.mxu0 0
      %2771 = vmatpush1.bf16.msra.mxu0 0
      %2772 = vmatprep.subr.bf16.mxu0 0
      %2773 = vmatpush1.bf16.msra.mxu0 0
      %2774 = vmatprep.subr.bf16.mxu0 0
      %2775 = vmatpush1.bf16.msra.mxu0 0
      %2776 = vmatprep.subr.bf16.mxu0 0
      %2777 = vmatpush1.bf16.msra.mxu0 0
      %2778 = vmatprep.subr.bf16.mxu0 0
      %2779 = vmatpush1.bf16.msra.mxu0 0
      %2780 = vmatprep.subr.bf16.mxu0 0
      %2781 = vmatpush1.bf16.msra.mxu0 0
      %2782 = vmatprep.subr.bf16.mxu0 0
      %2783 = vmatpush1.bf16.msra.mxu0 0
      %2784 = vmatprep.subr.bf16.mxu0 0
      %2785 = vmatpush1.bf16.msra.mxu0 0
      %2786 = vmatprep.subr.bf16.mxu0 0
      %2787 = vmatpush1.bf16.msra.mxu0 0
      %2788 = vmatprep.subr.bf16.mxu0 0
      %2789 = vmatpush1.bf16.msra.mxu0 0
      %2790 = vmatprep.subr.bf16.mxu0 0
      %2791 = vmatpush1.bf16.msra.mxu0 0
      %2792 = vmatprep.subr.bf16.mxu0 0
      %2793 = vmatpush1.bf16.msra.mxu0 0
      %2794 = vmatprep.subr.bf16.mxu0 0
      %2795 = vmatpush1.bf16.msra.mxu0 0
      %2796 = vmatprep.subr.bf16.mxu0 0
      %2797 = vmatpush1.bf16.msra.mxu0 0
      %2798 = vmatprep.mubr.bf16.mxu0 0
      %2799 = vmatmul.mubr.bf16.gmra.mrb[0].mxu0 %v2477
      %v2800 = vpop.f32.mrb[0].mxu0
      %v2801 = vadd.f32 %v2295, %v2800
      %v2802 = vpop.f32.mrb[0].mxu0
      %v2803 = vadd.f32 %v2299, %v2802
      %v2804 = vpop.f32.mrb[0].mxu0
      %v2805 = vpop.f32.mrb[0].mxu0
      %2806 = vdwg.mxu0
      %v2807 = vmax.f32 %v2514, 0.0
      %v2808 = vmax.f32 %v2516, 0.0
      %v2809 = vmax.f32 %v2555, 0.0
      %v2810 = vmax.f32 %v2557, 0.0
      %v2811 = vmax.f32 %v2596, 0.0
      %v2812 = vmax.f32 %v2598, 0.0
      %v2813 = vmax.f32 %v2637, 0.0
      %v2814 = vmax.f32 %v2639, 0.0
      %v2815 = vmax.f32 %v2678, 0.0
      %v2816 = vmax.f32 %v2680, 0.0
      %v2817 = vmax.f32 %v2719, 0.0
      %v2818 = vmax.f32 %v2721, 0.0
      %v2819 = vmax.f32 %v2760, 0.0
      %v2820 = vmax.f32 %v2762, 0.0
      %v2821 = vmax.f32 %v2801, 0.0
      %v2822 = vmax.f32 %v2803, 0.0
      %v2823 = vpack.c.bf16 %v2807, %v2807
      %v2824 = vpack.c.bf16 %v2808, %v2808
      %v2825 = vpack.c.bf16 %v2809, %v2809
      %v2826 = vpack.c.bf16 %v2810, %v2810
      %v2827 = vpack.c.bf16 %v2811, %v2811
      %v2828 = vpack.c.bf16 %v2812, %v2812
      %v2829 = vpack.c.bf16 %v2813, %v2813
      %v2830 = vpack.c.bf16 %v2814, %v2814
      %v2831 = vpack.c.bf16 %v2815, %v2815
      %v2832 = vpack.c.bf16 %v2816, %v2816
      %v2833 = vpack.c.bf16 %v2817, %v2817
      %v2834 = vpack.c.bf16 %v2818, %v2818
      %v2835 = vpack.c.bf16 %v2819, %v2819
      %v2836 = vpack.c.bf16 %v2820, %v2820
      %v2837 = vpack.c.bf16 %v2821, %v2821
      %v2838 = vpack.c.bf16 %v2822, %v2822
      %v2839 = vld [vmem:[%s11] sm:$0xf]
      %v2840 = vld [vmem:[%s11 + $0x4] sm:$0xf]
      %v2841 = vld [vmem:[%s11 + $0x8] sm:$0xf]
      %v2842 = vld [vmem:[%s11 + $0xc] sm:$0xf]
      %v2843 = vld [vmem:[%s11 + $0x10] sm:$0xf]
      %v2844 = vld [vmem:[%s11 + $0x14] sm:$0xf]
      %v2845 = vld [vmem:[%s11 + $0x18] sm:$0xf]
      %v2846 = vld [vmem:[%s11 + $0x1c] sm:$0xf]
      %v2847 = vld [vmem:[%s11 + $0x20] sm:$0xf]
      %v2848 = vld [vmem:[%s11 + $0x24] sm:$0xf]
      %v2849 = vld [vmem:[%s11 + $0x28] sm:$0xf]
      %v2850 = vld [vmem:[%s11 + $0x2c] sm:$0xf]
      %v2851 = vld [vmem:[%s11 + $0x30] sm:$0xf]
      %v2852 = vld [vmem:[%s11 + $0x34] sm:$0xf]
      %v2853 = vld [vmem:[%s11 + $0x38] sm:$0xf]
      %v2854 = vld [vmem:[%s11 + $0x3c] sm:$0xf]
      %v2855 = vld [vmem:[%s11 + $0x40] sm:$0xf]
      %v2856 = vld [vmem:[%s11 + $0x44] sm:$0xf]
      %v2857 = vld [vmem:[%s11 + $0x48] sm:$0xf]
      %v2858 = vld [vmem:[%s11 + $0x4c] sm:$0xf]
      %v2859 = vld [vmem:[%s11 + $0x50] sm:$0xf]
      %v2860 = vld [vmem:[%s11 + $0x54] sm:$0xf]
      %v2861 = vld [vmem:[%s11 + $0x58] sm:$0xf]
      %v2862 = vld [vmem:[%s11 + $0x5c] sm:$0xf]
      %v2863 = vld [vmem:[%s11 + $0x60] sm:$0xf]
      %v2864 = vld [vmem:[%s11 + $0x64] sm:$0xf]
      %v2865 = vld [vmem:[%s11 + $0x68] sm:$0xf]
      %v2866 = vld [vmem:[%s11 + $0x6c] sm:$0xf]
      %v2867 = vld [vmem:[%s11 + $0x70] sm:$0xf]
      %v2868 = vld [vmem:[%s11 + $0x74] sm:$0xf]
      %v2869 = vld [vmem:[%s11 + $0x78] sm:$0xf]
      %v2870 = vld [vmem:[%s11 + $0x7c] sm:$0xf]
      %v2871 = vld [vmem:[%s11 + $0x80] sm:$0xf]
      %v2872 = vld [vmem:[%s11 + $0x84] sm:$0xf]
      %v2873 = vld [vmem:[%s11 + $0x88] sm:$0xf]
      %v2874 = vld [vmem:[%s11 + $0x8c] sm:$0xf]
      %v2875 = vld [vmem:[%s11 + $0x90] sm:$0xf]
      %v2876 = vld [vmem:[%s11 + $0x94] sm:$0xf]
      %v2877 = vld [vmem:[%s11 + $0x98] sm:$0xf]
      %v2878 = vld [vmem:[%s11 + $0x9c] sm:$0xf]
      %v2879 = vld [vmem:[%s11 + $0xa0] sm:$0xf]
      %v2880 = vld [vmem:[%s11 + $0xa4] sm:$0xf]
      %v2881 = vld [vmem:[%s11 + $0xa8] sm:$0xf]
      %v2882 = vld [vmem:[%s11 + $0xac] sm:$0xf]
      %v2883 = vld [vmem:[%s11 + $0xb0] sm:$0xf]
      %v2884 = vld [vmem:[%s11 + $0xb4] sm:$0xf]
      %v2885 = vld [vmem:[%s11 + $0xb8] sm:$0xf]
      %v2886 = vld [vmem:[%s11 + $0xbc] sm:$0xf]
      %v2887 = vld [vmem:[%s11 + $0xc0] sm:$0xf]
      %v2888 = vld [vmem:[%s11 + $0xc4] sm:$0xf]
      %v2889 = vld [vmem:[%s11 + $0xc8] sm:$0xf]
      %v2890 = vld [vmem:[%s11 + $0xcc] sm:$0xf]
      %v2891 = vld [vmem:[%s11 + $0xd0] sm:$0xf]
      %v2892 = vld [vmem:[%s11 + $0xd4] sm:$0xf]
      %v2893 = vld [vmem:[%s11 + $0xd8] sm:$0xf]
      %v2894 = vld [vmem:[%s11 + $0xdc] sm:$0xf]
      %v2895 = vld [vmem:[%s11 + $0xe0] sm:$0xf]
      %v2896 = vld [vmem:[%s11 + $0xe4] sm:$0xf]
      %v2897 = vld [vmem:[%s11 + $0xe8] sm:$0xf]
      %v2898 = vld [vmem:[%s11 + $0xec] sm:$0xf]
      %v2899 = vld [vmem:[%s11 + $0xf0] sm:$0xf]
      %v2900 = vld [vmem:[%s11 + $0xf4] sm:$0xf]
      %v2901 = vld [vmem:[%s11 + $0xf8] sm:$0xf]
      %v2902 = vld [vmem:[%s11 + $0xfc] sm:$0xf]
      %v2903 = vld [vmem:[%s11 + $0x100] sm:$0xf]
      %v2904 = vld [vmem:[%s11 + $0x104] sm:$0xf]
      %v2905 = vld [vmem:[%s11 + $0x108] sm:$0xf]
      %v2906 = vld [vmem:[%s11 + $0x10c] sm:$0xf]
      %v2907 = vld [vmem:[%s11 + $0x110] sm:$0xf]
      %v2908 = vld [vmem:[%s11 + $0x114] sm:$0xf]
      %v2909 = vld [vmem:[%s11 + $0x118] sm:$0xf]
      %v2910 = vld [vmem:[%s11 + $0x11c] sm:$0xf]
      %v2911 = vld [vmem:[%s11 + $0x120] sm:$0xf]
      %v2912 = vld [vmem:[%s11 + $0x124] sm:$0xf]
      %v2913 = vld [vmem:[%s11 + $0x128] sm:$0xf]
      %v2914 = vld [vmem:[%s11 + $0x12c] sm:$0xf]
      %v2915 = vld [vmem:[%s11 + $0x130] sm:$0xf]
      %v2916 = vld [vmem:[%s11 + $0x134] sm:$0xf]
      %v2917 = vld [vmem:[%s11 + $0x138] sm:$0xf]
      %v2918 = vld [vmem:[%s11 + $0x13c] sm:$0xf]
      %v2919 = vld [vmem:[%s11 + $0x140] sm:$0xf]
      %v2920 = vld [vmem:[%s11 + $0x144] sm:$0xf]
      %v2921 = vld [vmem:[%s11 + $0x148] sm:$0xf]
      %v2922 = vld [vmem:[%s11 + $0x14c] sm:$0xf]
      %v2923 = vld [vmem:[%s11 + $0x150] sm:$0xf]
      %v2924 = vld [vmem:[%s11 + $0x154] sm:$0xf]
      %v2925 = vld [vmem:[%s11 + $0x158] sm:$0xf]
      %v2926 = vld [vmem:[%s11 + $0x15c] sm:$0xf]
      %v2927 = vld [vmem:[%s11 + $0x160] sm:$0xf]
      %v2928 = vld [vmem:[%s11 + $0x164] sm:$0xf]
      %v2929 = vld [vmem:[%s11 + $0x168] sm:$0xf]
      %v2930 = vld [vmem:[%s11 + $0x16c] sm:$0xf]
      %v2931 = vld [vmem:[%s11 + $0x170] sm:$0xf]
      %v2932 = vld [vmem:[%s11 + $0x174] sm:$0xf]
      %v2933 = vld [vmem:[%s11 + $0x178] sm:$0xf]
      %v2934 = vld [vmem:[%s11 + $0x17c] sm:$0xf]
      %v2935 = vld [vmem:[%s11 + $0x180] sm:$0xf]
      %v2936 = vld [vmem:[%s11 + $0x184] sm:$0xf]
      %v2937 = vld [vmem:[%s11 + $0x188] sm:$0xf]
      %v2938 = vld [vmem:[%s11 + $0x18c] sm:$0xf]
      %v2939 = vld [vmem:[%s11 + $0x190] sm:$0xf]
      %v2940 = vld [vmem:[%s11 + $0x194] sm:$0xf]
      %v2941 = vld [vmem:[%s11 + $0x198] sm:$0xf]
      %v2942 = vld [vmem:[%s11 + $0x19c] sm:$0xf]
      %v2943 = vld [vmem:[%s11 + $0x1a0] sm:$0xf]
      %v2944 = vld [vmem:[%s11 + $0x1a4] sm:$0xf]
      %v2945 = vld [vmem:[%s11 + $0x1a8] sm:$0xf]
      %v2946 = vld [vmem:[%s11 + $0x1ac] sm:$0xf]
      %v2947 = vld [vmem:[%s11 + $0x1b0] sm:$0xf]
      %v2948 = vld [vmem:[%s11 + $0x1b4] sm:$0xf]
      %v2949 = vld [vmem:[%s11 + $0x1b8] sm:$0xf]
      %v2950 = vld [vmem:[%s11 + $0x1bc] sm:$0xf]
      %v2951 = vld [vmem:[%s11 + $0x1c0] sm:$0xf]
      %v2952 = vld [vmem:[%s11 + $0x1c4] sm:$0xf]
      %v2953 = vld [vmem:[%s11 + $0x1c8] sm:$0xf]
      %v2954 = vld [vmem:[%s11 + $0x1cc] sm:$0xf]
      %v2955 = vld [vmem:[%s11 + $0x1d0] sm:$0xf]
      %v2956 = vld [vmem:[%s11 + $0x1d4] sm:$0xf]
      %v2957 = vld [vmem:[%s11 + $0x1d8] sm:$0xf]
      %v2958 = vld [vmem:[%s11 + $0x1dc] sm:$0xf]
      %v2959 = vld [vmem:[%s11 + $0x1e0] sm:$0xf]
      %v2960 = vld [vmem:[%s11 + $0x1e4] sm:$0xf]
      %v2961 = vld [vmem:[%s11 + $0x1e8] sm:$0xf]
      %v2962 = vld [vmem:[%s11 + $0x1ec] sm:$0xf]
      %v2963 = vld [vmem:[%s11 + $0x1f0] sm:$0xf]
      %v2964 = vld [vmem:[%s11 + $0x1f4] sm:$0xf]
      %v2965 = vld [vmem:[%s11 + $0x1f8] sm:$0xf]
      %v2966 = vld [vmem:[%s11 + $0x1fc] sm:$0xf]
      %v2967 = vld [vmem:[%s11 + $0x200] sm:$0xf]
      %v2968 = vld [vmem:[%s11 + $0x204] sm:$0xf]
      %v2969 = vld [vmem:[%s11 + $0x208] sm:$0xf]
      %v2970 = vld [vmem:[%s11 + $0x20c] sm:$0xf]
      %v2971 = vld [vmem:[%s11 + $0x210] sm:$0xf]
      %v2972 = vld [vmem:[%s11 + $0x214] sm:$0xf]
      %v2973 = vld [vmem:[%s11 + $0x218] sm:$0xf]
      %v2974 = vld [vmem:[%s11 + $0x21c] sm:$0xf]
      %v2975 = vld [vmem:[%s11 + $0x220] sm:$0xf]
      %v2976 = vld [vmem:[%s11 + $0x224] sm:$0xf]
      %v2977 = vld [vmem:[%s11 + $0x228] sm:$0xf]
      %v2978 = vld [vmem:[%s11 + $0x22c] sm:$0xf]
      %v2979 = vld [vmem:[%s11 + $0x230] sm:$0xf]
      %v2980 = vld [vmem:[%s11 + $0x234] sm:$0xf]
      %v2981 = vld [vmem:[%s11 + $0x238] sm:$0xf]
      %v2982 = vld [vmem:[%s11 + $0x23c] sm:$0xf]
      %v2983 = vld [vmem:[%s11 + $0x240] sm:$0xf]
      %v2984 = vld [vmem:[%s11 + $0x244] sm:$0xf]
      %v2985 = vld [vmem:[%s11 + $0x248] sm:$0xf]
      %v2986 = vld [vmem:[%s11 + $0x24c] sm:$0xf]
      %v2987 = vld [vmem:[%s11 + $0x250] sm:$0xf]
      %v2988 = vld [vmem:[%s11 + $0x254] sm:$0xf]
      %v2989 = vld [vmem:[%s11 + $0x258] sm:$0xf]
      %v2990 = vld [vmem:[%s11 + $0x25c] sm:$0xf]
      %v2991 = vld [vmem:[%s11 + $0x260] sm:$0xf]
      %v2992 = vld [vmem:[%s11 + $0x264] sm:$0xf]
      %v2993 = vld [vmem:[%s11 + $0x268] sm:$0xf]
      %v2994 = vld [vmem:[%s11 + $0x26c] sm:$0xf]
      %v2995 = vld [vmem:[%s11 + $0x270] sm:$0xf]
      %v2996 = vld [vmem:[%s11 + $0x274] sm:$0xf]
      %v2997 = vld [vmem:[%s11 + $0x278] sm:$0xf]
      %v2998 = vld [vmem:[%s11 + $0x27c] sm:$0xf]
      %v2999 = vld [vmem:[%s11 + $0x280] sm:$0xf]
      %v3000 = vld [vmem:[%s11 + $0x284] sm:$0xf]
      %v3001 = vld [vmem:[%s11 + $0x288] sm:$0xf]
      %v3002 = vld [vmem:[%s11 + $0x28c] sm:$0xf]
      %v3003 = vld [vmem:[%s11 + $0x290] sm:$0xf]
      %v3004 = vld [vmem:[%s11 + $0x294] sm:$0xf]
      %v3005 = vld [vmem:[%s11 + $0x298] sm:$0xf]
      %v3006 = vld [vmem:[%s11 + $0x29c] sm:$0xf]
      %v3007 = vld [vmem:[%s11 + $0x2a0] sm:$0xf]
      %v3008 = vld [vmem:[%s11 + $0x2a4] sm:$0xf]
      %v3009 = vld [vmem:[%s11 + $0x2a8] sm:$0xf]
      %v3010 = vld [vmem:[%s11 + $0x2ac] sm:$0xf]
      %v3011 = vld [vmem:[%s11 + $0x2b0] sm:$0xf]
      %v3012 = vld [vmem:[%s11 + $0x2b4] sm:$0xf]
      %v3013 = vld [vmem:[%s11 + $0x2b8] sm:$0xf]
      %v3014 = vld [vmem:[%s11 + $0x2bc] sm:$0xf]
      %v3015 = vld [vmem:[%s11 + $0x2c0] sm:$0xf]
      %v3016 = vld [vmem:[%s11 + $0x2c4] sm:$0xf]
      %v3017 = vld [vmem:[%s11 + $0x2c8] sm:$0xf]
      %v3018 = vld [vmem:[%s11 + $0x2cc] sm:$0xf]
      %v3019 = vld [vmem:[%s11 + $0x2d0] sm:$0xf]
      %v3020 = vld [vmem:[%s11 + $0x2d4] sm:$0xf]
      %v3021 = vld [vmem:[%s11 + $0x2d8] sm:$0xf]
      %v3022 = vld [vmem:[%s11 + $0x2dc] sm:$0xf]
      %v3023 = vld [vmem:[%s11 + $0x2e0] sm:$0xf]
      %v3024 = vld [vmem:[%s11 + $0x2e4] sm:$0xf]
      %v3025 = vld [vmem:[%s11 + $0x2e8] sm:$0xf]
      %v3026 = vld [vmem:[%s11 + $0x2ec] sm:$0xf]
      %v3027 = vld [vmem:[%s11 + $0x2f0] sm:$0xf]
      %v3028 = vld [vmem:[%s11 + $0x2f4] sm:$0xf]
      %v3029 = vld [vmem:[%s11 + $0x2f8] sm:$0xf]
      %v3030 = vld [vmem:[%s11 + $0x2fc] sm:$0xf]
      %v3031 = vld [vmem:[%s11 + $0x300] sm:$0xf]
      %v3032 = vld [vmem:[%s11 + $0x304] sm:$0xf]
      %v3033 = vld [vmem:[%s11 + $0x308] sm:$0xf]
      %v3034 = vld [vmem:[%s11 + $0x30c] sm:$0xf]
      %v3035 = vld [vmem:[%s11 + $0x310] sm:$0xf]
      %v3036 = vld [vmem:[%s11 + $0x314] sm:$0xf]
      %v3037 = vld [vmem:[%s11 + $0x318] sm:$0xf]
      %v3038 = vld [vmem:[%s11 + $0x31c] sm:$0xf]
      %v3039 = vld [vmem:[%s11 + $0x320] sm:$0xf]
      %v3040 = vld [vmem:[%s11 + $0x324] sm:$0xf]
      %v3041 = vld [vmem:[%s11 + $0x328] sm:$0xf]
      %v3042 = vld [vmem:[%s11 + $0x32c] sm:$0xf]
      %v3043 = vld [vmem:[%s11 + $0x330] sm:$0xf]
      %v3044 = vld [vmem:[%s11 + $0x334] sm:$0xf]
      %v3045 = vld [vmem:[%s11 + $0x338] sm:$0xf]
      %v3046 = vld [vmem:[%s11 + $0x33c] sm:$0xf]
      %v3047 = vld [vmem:[%s11 + $0x340] sm:$0xf]
      %v3048 = vld [vmem:[%s11 + $0x344] sm:$0xf]
      %v3049 = vld [vmem:[%s11 + $0x348] sm:$0xf]
      %v3050 = vld [vmem:[%s11 + $0x34c] sm:$0xf]
      %v3051 = vld [vmem:[%s11 + $0x350] sm:$0xf]
      %v3052 = vld [vmem:[%s11 + $0x354] sm:$0xf]
      %v3053 = vld [vmem:[%s11 + $0x358] sm:$0xf]
      %v3054 = vld [vmem:[%s11 + $0x35c] sm:$0xf]
      %v3055 = vld [vmem:[%s11 + $0x360] sm:$0xf]
      %v3056 = vld [vmem:[%s11 + $0x364] sm:$0xf]
      %v3057 = vld [vmem:[%s11 + $0x368] sm:$0xf]
      %v3058 = vld [vmem:[%s11 + $0x36c] sm:$0xf]
      %v3059 = vld [vmem:[%s11 + $0x370] sm:$0xf]
      %v3060 = vld [vmem:[%s11 + $0x374] sm:$0xf]
      %v3061 = vld [vmem:[%s11 + $0x378] sm:$0xf]
      %v3062 = vld [vmem:[%s11 + $0x37c] sm:$0xf]
      %v3063 = vld [vmem:[%s11 + $0x380] sm:$0xf]
      %v3064 = vld [vmem:[%s11 + $0x384] sm:$0xf]
      %v3065 = vld [vmem:[%s11 + $0x388] sm:$0xf]
      %v3066 = vld [vmem:[%s11 + $0x38c] sm:$0xf]
      %v3067 = vld [vmem:[%s11 + $0x390] sm:$0xf]
      %v3068 = vld [vmem:[%s11 + $0x394] sm:$0xf]
      %v3069 = vld [vmem:[%s11 + $0x398] sm:$0xf]
      %v3070 = vld [vmem:[%s11 + $0x39c] sm:$0xf]
      %v3071 = vld [vmem:[%s11 + $0x3a0] sm:$0xf]
      %v3072 = vld [vmem:[%s11 + $0x3a4] sm:$0xf]
      %v3073 = vld [vmem:[%s11 + $0x3a8] sm:$0xf]
      %v3074 = vld [vmem:[%s11 + $0x3ac] sm:$0xf]
      %v3075 = vld [vmem:[%s11 + $0x3b0] sm:$0xf]
      %v3076 = vld [vmem:[%s11 + $0x3b4] sm:$0xf]
      %v3077 = vld [vmem:[%s11 + $0x3b8] sm:$0xf]
      %v3078 = vld [vmem:[%s11 + $0x3bc] sm:$0xf]
      %v3079 = vld [vmem:[%s11 + $0x3c0] sm:$0xf]
      %v3080 = vld [vmem:[%s11 + $0x3c4] sm:$0xf]
      %v3081 = vld [vmem:[%s11 + $0x3c8] sm:$0xf]
      %v3082 = vld [vmem:[%s11 + $0x3cc] sm:$0xf]
      %v3083 = vld [vmem:[%s11 + $0x3d0] sm:$0xf]
      %v3084 = vld [vmem:[%s11 + $0x3d4] sm:$0xf]
      %v3085 = vld [vmem:[%s11 + $0x3d8] sm:$0xf]
      %v3086 = vld [vmem:[%s11 + $0x3dc] sm:$0xf]
      %v3087 = vld [vmem:[%s11 + $0x3e0] sm:$0xf]
      %v3088 = vld [vmem:[%s11 + $0x3e4] sm:$0xf]
      %v3089 = vld [vmem:[%s11 + $0x3e8] sm:$0xf]
      %v3090 = vld [vmem:[%s11 + $0x3ec] sm:$0xf]
      %v3091 = vld [vmem:[%s11 + $0x3f0] sm:$0xf]
      %v3092 = vld [vmem:[%s11 + $0x3f4] sm:$0xf]
      %v3093 = vld [vmem:[%s11 + $0x3f8] sm:$0xf]
      %v3094 = vld [vmem:[%s11 + $0x3fc] sm:$0xf]
      %v3095 = vld [vmem:[%s12] sm:$0x1]
      %v3097 = vlaneseq
      %v3098 = vshrl.u32 %v3097, 7
      %v3099 = vsub.s32 0, %v3098
      %v3100 = vrot.slane %v3095, %v3099
      %v3358 = vunpack.c.l.b16 %v2839
      %v3359 = vunpack.c.l.b16 %v2840
      %v3360 = vunpack.c.l.b16 %v2841
      %v3361 = vunpack.c.l.b16 %v2842
      %v3362 = vunpack.c.l.b16 %v2843
      %v3363 = vunpack.c.l.b16 %v2844
      %v3364 = vunpack.c.l.b16 %v2845
      %v3365 = vunpack.c.l.b16 %v2846
      %v3366 = vunpack.c.l.b16 %v2847
      %v3367 = vunpack.c.l.b16 %v2848
      %v3368 = vunpack.c.l.b16 %v2849
      %v3369 = vunpack.c.l.b16 %v2850
      %v3370 = vunpack.c.l.b16 %v2851
      %v3371 = vunpack.c.l.b16 %v2852
      %v3372 = vunpack.c.l.b16 %v2853
      %v3373 = vunpack.c.l.b16 %v2854
      %v3374 = vunpack.c.l.b16 %v2855
      %v3375 = vunpack.c.l.b16 %v2856
      %v3376 = vunpack.c.l.b16 %v2857
      %v3377 = vunpack.c.l.b16 %v2858
      %v3378 = vunpack.c.l.b16 %v2859
      %v3379 = vunpack.c.l.b16 %v2860
      %v3380 = vunpack.c.l.b16 %v2861
      %v3381 = vunpack.c.l.b16 %v2862
      %v3382 = vunpack.c.l.b16 %v2863
      %v3383 = vunpack.c.l.b16 %v2864
      %v3384 = vunpack.c.l.b16 %v2865
      %v3385 = vunpack.c.l.b16 %v2866
      %v3386 = vunpack.c.l.b16 %v2867
      %v3387 = vunpack.c.l.b16 %v2868
      %v3388 = vunpack.c.l.b16 %v2869
      %v3389 = vunpack.c.l.b16 %v2870
      %v3390 = vunpack.c.l.b16 %v2871
      %v3391 = vunpack.c.l.b16 %v2872
      %v3392 = vunpack.c.l.b16 %v2873
      %v3393 = vunpack.c.l.b16 %v2874
      %v3394 = vunpack.c.l.b16 %v2875
      %v3395 = vunpack.c.l.b16 %v2876
      %v3396 = vunpack.c.l.b16 %v2877
      %v3397 = vunpack.c.l.b16 %v2878
      %v3398 = vunpack.c.l.b16 %v2879
      %v3399 = vunpack.c.l.b16 %v2880
      %v3400 = vunpack.c.l.b16 %v2881
      %v3401 = vunpack.c.l.b16 %v2882
      %v3402 = vunpack.c.l.b16 %v2883
      %v3403 = vunpack.c.l.b16 %v2884
      %v3404 = vunpack.c.l.b16 %v2885
      %v3405 = vunpack.c.l.b16 %v2886
      %v3406 = vunpack.c.l.b16 %v2887
      %v3407 = vunpack.c.l.b16 %v2888
      %v3408 = vunpack.c.l.b16 %v2889
      %v3409 = vunpack.c.l.b16 %v2890
      %v3410 = vunpack.c.l.b16 %v2891
      %v3411 = vunpack.c.l.b16 %v2892
      %v3412 = vunpack.c.l.b16 %v2893
      %v3413 = vunpack.c.l.b16 %v2894
      %v3414 = vunpack.c.l.b16 %v2895
      %v3415 = vunpack.c.l.b16 %v2896
      %v3416 = vunpack.c.l.b16 %v2897
      %v3417 = vunpack.c.l.b16 %v2898
      %v3418 = vunpack.c.l.b16 %v2899
      %v3419 = vunpack.c.l.b16 %v2900
      %v3420 = vunpack.c.l.b16 %v2901
      %v3421 = vunpack.c.l.b16 %v2902
      %v3422 = vunpack.c.l.b16 %v2903
      %v3423 = vunpack.c.l.b16 %v2904
      %v3424 = vunpack.c.l.b16 %v2905
      %v3425 = vunpack.c.l.b16 %v2906
      %v3426 = vunpack.c.l.b16 %v2907
      %v3427 = vunpack.c.l.b16 %v2908
      %v3428 = vunpack.c.l.b16 %v2909
      %v3429 = vunpack.c.l.b16 %v2910
      %v3430 = vunpack.c.l.b16 %v2911
      %v3431 = vunpack.c.l.b16 %v2912
      %v3432 = vunpack.c.l.b16 %v2913
      %v3433 = vunpack.c.l.b16 %v2914
      %v3434 = vunpack.c.l.b16 %v2915
      %v3435 = vunpack.c.l.b16 %v2916
      %v3436 = vunpack.c.l.b16 %v2917
      %v3437 = vunpack.c.l.b16 %v2918
      %v3438 = vunpack.c.l.b16 %v2919
      %v3439 = vunpack.c.l.b16 %v2920
      %v3440 = vunpack.c.l.b16 %v2921
      %v3441 = vunpack.c.l.b16 %v2922
      %v3442 = vunpack.c.l.b16 %v2923
      %v3443 = vunpack.c.l.b16 %v2924
      %v3444 = vunpack.c.l.b16 %v2925
      %v3445 = vunpack.c.l.b16 %v2926
      %v3446 = vunpack.c.l.b16 %v2927
      %v3447 = vunpack.c.l.b16 %v2928
      %v3448 = vunpack.c.l.b16 %v2929
      %v3449 = vunpack.c.l.b16 %v2930
      %v3450 = vunpack.c.l.b16 %v2931
      %v3451 = vunpack.c.l.b16 %v2932
      %v3452 = vunpack.c.l.b16 %v2933
      %v3453 = vunpack.c.l.b16 %v2934
      %v3454 = vunpack.c.l.b16 %v2935
      %v3455 = vunpack.c.l.b16 %v2936
      %v3456 = vunpack.c.l.b16 %v2937
      %v3457 = vunpack.c.l.b16 %v2938
      %v3458 = vunpack.c.l.b16 %v2939
      %v3459 = vunpack.c.l.b16 %v2940
      %v3460 = vunpack.c.l.b16 %v2941
      %v3461 = vunpack.c.l.b16 %v2942
      %v3462 = vunpack.c.l.b16 %v2943
      %v3463 = vunpack.c.l.b16 %v2944
      %v3464 = vunpack.c.l.b16 %v2945
      %v3465 = vunpack.c.l.b16 %v2946
      %v3466 = vunpack.c.l.b16 %v2947
      %v3467 = vunpack.c.l.b16 %v2948
      %v3468 = vunpack.c.l.b16 %v2949
      %v3469 = vunpack.c.l.b16 %v2950
      %v3470 = vunpack.c.l.b16 %v2951
      %v3471 = vunpack.c.l.b16 %v2952
      %v3472 = vunpack.c.l.b16 %v2953
      %v3473 = vunpack.c.l.b16 %v2954
      %v3474 = vunpack.c.l.b16 %v2955
      %v3475 = vunpack.c.l.b16 %v2956
      %v3476 = vunpack.c.l.b16 %v2957
      %v3477 = vunpack.c.l.b16 %v2958
      %v3478 = vunpack.c.l.b16 %v2959
      %v3479 = vunpack.c.l.b16 %v2960
      %v3480 = vunpack.c.l.b16 %v2961
      %v3481 = vunpack.c.l.b16 %v2962
      %v3482 = vunpack.c.l.b16 %v2963
      %v3483 = vunpack.c.l.b16 %v2964
      %v3484 = vunpack.c.l.b16 %v2965
      %v3485 = vunpack.c.l.b16 %v2966
      %v3486 = vunpack.c.l.b16 %v2967
      %v3487 = vunpack.c.l.b16 %v2968
      %v3488 = vunpack.c.l.b16 %v2969
      %v3489 = vunpack.c.l.b16 %v2970
      %v3490 = vunpack.c.l.b16 %v2971
      %v3491 = vunpack.c.l.b16 %v2972
      %v3492 = vunpack.c.l.b16 %v2973
      %v3493 = vunpack.c.l.b16 %v2974
      %v3494 = vunpack.c.l.b16 %v2975
      %v3495 = vunpack.c.l.b16 %v2976
      %v3496 = vunpack.c.l.b16 %v2977
      %v3497 = vunpack.c.l.b16 %v2978
      %v3498 = vunpack.c.l.b16 %v2979
      %v3499 = vunpack.c.l.b16 %v2980
      %v3500 = vunpack.c.l.b16 %v2981
      %v3501 = vunpack.c.l.b16 %v2982
      %v3502 = vunpack.c.l.b16 %v2983
      %v3503 = vunpack.c.l.b16 %v2984
      %v3504 = vunpack.c.l.b16 %v2985
      %v3505 = vunpack.c.l.b16 %v2986
      %v3506 = vunpack.c.l.b16 %v2987
      %v3507 = vunpack.c.l.b16 %v2988
      %v3508 = vunpack.c.l.b16 %v2989
      %v3509 = vunpack.c.l.b16 %v2990
      %v3510 = vunpack.c.l.b16 %v2991
      %v3511 = vunpack.c.l.b16 %v2992
      %v3512 = vunpack.c.l.b16 %v2993
      %v3513 = vunpack.c.l.b16 %v2994
      %v3514 = vunpack.c.l.b16 %v2995
      %v3515 = vunpack.c.l.b16 %v2996
      %v3516 = vunpack.c.l.b16 %v2997
      %v3517 = vunpack.c.l.b16 %v2998
      %v3518 = vunpack.c.l.b16 %v2999
      %v3519 = vunpack.c.l.b16 %v3000
      %v3520 = vunpack.c.l.b16 %v3001
      %v3521 = vunpack.c.l.b16 %v3002
      %v3522 = vunpack.c.l.b16 %v3003
      %v3523 = vunpack.c.l.b16 %v3004
      %v3524 = vunpack.c.l.b16 %v3005
      %v3525 = vunpack.c.l.b16 %v3006
      %v3526 = vunpack.c.l.b16 %v3007
      %v3527 = vunpack.c.l.b16 %v3008
      %v3528 = vunpack.c.l.b16 %v3009
      %v3529 = vunpack.c.l.b16 %v3010
      %v3530 = vunpack.c.l.b16 %v3011
      %v3531 = vunpack.c.l.b16 %v3012
      %v3532 = vunpack.c.l.b16 %v3013
      %v3533 = vunpack.c.l.b16 %v3014
      %v3534 = vunpack.c.l.b16 %v3015
      %v3535 = vunpack.c.l.b16 %v3016
      %v3536 = vunpack.c.l.b16 %v3017
      %v3537 = vunpack.c.l.b16 %v3018
      %v3538 = vunpack.c.l.b16 %v3019
      %v3539 = vunpack.c.l.b16 %v3020
      %v3540 = vunpack.c.l.b16 %v3021
      %v3541 = vunpack.c.l.b16 %v3022
      %v3542 = vunpack.c.l.b16 %v3023
      %v3543 = vunpack.c.l.b16 %v3024
      %v3544 = vunpack.c.l.b16 %v3025
      %v3545 = vunpack.c.l.b16 %v3026
      %v3546 = vunpack.c.l.b16 %v3027
      %v3547 = vunpack.c.l.b16 %v3028
      %v3548 = vunpack.c.l.b16 %v3029
      %v3549 = vunpack.c.l.b16 %v3030
      %v3550 = vunpack.c.l.b16 %v3031
      %v3551 = vunpack.c.l.b16 %v3032
      %v3552 = vunpack.c.l.b16 %v3033
      %v3553 = vunpack.c.l.b16 %v3034
      %v3554 = vunpack.c.l.b16 %v3035
      %v3555 = vunpack.c.l.b16 %v3036
      %v3556 = vunpack.c.l.b16 %v3037
      %v3557 = vunpack.c.l.b16 %v3038
      %v3558 = vunpack.c.l.b16 %v3039
      %v3559 = vunpack.c.l.b16 %v3040
      %v3560 = vunpack.c.l.b16 %v3041
      %v3561 = vunpack.c.l.b16 %v3042
      %v3562 = vunpack.c.l.b16 %v3043
      %v3563 = vunpack.c.l.b16 %v3044
      %v3564 = vunpack.c.l.b16 %v3045
      %v3565 = vunpack.c.l.b16 %v3046
      %v3566 = vunpack.c.l.b16 %v3047
      %v3567 = vunpack.c.l.b16 %v3048
      %v3568 = vunpack.c.l.b16 %v3049
      %v3569 = vunpack.c.l.b16 %v3050
      %v3570 = vunpack.c.l.b16 %v3051
      %v3571 = vunpack.c.l.b16 %v3052
      %v3572 = vunpack.c.l.b16 %v3053
      %v3573 = vunpack.c.l.b16 %v3054
      %v3574 = vunpack.c.l.b16 %v3055
      %v3575 = vunpack.c.l.b16 %v3056
      %v3576 = vunpack.c.l.b16 %v3057
      %v3577 = vunpack.c.l.b16 %v3058
      %v3578 = vunpack.c.l.b16 %v3059
      %v3579 = vunpack.c.l.b16 %v3060
      %v3580 = vunpack.c.l.b16 %v3061
      %v3581 = vunpack.c.l.b16 %v3062
      %v3582 = vunpack.c.l.b16 %v3063
      %v3583 = vunpack.c.l.b16 %v3064
      %v3584 = vunpack.c.l.b16 %v3065
      %v3585 = vunpack.c.l.b16 %v3066
      %v3586 = vunpack.c.l.b16 %v3067
      %v3587 = vunpack.c.l.b16 %v3068
      %v3588 = vunpack.c.l.b16 %v3069
      %v3589 = vunpack.c.l.b16 %v3070
      %v3590 = vunpack.c.l.b16 %v3071
      %v3591 = vunpack.c.l.b16 %v3072
      %v3592 = vunpack.c.l.b16 %v3073
      %v3593 = vunpack.c.l.b16 %v3074
      %v3594 = vunpack.c.l.b16 %v3075
      %v3595 = vunpack.c.l.b16 %v3076
      %v3596 = vunpack.c.l.b16 %v3077
      %v3597 = vunpack.c.l.b16 %v3078
      %v3598 = vunpack.c.l.b16 %v3079
      %v3599 = vunpack.c.l.b16 %v3080
      %v3600 = vunpack.c.l.b16 %v3081
      %v3601 = vunpack.c.l.b16 %v3082
      %v3602 = vunpack.c.l.b16 %v3083
      %v3603 = vunpack.c.l.b16 %v3084
      %v3604 = vunpack.c.l.b16 %v3085
      %v3605 = vunpack.c.l.b16 %v3086
      %v3606 = vunpack.c.l.b16 %v3087
      %v3607 = vunpack.c.l.b16 %v3088
      %v3608 = vunpack.c.l.b16 %v3089
      %v3609 = vunpack.c.l.b16 %v3090
      %v3610 = vunpack.c.l.b16 %v3091
      %v3611 = vunpack.c.l.b16 %v3092
      %v3612 = vunpack.c.l.b16 %v3093
      %v3613 = vunpack.c.l.b16 %v3094
      %v3614 = vpack.c.b16 %v3359, %v3358
      %v3615 = vpack.c.b16 %v3361, %v3360
      %v3616 = vpack.c.b16 %v3363, %v3362
      %v3617 = vpack.c.b16 %v3365, %v3364
      %v3618 = vpack.c.b16 %v3367, %v3366
      %v3619 = vpack.c.b16 %v3369, %v3368
      %v3620 = vpack.c.b16 %v3371, %v3370
      %v3621 = vpack.c.b16 %v3373, %v3372
      %v3622 = vpack.c.b16 %v3375, %v3374
      %v3623 = vpack.c.b16 %v3377, %v3376
      %v3624 = vpack.c.b16 %v3379, %v3378
      %v3625 = vpack.c.b16 %v3381, %v3380
      %v3626 = vpack.c.b16 %v3383, %v3382
      %v3627 = vpack.c.b16 %v3385, %v3384
      %v3628 = vpack.c.b16 %v3387, %v3386
      %v3629 = vpack.c.b16 %v3389, %v3388
      %v3630 = vpack.c.b16 %v3391, %v3390
      %v3631 = vpack.c.b16 %v3393, %v3392
      %v3632 = vpack.c.b16 %v3395, %v3394
      %v3633 = vpack.c.b16 %v3397, %v3396
      %v3634 = vpack.c.b16 %v3399, %v3398
      %v3635 = vpack.c.b16 %v3401, %v3400
      %v3636 = vpack.c.b16 %v3403, %v3402
      %v3637 = vpack.c.b16 %v3405, %v3404
      %v3638 = vpack.c.b16 %v3407, %v3406
      %v3639 = vpack.c.b16 %v3409, %v3408
      %v3640 = vpack.c.b16 %v3411, %v3410
      %v3641 = vpack.c.b16 %v3413, %v3412
      %v3642 = vpack.c.b16 %v3415, %v3414
      %v3643 = vpack.c.b16 %v3417, %v3416
      %v3644 = vpack.c.b16 %v3419, %v3418
      %v3645 = vpack.c.b16 %v3421, %v3420
      %v3646 = vpack.c.b16 %v3423, %v3422
      %v3647 = vpack.c.b16 %v3425, %v3424
      %v3648 = vpack.c.b16 %v3427, %v3426
      %v3649 = vpack.c.b16 %v3429, %v3428
      %v3650 = vpack.c.b16 %v3431, %v3430
      %v3651 = vpack.c.b16 %v3433, %v3432
      %v3652 = vpack.c.b16 %v3435, %v3434
      %v3653 = vpack.c.b16 %v3437, %v3436
      %v3654 = vpack.c.b16 %v3439, %v3438
      %v3655 = vpack.c.b16 %v3441, %v3440
      %v3656 = vpack.c.b16 %v3443, %v3442
      %v3657 = vpack.c.b16 %v3445, %v3444
      %v3658 = vpack.c.b16 %v3447, %v3446
      %v3659 = vpack.c.b16 %v3449, %v3448
      %v3660 = vpack.c.b16 %v3451, %v3450
      %v3661 = vpack.c.b16 %v3453, %v3452
      %v3662 = vpack.c.b16 %v3455, %v3454
      %v3663 = vpack.c.b16 %v3457, %v3456
      %v3664 = vpack.c.b16 %v3459, %v3458
      %v3665 = vpack.c.b16 %v3461, %v3460
      %v3666 = vpack.c.b16 %v3463, %v3462
      %v3667 = vpack.c.b16 %v3465, %v3464
      %v3668 = vpack.c.b16 %v3467, %v3466
      %v3669 = vpack.c.b16 %v3469, %v3468
      %v3670 = vpack.c.b16 %v3471, %v3470
      %v3671 = vpack.c.b16 %v3473, %v3472
      %v3672 = vpack.c.b16 %v3475, %v3474
      %v3673 = vpack.c.b16 %v3477, %v3476
      %v3674 = vpack.c.b16 %v3479, %v3478
      %v3675 = vpack.c.b16 %v3481, %v3480
      %v3676 = vpack.c.b16 %v3483, %v3482
      %v3677 = vpack.c.b16 %v3485, %v3484
      %v3678 = vpack.c.b16 %v3487, %v3486
      %v3679 = vpack.c.b16 %v3489, %v3488
      %v3680 = vpack.c.b16 %v3491, %v3490
      %v3681 = vpack.c.b16 %v3493, %v3492
      %v3682 = vpack.c.b16 %v3495, %v3494
      %v3683 = vpack.c.b16 %v3497, %v3496
      %v3684 = vpack.c.b16 %v3499, %v3498
      %v3685 = vpack.c.b16 %v3501, %v3500
      %v3686 = vpack.c.b16 %v3503, %v3502
      %v3687 = vpack.c.b16 %v3505, %v3504
      %v3688 = vpack.c.b16 %v3507, %v3506
      %v3689 = vpack.c.b16 %v3509, %v3508
      %v3690 = vpack.c.b16 %v3511, %v3510
      %v3691 = vpack.c.b16 %v3513, %v3512
      %v3692 = vpack.c.b16 %v3515, %v3514
      %v3693 = vpack.c.b16 %v3517, %v3516
      %v3694 = vpack.c.b16 %v3519, %v3518
      %v3695 = vpack.c.b16 %v3521, %v3520
      %v3696 = vpack.c.b16 %v3523, %v3522
      %v3697 = vpack.c.b16 %v3525, %v3524
      %v3698 = vpack.c.b16 %v3527, %v3526
      %v3699 = vpack.c.b16 %v3529, %v3528
      %v3700 = vpack.c.b16 %v3531, %v3530
      %v3701 = vpack.c.b16 %v3533, %v3532
      %v3702 = vpack.c.b16 %v3535, %v3534
      %v3703 = vpack.c.b16 %v3537, %v3536
      %v3704 = vpack.c.b16 %v3539, %v3538
      %v3705 = vpack.c.b16 %v3541, %v3540
      %v3706 = vpack.c.b16 %v3543, %v3542
      %v3707 = vpack.c.b16 %v3545, %v3544
      %v3708 = vpack.c.b16 %v3547, %v3546
      %v3709 = vpack.c.b16 %v3549, %v3548
      %v3710 = vpack.c.b16 %v3551, %v3550
      %v3711 = vpack.c.b16 %v3553, %v3552
      %v3712 = vpack.c.b16 %v3555, %v3554
      %v3713 = vpack.c.b16 %v3557, %v3556
      %v3714 = vpack.c.b16 %v3559, %v3558
      %v3715 = vpack.c.b16 %v3561, %v3560
      %v3716 = vpack.c.b16 %v3563, %v3562
      %v3717 = vpack.c.b16 %v3565, %v3564
      %v3718 = vpack.c.b16 %v3567, %v3566
      %v3719 = vpack.c.b16 %v3569, %v3568
      %v3720 = vpack.c.b16 %v3571, %v3570
      %v3721 = vpack.c.b16 %v3573, %v3572
      %v3722 = vpack.c.b16 %v3575, %v3574
      %v3723 = vpack.c.b16 %v3577, %v3576
      %v3724 = vpack.c.b16 %v3579, %v3578
      %v3725 = vpack.c.b16 %v3581, %v3580
      %v3726 = vpack.c.b16 %v3583, %v3582
      %v3727 = vpack.c.b16 %v3585, %v3584
      %v3728 = vpack.c.b16 %v3587, %v3586
      %v3729 = vpack.c.b16 %v3589, %v3588
      %v3730 = vpack.c.b16 %v3591, %v3590
      %v3731 = vpack.c.b16 %v3593, %v3592
      %v3732 = vpack.c.b16 %v3595, %v3594
      %v3733 = vpack.c.b16 %v3597, %v3596
      %v3734 = vpack.c.b16 %v3599, %v3598
      %v3735 = vpack.c.b16 %v3601, %v3600
      %v3736 = vpack.c.b16 %v3603, %v3602
      %v3737 = vpack.c.b16 %v3605, %v3604
      %v3738 = vpack.c.b16 %v3607, %v3606
      %v3739 = vpack.c.b16 %v3609, %v3608
      %v3740 = vpack.c.b16 %v3611, %v3610
      %v3741 = vpack.c.b16 %v3613, %v3612
      %3870 = vmatprep.subr.bf16.mxu0 0
      %3871 = vmatpush1.bf16.msra.mxu0 %v3614
      %3872 = vmatprep.subr.bf16.mxu0 0
      %3873 = vmatpush1.bf16.msra.mxu0 %v3615
      %3874 = vmatprep.subr.bf16.mxu0 0
      %3875 = vmatpush1.bf16.msra.mxu0 %v3616
      %3876 = vmatprep.subr.bf16.mxu0 0
      %3877 = vmatpush1.bf16.msra.mxu0 %v3617
      %3878 = vmatprep.subr.bf16.mxu0 0
      %3879 = vmatpush1.bf16.msra.mxu0 %v3618
      %3880 = vmatprep.subr.bf16.mxu0 0
      %3881 = vmatpush1.bf16.msra.mxu0 %v3619
      %3882 = vmatprep.subr.bf16.mxu0 0
      %3883 = vmatpush1.bf16.msra.mxu0 %v3620
      %3884 = vmatprep.subr.bf16.mxu0 0
      %3885 = vmatpush1.bf16.msra.mxu0 %v3621
      %3886 = vmatprep.subr.bf16.mxu0 0
      %3887 = vmatpush1.bf16.msra.mxu0 %v3622
      %3888 = vmatprep.subr.bf16.mxu0 0
      %3889 = vmatpush1.bf16.msra.mxu0 %v3623
      %3890 = vmatprep.subr.bf16.mxu0 0
      %3891 = vmatpush1.bf16.msra.mxu0 %v3624
      %3892 = vmatprep.subr.bf16.mxu0 0
      %3893 = vmatpush1.bf16.msra.mxu0 %v3625
      %3894 = vmatprep.subr.bf16.mxu0 0
      %3895 = vmatpush1.bf16.msra.mxu0 %v3626
      %3896 = vmatprep.subr.bf16.mxu0 0
      %3897 = vmatpush1.bf16.msra.mxu0 %v3627
      %3898 = vmatprep.subr.bf16.mxu0 0
      %3899 = vmatpush1.bf16.msra.mxu0 %v3628
      %3900 = vmatprep.subr.bf16.mxu0 0
      %3901 = vmatpush1.bf16.msra.mxu0 %v3629
      %3902 = vmatprep.mubr.bf16.mxu0 %v2824
      %3903 = vmatmul.mubr.bf16.gmra.mrb[0].mxu0 %v2823
      %v3904 = vpop.f32.mrb[0].mxu0
      %v3905 = vadd.f32 %v3100, %v3904
      %v3906 = vpop.f32.mrb[0].mxu0
      %v3907 = vpop.f32.mrb[0].mxu0
      %v3908 = vpop.f32.mrb[0].mxu0
      %3909 = vdwg.mxu0
      %3910 = vmatprep.subr.bf16.mxu0 0
      %3911 = vmatpush1.bf16.msra.mxu0 %v3630
      %3912 = vmatprep.subr.bf16.mxu0 0
      %3913 = vmatpush1.bf16.msra.mxu0 %v3631
      %3914 = vmatprep.subr.bf16.mxu0 0
      %3915 = vmatpush1.bf16.msra.mxu0 %v3632
      %3916 = vmatprep.subr.bf16.mxu0 0
      %3917 = vmatpush1.bf16.msra.mxu0 %v3633
      %3918 = vmatprep.subr.bf16.mxu0 0
      %3919 = vmatpush1.bf16.msra.mxu0 %v3634
      %3920 = vmatprep.subr.bf16.mxu0 0
      %3921 = vmatpush1.bf16.msra.mxu0 %v3635
      %3922 = vmatprep.subr.bf16.mxu0 0
      %3923 = vmatpush1.bf16.msra.mxu0 %v3636
      %3924 = vmatprep.subr.bf16.mxu0 0
      %3925 = vmatpush1.bf16.msra.mxu0 %v3637
      %3926 = vmatprep.subr.bf16.mxu0 0
      %3927 = vmatpush1.bf16.msra.mxu0 %v3638
      %3928 = vmatprep.subr.bf16.mxu0 0
      %3929 = vmatpush1.bf16.msra.mxu0 %v3639
      %3930 = vmatprep.subr.bf16.mxu0 0
      %3931 = vmatpush1.bf16.msra.mxu0 %v3640
      %3932 = vmatprep.subr.bf16.mxu0 0
      %3933 = vmatpush1.bf16.msra.mxu0 %v3641
      %3934 = vmatprep.subr.bf16.mxu0 0
      %3935 = vmatpush1.bf16.msra.mxu0 %v3642
      %3936 = vmatprep.subr.bf16.mxu0 0
      %3937 = vmatpush1.bf16.msra.mxu0 %v3643
      %3938 = vmatprep.subr.bf16.mxu0 0
      %3939 = vmatpush1.bf16.msra.mxu0 %v3644
      %3940 = vmatprep.subr.bf16.mxu0 0
      %3941 = vmatpush1.bf16.msra.mxu0 %v3645
      %3942 = vmatprep.mubr.bf16.mxu0 %v2826
      %3943 = vmatmul.mubr.bf16.gmra.mrb[0].mxu0 %v2825
      %v3944 = vpop.f32.mrb[0].mxu0
      %v3945 = vadd.f32 %v3905, %v3944
      %v3946 = vpop.f32.mrb[0].mxu0
      %v3947 = vpop.f32.mrb[0].mxu0
      %v3948 = vpop.f32.mrb[0].mxu0
      %3949 = vdwg.mxu0
      %3950 = vmatprep.subr.bf16.mxu0 0
      %3951 = vmatpush1.bf16.msra.mxu0 %v3646
      %3952 = vmatprep.subr.bf16.mxu0 0
      %3953 = vmatpush1.bf16.msra.mxu0 %v3647
      %3954 = vmatprep.subr.bf16.mxu0 0
      %3955 = vmatpush1.bf16.msra.mxu0 %v3648
      %3956 = vmatprep.subr.bf16.mxu0 0
      %3957 = vmatpush1.bf16.msra.mxu0 %v3649
      %3958 = vmatprep.subr.bf16.mxu0 0
      %3959 = vmatpush1.bf16.msra.mxu0 %v3650
      %3960 = vmatprep.subr.bf16.mxu0 0
      %3961 = vmatpush1.bf16.msra.mxu0 %v3651
      %3962 = vmatprep.subr.bf16.mxu0 0
      %3963 = vmatpush1.bf16.msra.mxu0 %v3652
      %3964 = vmatprep.subr.bf16.mxu0 0
      %3965 = vmatpush1.bf16.msra.mxu0 %v3653
      %3966 = vmatprep.subr.bf16.mxu0 0
      %3967 = vmatpush1.bf16.msra.mxu0 %v3654
      %3968 = vmatprep.subr.bf16.mxu0 0
      %3969 = vmatpush1.bf16.msra.mxu0 %v3655
      %3970 = vmatprep.subr.bf16.mxu0 0
      %3971 = vmatpush1.bf16.msra.mxu0 %v3656
      %3972 = vmatprep.subr.bf16.mxu0 0
      %3973 = vmatpush1.bf16.msra.mxu0 %v3657
      %3974 = vmatprep.subr.bf16.mxu0 0
      %3975 = vmatpush1.bf16.msra.mxu0 %v3658
      %3976 = vmatprep.subr.bf16.mxu0 0
      %3977 = vmatpush1.bf16.msra.mxu0 %v3659
      %3978 = vmatprep.subr.bf16.mxu0 0
      %3979 = vmatpush1.bf16.msra.mxu0 %v3660
      %3980 = vmatprep.subr.bf16.mxu0 0
      %3981 = vmatpush1.bf16.msra.mxu0 %v3661
      %3982 = vmatprep.mubr.bf16.mxu0 %v2828
      %3983 = vmatmul.mubr.bf16.gmra.mrb[0].mxu0 %v2827
      %v3984 = vpop.f32.mrb[0].mxu0
      %v3985 = vadd.f32 %v3945, %v3984
      %v3986 = vpop.f32.mrb[0].mxu0
      %v3987 = vpop.f32.mrb[0].mxu0
      %v3988 = vpop.f32.mrb[0].mxu0
      %3989 = vdwg.mxu0
      %3990 = vmatprep.subr.bf16.mxu0 0
      %3991 = vmatpush1.bf16.msra.mxu0 %v3662
      %3992 = vmatprep.subr.bf16.mxu0 0
      %3993 = vmatpush1.bf16.msra.mxu0 %v3663
      %3994 = vmatprep.subr.bf16.mxu0 0
      %3995 = vmatpush1.bf16.msra.mxu0 %v3664
      %3996 = vmatprep.subr.bf16.mxu0 0
      %3997 = vmatpush1.bf16.msra.mxu0 %v3665
      %3998 = vmatprep.subr.bf16.mxu0 0
      %3999 = vmatpush1.bf16.msra.mxu0 %v3666
      %4000 = vmatprep.subr.bf16.mxu0 0
      %4001 = vmatpush1.bf16.msra.mxu0 %v3667
      %4002 = vmatprep.subr.bf16.mxu0 0
      %4003 = vmatpush1.bf16.msra.mxu0 %v3668
      %4004 = vmatprep.subr.bf16.mxu0 0
      %4005 = vmatpush1.bf16.msra.mxu0 %v3669
      %4006 = vmatprep.subr.bf16.mxu0 0
      %4007 = vmatpush1.bf16.msra.mxu0 %v3670
      %4008 = vmatprep.subr.bf16.mxu0 0
      %4009 = vmatpush1.bf16.msra.mxu0 %v3671
      %4010 = vmatprep.subr.bf16.mxu0 0
      %4011 = vmatpush1.bf16.msra.mxu0 %v3672
      %4012 = vmatprep.subr.bf16.mxu0 0
      %4013 = vmatpush1.bf16.msra.mxu0 %v3673
      %4014 = vmatprep.subr.bf16.mxu0 0
      %4015 = vmatpush1.bf16.msra.mxu0 %v3674
      %4016 = vmatprep.subr.bf16.mxu0 0
      %4017 = vmatpush1.bf16.msra.mxu0 %v3675
      %4018 = vmatprep.subr.bf16.mxu0 0
      %4019 = vmatpush1.bf16.msra.mxu0 %v3676
      %4020 = vmatprep.subr.bf16.mxu0 0
      %4021 = vmatpush1.bf16.msra.mxu0 %v3677
      %4022 = vmatprep.mubr.bf16.mxu0 %v2830
      %4023 = vmatmul.mubr.bf16.gmra.mrb[0].mxu0 %v2829
      %v4024 = vpop.f32.mrb[0].mxu0
      %v4025 = vadd.f32 %v3985, %v4024
      %v4026 = vpop.f32.mrb[0].mxu0
      %v4027 = vpop.f32.mrb[0].mxu0
      %v4028 = vpop.f32.mrb[0].mxu0
      %4029 = vdwg.mxu0
      %4030 = vmatprep.subr.bf16.mxu0 0
      %4031 = vmatpush1.bf16.msra.mxu0 %v3678
      %4032 = vmatprep.subr.bf16.mxu0 0
      %4033 = vmatpush1.bf16.msra.mxu0 %v3679
      %4034 = vmatprep.subr.bf16.mxu0 0
      %4035 = vmatpush1.bf16.msra.mxu0 %v3680
      %4036 = vmatprep.subr.bf16.mxu0 0
      %4037 = vmatpush1.bf16.msra.mxu0 %v3681
      %4038 = vmatprep.subr.bf16.mxu0 0
      %4039 = vmatpush1.bf16.msra.mxu0 %v3682
      %4040 = vmatprep.subr.bf16.mxu0 0
      %4041 = vmatpush1.bf16.msra.mxu0 %v3683
      %4042 = vmatprep.subr.bf16.mxu0 0
      %4043 = vmatpush1.bf16.msra.mxu0 %v3684
      %4044 = vmatprep.subr.bf16.mxu0 0
      %4045 = vmatpush1.bf16.msra.mxu0 %v3685
      %4046 = vmatprep.subr.bf16.mxu0 0
      %4047 = vmatpush1.bf16.msra.mxu0 %v3686
      %4048 = vmatprep.subr.bf16.mxu0 0
      %4049 = vmatpush1.bf16.msra.mxu0 %v3687
      %4050 = vmatprep.subr.bf16.mxu0 0
      %4051 = vmatpush1.bf16.msra.mxu0 %v3688
      %4052 = vmatprep.subr.bf16.mxu0 0
      %4053 = vmatpush1.bf16.msra.mxu0 %v3689
      %4054 = vmatprep.subr.bf16.mxu0 0
      %4055 = vmatpush1.bf16.msra.mxu0 %v3690
      %4056 = vmatprep.subr.bf16.mxu0 0
      %4057 = vmatpush1.bf16.msra.mxu0 %v3691
      %4058 = vmatprep.subr.bf16.mxu0 0
      %4059 = vmatpush1.bf16.msra.mxu0 %v3692
      %4060 = vmatprep.subr.bf16.mxu0 0
      %4061 = vmatpush1.bf16.msra.mxu0 %v3693
      %4062 = vmatprep.mubr.bf16.mxu0 %v2832
      %4063 = vmatmul.mubr.bf16.gmra.mrb[0].mxu0 %v2831
      %v4064 = vpop.f32.mrb[0].mxu0
      %v4065 = vadd.f32 %v4025, %v4064
      %v4066 = vpop.f32.mrb[0].mxu0
      %v4067 = vpop.f32.mrb[0].mxu0
      %v4068 = vpop.f32.mrb[0].mxu0
      %4069 = vdwg.mxu0
      %4070 = vmatprep.subr.bf16.mxu0 0
      %4071 = vmatpush1.bf16.msra.mxu0 %v3694
      %4072 = vmatprep.subr.bf16.mxu0 0
      %4073 = vmatpush1.bf16.msra.mxu0 %v3695
      %4074 = vmatprep.subr.bf16.mxu0 0
      %4075 = vmatpush1.bf16.msra.mxu0 %v3696
      %4076 = vmatprep.subr.bf16.mxu0 0
      %4077 = vmatpush1.bf16.msra.mxu0 %v3697
      %4078 = vmatprep.subr.bf16.mxu0 0
      %4079 = vmatpush1.bf16.msra.mxu0 %v3698
      %4080 = vmatprep.subr.bf16.mxu0 0
      %4081 = vmatpush1.bf16.msra.mxu0 %v3699
      %4082 = vmatprep.subr.bf16.mxu0 0
      %4083 = vmatpush1.bf16.msra.mxu0 %v3700
      %4084 = vmatprep.subr.bf16.mxu0 0
      %4085 = vmatpush1.bf16.msra.mxu0 %v3701
      %4086 = vmatprep.subr.bf16.mxu0 0
      %4087 = vmatpush1.bf16.msra.mxu0 %v3702
      %4088 = vmatprep.subr.bf16.mxu0 0
      %4089 = vmatpush1.bf16.msra.mxu0 %v3703
      %4090 = vmatprep.subr.bf16.mxu0 0
      %4091 = vmatpush1.bf16.msra.mxu0 %v3704
      %4092 = vmatprep.subr.bf16.mxu0 0
      %4093 = vmatpush1.bf16.msra.mxu0 %v3705
      %4094 = vmatprep.subr.bf16.mxu0 0
      %4095 = vmatpush1.bf16.msra.mxu0 %v3706
      %4096 = vmatprep.subr.bf16.mxu0 0
      %4097 = vmatpush1.bf16.msra.mxu0 %v3707
      %4098 = vmatprep.subr.bf16.mxu0 0
      %4099 = vmatpush1.bf16.msra.mxu0 %v3708
      %4100 = vmatprep.subr.bf16.mxu0 0
      %4101 = vmatpush1.bf16.msra.mxu0 %v3709
      %4102 = vmatprep.mubr.bf16.mxu0 %v2834
      %4103 = vmatmul.mubr.bf16.gmra.mrb[0].mxu0 %v2833
      %v4104 = vpop.f32.mrb[0].mxu0
      %v4105 = vadd.f32 %v4065, %v4104
      %v4106 = vpop.f32.mrb[0].mxu0
      %v4107 = vpop.f32.mrb[0].mxu0
      %v4108 = vpop.f32.mrb[0].mxu0
      %4109 = vdwg.mxu0
      %4110 = vmatprep.subr.bf16.mxu0 0
      %4111 = vmatpush1.bf16.msra.mxu0 %v3710
      %4112 = vmatprep.subr.bf16.mxu0 0
      %4113 = vmatpush1.bf16.msra.mxu0 %v3711
      %4114 = vmatprep.subr.bf16.mxu0 0
      %4115 = vmatpush1.bf16.msra.mxu0 %v3712
      %4116 = vmatprep.subr.bf16.mxu0 0
      %4117 = vmatpush1.bf16.msra.mxu0 %v3713
      %4118 = vmatprep.subr.bf16.mxu0 0
      %4119 = vmatpush1.bf16.msra.mxu0 %v3714
      %4120 = vmatprep.subr.bf16.mxu0 0
      %4121 = vmatpush1.bf16.msra.mxu0 %v3715
      %4122 = vmatprep.subr.bf16.mxu0 0
      %4123 = vmatpush1.bf16.msra.mxu0 %v3716
      %4124 = vmatprep.subr.bf16.mxu0 0
      %4125 = vmatpush1.bf16.msra.mxu0 %v3717
      %4126 = vmatprep.subr.bf16.mxu0 0
      %4127 = vmatpush1.bf16.msra.mxu0 %v3718
      %4128 = vmatprep.subr.bf16.mxu0 0
      %4129 = vmatpush1.bf16.msra.mxu0 %v3719
      %4130 = vmatprep.subr.bf16.mxu0 0
      %4131 = vmatpush1.bf16.msra.mxu0 %v3720
      %4132 = vmatprep.subr.bf16.mxu0 0
      %4133 = vmatpush1.bf16.msra.mxu0 %v3721
      %4134 = vmatprep.subr.bf16.mxu0 0
      %4135 = vmatpush1.bf16.msra.mxu0 %v3722
      %4136 = vmatprep.subr.bf16.mxu0 0
      %4137 = vmatpush1.bf16.msra.mxu0 %v3723
      %4138 = vmatprep.subr.bf16.mxu0 0
      %4139 = vmatpush1.bf16.msra.mxu0 %v3724
      %4140 = vmatprep.subr.bf16.mxu0 0
      %4141 = vmatpush1.bf16.msra.mxu0 %v3725
      %4142 = vmatprep.mubr.bf16.mxu0 %v2836
      %4143 = vmatmul.mubr.bf16.gmra.mrb[0].mxu0 %v2835
      %v4144 = vpop.f32.mrb[0].mxu0
      %v4145 = vadd.f32 %v4105, %v4144
      %v4146 = vpop.f32.mrb[0].mxu0
      %v4147 = vpop.f32.mrb[0].mxu0
      %v4148 = vpop.f32.mrb[0].mxu0
      %4149 = vdwg.mxu0
      %4150 = vmatprep.subr.bf16.mxu0 0
      %4151 = vmatpush1.bf16.msra.mxu0 %v3726
      %4152 = vmatprep.subr.bf16.mxu0 0
      %4153 = vmatpush1.bf16.msra.mxu0 %v3727
      %4154 = vmatprep.subr.bf16.mxu0 0
      %4155 = vmatpush1.bf16.msra.mxu0 %v3728
      %4156 = vmatprep.subr.bf16.mxu0 0
      %4157 = vmatpush1.bf16.msra.mxu0 %v3729
      %4158 = vmatprep.subr.bf16.mxu0 0
      %4159 = vmatpush1.bf16.msra.mxu0 %v3730
      %4160 = vmatprep.subr.bf16.mxu0 0
      %4161 = vmatpush1.bf16.msra.mxu0 %v3731
      %4162 = vmatprep.subr.bf16.mxu0 0
      %4163 = vmatpush1.bf16.msra.mxu0 %v3732
      %4164 = vmatprep.subr.bf16.mxu0 0
      %4165 = vmatpush1.bf16.msra.mxu0 %v3733
      %4166 = vmatprep.subr.bf16.mxu0 0
      %4167 = vmatpush1.bf16.msra.mxu0 %v3734
      %4168 = vmatprep.subr.bf16.mxu0 0
      %4169 = vmatpush1.bf16.msra.mxu0 %v3735
      %4170 = vmatprep.subr.bf16.mxu0 0
      %4171 = vmatpush1.bf16.msra.mxu0 %v3736
      %4172 = vmatprep.subr.bf16.mxu0 0
      %4173 = vmatpush1.bf16.msra.mxu0 %v3737
      %4174 = vmatprep.subr.bf16.mxu0 0
      %4175 = vmatpush1.bf16.msra.mxu0 %v3738
      %4176 = vmatprep.subr.bf16.mxu0 0
      %4177 = vmatpush1.bf16.msra.mxu0 %v3739
      %4178 = vmatprep.subr.bf16.mxu0 0
      %4179 = vmatpush1.bf16.msra.mxu0 %v3740
      %4180 = vmatprep.subr.bf16.mxu0 0
      %4181 = vmatpush1.bf16.msra.mxu0 %v3741
      %4182 = vmatprep.mubr.bf16.mxu0 %v2838
      %4183 = vmatmul.mubr.bf16.gmra.mrb[0].mxu0 %v2837
      %v4184 = vpop.f32.mrb[0].mxu0
      %v4185 = vadd.f32 %v4145, %v4184
      %v4186 = vpop.f32.mrb[0].mxu0
      %v4187 = vpop.f32.mrb[0].mxu0
      %v4188 = vpop.f32.mrb[0].mxu0
      %4189 = vdwg.mxu0
      %v4190 = vadd.f32 %v2198, %v4185
      %v4191 = vld [vmem:[%s13] sm:$0x1]
      %v4192 = vld [vmem:[%s14] sm:$0x1]
      %v4193 = vsel %vm640, %v4190, 0.0
      %4194 = vadd.xlane.f32.xlu0 %v4193
      %v4195 = vpop.xlane.xlu0 %4194
      %v4196 = vmul.f32 %v4195, %v2174
      %v4197 = vsub.f32 %v4190, %v4196
      %v4198 = vmul.f32 %v4197, %v4197
      %v4199 = vsel %vm640, %v4198, 0.0
      %4200 = vadd.xlane.f32.xlu0 %v4199
      %v4201 = vpop.xlane.xlu0 %4200
      %v4202 = vmul.f32 %v4201, %v2174
      %v4203 = vadd.f32 %v4202, 1e-05
      %v4204 = vrsqrt.pop %v4203
      %v4205 = vmul.f32 %v4197, %v4204
      %v4207 = vlaneseq
      %v4208 = vshrl.u32 %v4207, 7
      %v4209 = vsub.s32 0, %v4208
      %v4210 = vrot.slane %v4191, %v4209
      %v4212 = vmul.f32 %v4205, %v4210
      %v4214 = vlaneseq
      %v4215 = vshrl.u32 %v4214, 7
      %v4216 = vsub.s32 0, %v4215
      %v4217 = vrot.slane %v4192, %v4216
      %v4219 = vadd.f32 %v4212, %v4217
      %v4220 = vld [vmem:[%s15] sm:$0xff]
      %v4221 = vld [vmem:[%s15 + $0x8] sm:$0xff]
      %v4222 = vld [vmem:[%s15 + $0x10] sm:$0xff]
      %v4223 = vld [vmem:[%s15 + $0x18] sm:$0xff]
      %v4224 = vld [vmem:[%s16] sm:$0x1]
      %v4226 = vlaneseq
      %v4227 = vshrl.u32 %v4226, 7
      %v4228 = vsub.s32 0, %v4227
      %v4229 = vrot.slane %v4224, %v4228
      %v4232 = vsel %vm640, %v4219, 0
      %4234 = vmatprep.subr.mxu0 0.0
      %4235 = vmatpush1.msra.mxu0 %v4220
      %4236 = vmatprep.subr.mxu0 0.0
      %4237 = vmatpush1.msra.mxu0 %v4221
      %4238 = vmatprep.subr.mxu0 0.0
      %4239 = vmatpush1.msra.mxu0 %v4222
      %4240 = vmatprep.subr.mxu0 0.0
      %4241 = vmatpush1.msra.mxu0 %v4223
      %4242 = vmatprep.subr.mxu0 0.0
      %4243 = vmatpush1.msra.mxu0 0.0
      %4244 = vmatprep.subr.mxu0 0.0
      %4245 = vmatpush1.msra.mxu0 0.0
      %4246 = vmatprep.subr.mxu0 0.0
      %4247 = vmatpush1.msra.mxu0 0.0
      %4248 = vmatprep.subr.mxu0 0.0
      %4249 = vmatpush1.msra.mxu0 0.0
      %4250 = vmatprep.subr.mxu0 0.0
      %4251 = vmatpush1.msra.mxu0 0.0
      %4252 = vmatprep.subr.mxu0 0.0
      %4253 = vmatpush1.msra.mxu0 0.0
      %4254 = vmatprep.subr.mxu0 0.0
      %4255 = vmatpush1.msra.mxu0 0.0
      %4256 = vmatprep.subr.mxu0 0.0
      %4257 = vmatpush1.msra.mxu0 0.0
      %4258 = vmatprep.subr.mxu0 0.0
      %4259 = vmatpush1.msra.mxu0 0.0
      %4260 = vmatprep.subr.mxu0 0.0
      %4261 = vmatpush1.msra.mxu0 0.0
      %4262 = vmatprep.subr.mxu0 0.0
      %4263 = vmatpush1.msra.mxu0 0.0
      %4264 = vmatprep.subr.mxu0 0.0
      %4265 = vmatpush1.msra.mxu0 0.0
      %4266 = vmatprep.subr.mxu0 0.0
      %4267 = vmatpush1.msra.mxu0 0.0
      %4268 = vmatprep.subr.mxu0 0.0
      %4269 = vmatpush1.msra.mxu0 0.0
      %4270 = vmatprep.subr.mxu0 0.0
      %4271 = vmatpush1.msra.mxu0 0.0
      %4272 = vmatprep.subr.mxu0 0.0
      %4273 = vmatpush1.msra.mxu0 0.0
      %4274 = vmatprep.subr.mxu0 0.0
      %4275 = vmatpush1.msra.mxu0 0.0
      %4276 = vmatprep.subr.mxu0 0.0
      %4277 = vmatpush1.msra.mxu0 0.0
      %4278 = vmatprep.subr.mxu0 0.0
      %4279 = vmatpush1.msra.mxu0 0.0
      %4280 = vmatprep.subr.mxu0 0.0
      %4281 = vmatpush1.msra.mxu0 0.0
      %4282 = vmatprep.subr.mxu0 0.0
      %4283 = vmatpush1.msra.mxu0 0.0
      %4284 = vmatprep.subr.mxu0 0.0
      %4285 = vmatpush1.msra.mxu0 0.0
      %4286 = vmatprep.subr.mxu0 0.0
      %4287 = vmatpush1.msra.mxu0 0.0
      %4288 = vmatprep.subr.mxu0 0.0
      %4289 = vmatpush1.msra.mxu0 0.0
      %4290 = vmatprep.subr.mxu0 0.0
      %4291 = vmatpush1.msra.mxu0 0.0
      %4292 = vmatprep.subr.mxu0 0.0
      %4293 = vmatpush1.msra.mxu0 0.0
      %4294 = vmatprep.subr.mxu0 0.0
      %4295 = vmatpush1.msra.mxu0 0.0
      %4296 = vmatprep.subr.mxu0 0.0
      %4297 = vmatpush1.msra.mxu0 0.0
      %4298 = vmatprep.mubr.f32.mxu0 0.0
      %4299 = vmatmul.mubr.f32.gmra.mrb[0].mxu0 %v4232
      %v4300 = vpop.f32.mrb[0].mxu0
      %v4301 = vadd.f32 %v4229, %v4300
      %v4302 = vpop.f32.mrb[0].mxu0
      %4303 = vdwg.mxu0
      %4304 = vmax.xlane.f32.xlu0 %v4301
      %v4305 = vpop.xlane.xlu0 %4304
      %v4306 = vsub.f32 %v4301, %v4305
      %v4307 = vmul.f32 %v4306, 1.442695
      %v4308 = vpow.pop %v4307
      %4309 = vadd.xlane.f32.xlu0 %v4308
      %v4310 = vpop.xlane.xlu0 %4309
      %v4311 = vrcp.pop %v4310
      %v4312 = vmul.f32 %v4308, %v4311
      %4313 = vst [vmem:[%s543] sm:$0xff] %v4312
      %p4314 = scmp.lt.s32.totalorder %s28, 1
      %s4315 = scalar_select %p4314, %s28, 1
      %s4316 = smul.addr %s4315, 8
      %s4317 = scalar_lea.vmem %s17, %s4316
      // Predicated region
      $region89: #{_lambda_.1} parent=87 // pred_check
        %p4318 = pneg %p408
      $region90: #{_lambda_.1} parent=87 // pred_check_branch
        %4320 = sbr.rel (%p4318) target = $region92
      $region91: #{_lambda_.1} parent=87 // pred_region
        _
      $region92: #{_lambda_.1} parent=87 // pred_fallthru
        _
    $region88: #{_lambda_.1} parent=5 // pred_fallthru
      _
    %p4321 = scmp.le.s32.totalorder 2, %s23
    // Predicated region
    $region93: #{_lambda_.1} parent=5 // pred_check
      %p4322 = pneg %p4321
    $region94: #{_lambda_.1} parent=5 // pred_check_branch
      %4324 = sbr.rel (%p4322) target = $region96
    $region95: #{_lambda_.1} parent=5 // pred_region
      %s4325 = ssub.s32 %s23, 2
      // Predicated region
      $region97: #{_lambda_.1} parent=95 // pred_check
        %p4326 = pneg %p414
      $region98: #{_lambda_.1} parent=95 // pred_check_branch
        %4328 = sbr.rel (%p4326) target = $region100
      $region99: #{_lambda_.1} parent=95 // pred_region
        %p4329 = scmp.lt.s32.totalorder %s29, 1
        %s4330 = scalar_select %p4329, %s29, 1
        %s4331 = smul.addr %s4330, 8
        %s4332 = scalar_lea.vmem %s17, %s4331
      $region100: #{_lambda_.1} parent=95 // pred_fallthru
        _
    $region96: #{_lambda_.1} parent=5 // pred_fallthru
      _
  $region6: #{_lambda_.1} parent=0 // loop_footer
    %s27 = sadd.s32 1, %s23
  $region7: #{_lambda_.1} parent=0 // loop_footer_branch
    %22 = sbr.rel target = $region3
  $region8: #{_lambda_.1} parent=0 // loop_exit
    _

</llo_original>
